<compile_context>
chip_gen: v6e
topology: v6e:2x2x1
jax: 0.10.0
libtpu: 0.0.40
codegen_flags: <defaults>
</compile_context>

<pallas_src>
import functools

import jax
import jax.numpy as jnp
from jax.experimental import pallas as pl
from jax.experimental.pallas import tpu as pltpu


# ----------------------------- kernel helpers --------------------------------

def _layer_norm(x, gamma, beta, eps=1e-5):
    mean = jnp.mean(x, axis=-1, keepdims=True)
    var = jnp.mean((x - mean) ** 2, axis=-1, keepdims=True)
    return (x - mean) * jax.lax.rsqrt(var + eps) * gamma + beta


def _split_heads(t, num_heads, h_size):
    # (T, D) -> (H, T, hs): lane slices stacked along a new leading axis.
    return jnp.stack(
        [t[:, h * h_size:(h + 1) * h_size] for h in range(num_heads)], axis=0)


def _merge_heads(o, num_heads):
    # (H, T, hs) -> (T, D)
    return jnp.concatenate([o[h] for h in range(num_heads)], axis=-1)


def _mha(q, k, v, num_heads, h_size, causal):
    """Batched-over-heads attention.  q:(Tq,D) k,v:(Tk,D) f32 -> (Tq,D) f32."""
    bf = jnp.bfloat16
    qh = _split_heads(q, num_heads, h_size)          # (H, Tq, hs)
    kh = _split_heads(k, num_heads, h_size)          # (H, Tk, hs)
    vh = _split_heads(v, num_heads, h_size)          # (H, Tk, hs)

    s = jnp.einsum("hqd,hkd->hqk", qh.astype(bf), kh.astype(bf),
                   preferred_element_type=jnp.float32) * (h_size ** -0.5)
    if causal:
        Tq, Tk = q.shape[0], k.shape[0]
        row = jax.lax.broadcasted_iota(jnp.int32, (Tq, Tk), 0)
        col = jax.lax.broadcasted_iota(jnp.int32, (Tq, Tk), 1)
        s = jnp.where((row >= col)[None, :, :], s, -jnp.inf)

    s = s - jnp.max(s, axis=-1, keepdims=True)
    p = jnp.exp(s)
    p = p * pl.reciprocal(jnp.sum(p, axis=-1, keepdims=True), approx=True)
    # TODO(synk): attention-weight dropout is identity (eval mode).
    o = jnp.einsum("hqk,hkd->hqd", p.astype(bf), vh.astype(bf),
                   preferred_element_type=jnp.float32)
    return _merge_heads(o, num_heads)


# ----------------------------- kernel -----------------------------------------

def _decoder_kernel(num_heads, h_size,
                    x_ref, enc_ref, w_in_ref, w2_ref, vec_ref, o_ref):
    D = num_heads * h_size
    bf = jnp.bfloat16
    f32 = jnp.float32

    x = x_ref[0]        # (Tq, D) f32
    enc = enc_ref[0]    # (Tk, D) f32

    # packed bf16 weights, column offsets in units of D:
    #   [0:3]  masked-attn Wq|Wk|Wv (per-head weights fused, no bias)
    #   [3:4]  masked-attn out-proj   [4:5] cross-attn Wq
    #   [5:7]  cross-attn Wk|Wv       [7:8] cross-attn out-proj
    #   [8:12] FFN W1
    w_mqkv = w_in_ref[:, 0:3 * D]
    w_mo   = w_in_ref[:, 3 * D:4 * D]
    w_cq   = w_in_ref[:, 4 * D:5 * D]
    w_ckv  = w_in_ref[:, 5 * D:7 * D]
    w_co   = w_in_ref[:, 7 * D:8 * D]
    w1     = w_in_ref[:, 8 * D:12 * D]
    w2     = w2_ref[...]

    # packed f32 bias / layernorm vectors, offsets in units of D
    def vec(i, n=1):
        return vec_ref[:, i * D:(i + n) * D]
    b_mo, b_cq, b_ckv, b_co = vec(0), vec(1), vec(2, 2), vec(4)
    b1, b2 = vec(5, 4), vec(9)
    g1, be1, g2, be2, g3, be3 = (vec(10), vec(11), vec(12),
                                 vec(13), vec(14), vec(15))

    # ---- masked (causal) multi-head self-attention -----------------------
    qkv = jnp.dot(x.astype(bf), w_mqkv, preferred_element_type=f32)   # (Tq,3D)
    sa = _mha(qkv[:, 0:D], qkv[:, D:2 * D], qkv[:, 2 * D:3 * D],
              num_heads, h_size, causal=True)
    sa = jnp.dot(sa.astype(bf), w_mo, preferred_element_type=f32) + b_mo
    # TODO(synk): projection dropout is identity (eval mode).
    x1 = _layer_norm(x + sa, g1, be1)

    # ---- cross attention: q from x1, k/v from encoder output -------------
    q = jnp.dot(x1.astype(bf), w_cq, preferred_element_type=f32) + b_cq
    kv = jnp.dot(enc.astype(bf), w_ckv, preferred_element_type=f32) + b_ckv
    ca = _mha(q, kv[:, 0:D], kv[:, D:2 * D], num_heads, h_size, causal=False)
    ca = jnp.dot(ca.astype(bf), w_co, preferred_element_type=f32) + b_co
    x2 = _layer_norm(x1 + ca, g2, be2)

    # ---- feed-forward -----------------------------------------------------
    h1 = jnp.maximum(
        jnp.dot(x2.astype(bf), w1, preferred_element_type=f32) + b1, 0.0)
    ff = jnp.dot(h1.astype(bf), w2, preferred_element_type=f32) + b2
    # TODO(synk): FFN dropout is identity (eval mode).
    o_ref[0] = _layer_norm(x2 + ff, g3, be3)


# ----------------------------- wrapper -----------------------------------------

def decoder_block(x, enc_out, params, *, num_heads):
    B, Tq, D = x.shape
    Tk = enc_out.shape[1]
    hs = D // num_heads
    bf = jnp.bfloat16

    # Host-side fusion/packing (order must match the kernel's static offsets).
    w_in = jnp.concatenate(
        [params["w_mq"], params["w_mk"], params["w_mv"], params["w_mo"],
         params["w_cq"], params["w_ck"], params["w_cv"], params["w_co"],
         params["w1"]], axis=1).astype(bf)                       # (D, 12D)
    w2 = params["w2"].astype(bf)                                 # (4D, D)
    vpack = jnp.concatenate(
        [params["b_mo"], params["b_cq"], params["b_ck"], params["b_cv"],
         params["b_co"], params["b1"], params["b2"],
         params["g1"], params["be1"], params["g2"], params["be2"],
         params["g3"], params["be3"]], axis=1).astype(jnp.float32)  # (1, 16D)

    kernel = functools.partial(_decoder_kernel, num_heads, hs)

    return pl.pallas_call(
        kernel,
        out_shape=jax.ShapeDtypeStruct((B, Tq, D), jnp.float32),
        grid_spec=pltpu.PrefetchScalarGridSpec(
            num_scalar_prefetch=0,
            grid=(B,),
            in_specs=[
                pl.BlockSpec((1, Tq, D), lambda b: (b, 0, 0)),   # x
                pl.BlockSpec((1, Tk, D), lambda b: (b, 0, 0)),   # enc_out
                pl.BlockSpec((D, 12 * D), lambda b: (0, 0)),     # packed weights
                pl.BlockSpec((4 * D, D), lambda b: (0, 0)),      # FFN W2
                pl.BlockSpec((1, 16 * D), lambda b: (0, 0)),     # biases/LN
            ],
            out_specs=pl.BlockSpec((1, Tq, D), lambda b: (b, 0, 0)),
        ),
        compiler_params=pltpu.CompilerParams(
            dimension_semantics=("parallel",)),
    )(x, enc_out, w_in, w2, vpack)


# ----------------------------- pure-JAX reference -------------------------------
# Mirrors the kernel's mixed-precision policy (bf16 matmul operands, f32 acc).

def decoder_block_ref(x, enc_out, params, *, num_heads):
    B, Tq, D = x.shape
    Tk = enc_out.shape[1]
    hs = D // num_heads
    bf = jnp.bfloat16
    f32 = jnp.float32

    def mm(a, w):
        return jnp.dot(a.astype(bf), w.astype(bf), preferred_element_type=f32)

    def ln(y, g, b, eps=1e-5):
        m = jnp.mean(y, -1, keepdims=True)
        v = jnp.mean((y - m) ** 2, -1, keepdims=True)
        return (y - m) * jax.lax.rsqrt(v + eps) * g + b

    def heads(t):
        return t.reshape(B, -1, num_heads, hs).transpose(0, 2, 1, 3)

    def attn(q, k, v, causal):
        s = jnp.einsum("bhqd,bhkd->bhqk", q.astype(bf), k.astype(bf),
                       preferred_element_type=f32) * hs ** -0.5
        if causal:
            m = jnp.tril(jnp.ones((q.shape[2], k.shape[2]), bool))
            s = jnp.where(m[None, None], s, -jnp.inf)
        p = jax.nn.softmax(s, axis=-1)
        o = jnp.einsum("bhqk,bhkd->bhqd", p.astype(bf), v.astype(bf),
                       preferred_element_type=f32)
        return o.transpose(0, 2, 1, 3).reshape(B, -1, D)

    sa = attn(heads(mm(x, params["w_mq"])), heads(mm(x, params["w_mk"])),
              heads(mm(x, params["w_mv"])), causal=True)
    sa = mm(sa, params["w_mo"]) + params["b_mo"]
    x1 = ln(x + sa, params["g1"], params["be1"])

    q = mm(x1, params["w_cq"]) + params["b_cq"]
    k = mm(enc_out, params["w_ck"]) + params["b_ck"]
    v = mm(enc_out, params["w_cv"]) + params["b_cv"]
    ca = attn(heads(q), heads(k), heads(v), causal=False)
    ca = mm(ca, params["w_co"]) + params["b_co"]
    x2 = ln(x1 + ca, params["g2"], params["be2"])

    ff = mm(jnp.maximum(mm(x2, params["w1"]) + params["b1"], 0.0),
            params["w2"]) + params["b2"]
    return ln(x2 + ff, params["g3"], params["be3"])


# ----------------------------- main ---------------------------------------------

if __name__ == "__main__":
    B, T_Q, T_K, D = 2, 16, 16, 128       # small shapes; D divisible by heads
    NUM_HEADS = 4                         # H_size = 32

    key = jax.random.PRNGKey(0)
    keys = jax.random.split(key, 32)
    scale = 0.02

    def w(k, shp):
        return (scale * jax.random.normal(k, shp)).astype(jnp.float32)

    params = {
        # masked self-attn: per-head (D,hs) q/k/v weights (bias=False) fused
        # head-wise into (D, D); out-proj has bias.
        "w_mq": w(keys[0], (D, D)), "w_mk": w(keys[1], (D, D)),
        "w_mv": w(keys[2], (D, D)),
        "w_mo": w(keys[3], (D, D)), "b_mo": w(keys[4], (1, D)),
        # cross attention (all Linear layers have bias)
        "w_cq": w(keys[5], (D, D)), "b_cq": w(keys[6], (1, D)),
        "w_ck": w(keys[7], (D, D)), "b_ck": w(keys[8], (1, D)),
        "w_cv": w(keys[9], (D, D)), "b_cv": w(keys[10], (1, D)),
        "w_co": w(keys[11], (D, D)), "b_co": w(keys[12], (1, D)),
        # feed-forward
        "w1": w(keys[13], (D, 4 * D)), "b1": w(keys[14], (1, 4 * D)),
        "w2": w(keys[15], (4 * D, D)), "b2": w(keys[16], (1, D)),
        # layer norms
        "g1": jnp.ones((1, D), jnp.float32), "be1": jnp.zeros((1, D), jnp.float32),
        "g2": jnp.ones((1, D), jnp.float32), "be2": jnp.zeros((1, D), jnp.float32),
        "g3": jnp.ones((1, D), jnp.float32), "be3": jnp.zeros((1, D), jnp.float32),
    }

    x = jax.random.normal(keys[20], (B, T_Q, D), dtype=jnp.float32)
    enc_out = jax.random.normal(keys[21], (B, T_K, D), dtype=jnp.float32)

    out = decoder_block(x, enc_out, params, num_heads=NUM_HEADS)
    out = jax.block_until_ready(out)

    ref = decoder_block_ref(x, enc_out, params, num_heads=NUM_HEADS)
    assert out.shape == (B, T_Q, D)
    max_err = float(jnp.max(jnp.abs(out - ref)))
    assert jnp.allclose(out, ref, atol=2e-3, rtol=2e-3), \
        f"mismatch vs reference (max abs err {max_err})"

    print("KERNEL_OK")
</pallas_src>

<mosaic_0001>
module attributes {stable_mosaic.version = 11 : i64} {
  func.func @_decoder_kernel(%arg0: i32, %arg1: memref<1x16x128xf32, #tpu.memory_space<vmem>>, %arg2: memref<1x16x128xf32, #tpu.memory_space<vmem>>, %arg3: memref<128x1536xbf16, #tpu.memory_space<vmem>>, %arg4: memref<512x128xbf16, #tpu.memory_space<vmem>>, %arg5: memref<1x2048xf32, #tpu.memory_space<vmem>>, %arg6: memref<1x16x128xf32, #tpu.memory_space<vmem>>) attributes {dimension_semantics = [#tpu.dimension_semantics<parallel>], iteration_bounds = array<i64: 2>, scalar_prefetch = 0 : i64, scratch_operands = 0 : i64, tpu.core_type = #tpu.core_type<tc>, window_params = [{transform_indices = @transform_0, window_bounds = array<i64: 1, 16, 128>}, {transform_indices = @transform_1, window_bounds = array<i64: 1, 16, 128>}, {pipeline_mode = #tpu.pipeline_mode<synchronous>, transform_indices = @transform_2, window_bounds = array<i64: 128, 1536>}, {pipeline_mode = #tpu.pipeline_mode<synchronous>, transform_indices = @transform_3, window_bounds = array<i64: 512, 128>}, {pipeline_mode = #tpu.pipeline_mode<synchronous>, transform_indices = @transform_4, window_bounds = array<i64: 1, 2048>}, {transform_indices = @transform_5, window_bounds = array<i64: 1, 16, 128>}]} {
    %c0 = arith.constant 0 : index
    %c0_0 = arith.constant 0 : index
    %c0_1 = arith.constant 0 : index
    %0 = vector.load %arg1[%c0, %c0_0, %c0_1] : memref<1x16x128xf32, #tpu.memory_space<vmem>>, vector<1x16x128xf32>
    %1 = vector.shape_cast %0 : vector<1x16x128xf32> to vector<16x128xf32>
    %c0_2 = arith.constant 0 : index
    %c0_3 = arith.constant 0 : index
    %c0_4 = arith.constant 0 : index
    %2 = vector.load %arg2[%c0_2, %c0_3, %c0_4] : memref<1x16x128xf32, #tpu.memory_space<vmem>>, vector<1x16x128xf32>
    %3 = vector.shape_cast %2 : vector<1x16x128xf32> to vector<16x128xf32>
    %c0_5 = arith.constant 0 : index
    %c0_6 = arith.constant 0 : index
    %4 = vector.load %arg3[%c0_5, %c0_6] : memref<128x1536xbf16, #tpu.memory_space<vmem>>, vector<128x384xbf16>
    %c0_7 = arith.constant 0 : index
    %c384 = arith.constant 384 : index
    %5 = vector.load %arg3[%c0_7, %c384] : memref<128x1536xbf16, #tpu.memory_space<vmem>>, vector<128x128xbf16>
    %c0_8 = arith.constant 0 : index
    %c512 = arith.constant 512 : index
    %6 = vector.load %arg3[%c0_8, %c512] : memref<128x1536xbf16, #tpu.memory_space<vmem>>, vector<128x128xbf16>
    %c0_9 = arith.constant 0 : index
    %c640 = arith.constant 640 : index
    %7 = vector.load %arg3[%c0_9, %c640] : memref<128x1536xbf16, #tpu.memory_space<vmem>>, vector<128x256xbf16>
    %c0_10 = arith.constant 0 : index
    %c896 = arith.constant 896 : index
    %8 = vector.load %arg3[%c0_10, %c896] : memref<128x1536xbf16, #tpu.memory_space<vmem>>, vector<128x128xbf16>
    %c0_11 = arith.constant 0 : index
    %c1024 = arith.constant 1024 : index
    %9 = vector.load %arg3[%c0_11, %c1024] : memref<128x1536xbf16, #tpu.memory_space<vmem>>, vector<128x512xbf16>
    %c0_12 = arith.constant 0 : index
    %c0_13 = arith.constant 0 : index
    %10 = vector.load %arg4[%c0_12, %c0_13] : memref<512x128xbf16, #tpu.memory_space<vmem>>, vector<512x128xbf16>
    %c0_14 = arith.constant 0 : index
    %c0_15 = arith.constant 0 : index
    %11 = vector.load %arg5[%c0_14, %c0_15] : memref<1x2048xf32, #tpu.memory_space<vmem>>, vector<1x128xf32>
    %c0_16 = arith.constant 0 : index
    %c128 = arith.constant 128 : index
    %12 = vector.load %arg5[%c0_16, %c128] : memref<1x2048xf32, #tpu.memory_space<vmem>>, vector<1x128xf32>
    %c0_17 = arith.constant 0 : index
    %c256 = arith.constant 256 : index
    %13 = vector.load %arg5[%c0_17, %c256] : memref<1x2048xf32, #tpu.memory_space<vmem>>, vector<1x256xf32>
    %c0_18 = arith.constant 0 : index
    %c512_19 = arith.constant 512 : index
    %14 = vector.load %arg5[%c0_18, %c512_19] : memref<1x2048xf32, #tpu.memory_space<vmem>>, vector<1x128xf32>
    %c0_20 = arith.constant 0 : index
    %c640_21 = arith.constant 640 : index
    %15 = vector.load %arg5[%c0_20, %c640_21] : memref<1x2048xf32, #tpu.memory_space<vmem>>, vector<1x512xf32>
    %c0_22 = arith.constant 0 : index
    %c1152 = arith.constant 1152 : index
    %16 = vector.load %arg5[%c0_22, %c1152] : memref<1x2048xf32, #tpu.memory_space<vmem>>, vector<1x128xf32>
    %c0_23 = arith.constant 0 : index
    %c1280 = arith.constant 1280 : index
    %17 = vector.load %arg5[%c0_23, %c1280] : memref<1x2048xf32, #tpu.memory_space<vmem>>, vector<1x128xf32>
    %c0_24 = arith.constant 0 : index
    %c1408 = arith.constant 1408 : index
    %18 = vector.load %arg5[%c0_24, %c1408] : memref<1x2048xf32, #tpu.memory_space<vmem>>, vector<1x128xf32>
    %c0_25 = arith.constant 0 : index
    %c1536 = arith.constant 1536 : index
    %19 = vector.load %arg5[%c0_25, %c1536] : memref<1x2048xf32, #tpu.memory_space<vmem>>, vector<1x128xf32>
    %c0_26 = arith.constant 0 : index
    %c1664 = arith.constant 1664 : index
    %20 = vector.load %arg5[%c0_26, %c1664] : memref<1x2048xf32, #tpu.memory_space<vmem>>, vector<1x128xf32>
    %c0_27 = arith.constant 0 : index
    %c1792 = arith.constant 1792 : index
    %21 = vector.load %arg5[%c0_27, %c1792] : memref<1x2048xf32, #tpu.memory_space<vmem>>, vector<1x128xf32>
    %c0_28 = arith.constant 0 : index
    %c1920 = arith.constant 1920 : index
    %22 = vector.load %arg5[%c0_28, %c1920] : memref<1x2048xf32, #tpu.memory_space<vmem>>, vector<1x128xf32>
    %23 = arith.truncf %1 : vector<16x128xf32> to vector<16x128xbf16>
    %cst = arith.constant dense<0.000000e+00> : vector<16x384xf32>
    %24 = tpu.matmul %23, %4, %cst {dimension_numbers = #tpu.dot_dimension_numbers<[1], [0], [0], [1], [0, 0, 1, 1], [], []>} : vector<16x128xbf16>, vector<128x384xbf16>, vector<16x384xf32> -> vector<16x384xf32>
    %25 = vector.extract_strided_slice %24 {offsets = [0, 0], sizes = [16, 128], strides = [1, 1]} : vector<16x384xf32> to vector<16x128xf32>
    %26 = vector.extract_strided_slice %24 {offsets = [0, 128], sizes = [16, 128], strides = [1, 1]} : vector<16x384xf32> to vector<16x128xf32>
    %27 = vector.extract_strided_slice %24 {offsets = [0, 256], sizes = [16, 128], strides = [1, 1]} : vector<16x384xf32> to vector<16x128xf32>
    %28 = vector.extract_strided_slice %25 {offsets = [0, 0], sizes = [16, 32], strides = [1, 1]} : vector<16x128xf32> to vector<16x32xf32>
    %29 = vector.extract_strided_slice %25 {offsets = [0, 32], sizes = [16, 32], strides = [1, 1]} : vector<16x128xf32> to vector<16x32xf32>
    %30 = vector.extract_strided_slice %25 {offsets = [0, 64], sizes = [16, 32], strides = [1, 1]} : vector<16x128xf32> to vector<16x32xf32>
    %31 = vector.extract_strided_slice %25 {offsets = [0, 96], sizes = [16, 32], strides = [1, 1]} : vector<16x128xf32> to vector<16x32xf32>
    %32 = vector.shape_cast %28 : vector<16x32xf32> to vector<1x16x32xf32>
    %33 = vector.shape_cast %29 : vector<16x32xf32> to vector<1x16x32xf32>
    %34 = vector.shape_cast %30 : vector<16x32xf32> to vector<1x16x32xf32>
    %35 = vector.shape_cast %31 : vector<16x32xf32> to vector<1x16x32xf32>
    %36 = tpu.concatenate %32, %33, %34, %35 in 0 : vector<1x16x32xf32>, vector<1x16x32xf32>, vector<1x16x32xf32>, vector<1x16x32xf32> -> vector<4x16x32xf32>
    %37 = vector.extract_strided_slice %26 {offsets = [0, 0], sizes = [16, 32], strides = [1, 1]} : vector<16x128xf32> to vector<16x32xf32>
    %38 = vector.extract_strided_slice %26 {offsets = [0, 32], sizes = [16, 32], strides = [1, 1]} : vector<16x128xf32> to vector<16x32xf32>
    %39 = vector.extract_strided_slice %26 {offsets = [0, 64], sizes = [16, 32], strides = [1, 1]} : vector<16x128xf32> to vector<16x32xf32>
    %40 = vector.extract_strided_slice %26 {offsets = [0, 96], sizes = [16, 32], strides = [1, 1]} : vector<16x128xf32> to vector<16x32xf32>
    %41 = vector.shape_cast %37 : vector<16x32xf32> to vector<1x16x32xf32>
    %42 = vector.shape_cast %38 : vector<16x32xf32> to vector<1x16x32xf32>
    %43 = vector.shape_cast %39 : vector<16x32xf32> to vector<1x16x32xf32>
    %44 = vector.shape_cast %40 : vector<16x32xf32> to vector<1x16x32xf32>
    %45 = tpu.concatenate %41, %42, %43, %44 in 0 : vector<1x16x32xf32>, vector<1x16x32xf32>, vector<1x16x32xf32>, vector<1x16x32xf32> -> vector<4x16x32xf32>
    %46 = vector.extract_strided_slice %27 {offsets = [0, 0], sizes = [16, 32], strides = [1, 1]} : vector<16x128xf32> to vector<16x32xf32>
    %47 = vector.extract_strided_slice %27 {offsets = [0, 32], sizes = [16, 32], strides = [1, 1]} : vector<16x128xf32> to vector<16x32xf32>
    %48 = vector.extract_strided_slice %27 {offsets = [0, 64], sizes = [16, 32], strides = [1, 1]} : vector<16x128xf32> to vector<16x32xf32>
    %49 = vector.extract_strided_slice %27 {offsets = [0, 96], sizes = [16, 32], strides = [1, 1]} : vector<16x128xf32> to vector<16x32xf32>
    %50 = vector.shape_cast %46 : vector<16x32xf32> to vector<1x16x32xf32>
    %51 = vector.shape_cast %47 : vector<16x32xf32> to vector<1x16x32xf32>
    %52 = vector.shape_cast %48 : vector<16x32xf32> to vector<1x16x32xf32>
    %53 = vector.shape_cast %49 : vector<16x32xf32> to vector<1x16x32xf32>
    %54 = tpu.concatenate %50, %51, %52, %53 in 0 : vector<1x16x32xf32>, vector<1x16x32xf32>, vector<1x16x32xf32>, vector<1x16x32xf32> -> vector<4x16x32xf32>
    %55 = arith.truncf %36 : vector<4x16x32xf32> to vector<4x16x32xbf16>
    %56 = arith.truncf %45 : vector<4x16x32xf32> to vector<4x16x32xbf16>
    "tpu.trace_start"() <{level = 10 : i32, message = "hqd,hkd->hqk"}> : () -> ()
    %cst_29 = arith.constant dense<0.000000e+00> : vector<4x16x16xf32>
    %57 = tpu.matmul %55, %56, %cst_29 {dimension_numbers = #tpu.dot_dimension_numbers<[2], [2], [1], [1], [0, 0, 0, 1, 1, 1], [0], [0]>} : vector<4x16x32xbf16>, vector<4x16x32xbf16>, vector<4x16x16xf32> -> vector<4x16x16xf32>
    "tpu.trace_stop"() : () -> ()
    %cst_30 = arith.constant 0.176776692 : f32
    %58 = vector.broadcast %cst_30 : f32 to vector<4x16x16xf32>
    %59 = arith.mulf %57, %58 : vector<4x16x16xf32>
    %60 = tpu.iota {dimensions = array<i32: 0>} : vector<16x16xi32>
    %61 = tpu.iota {dimensions = array<i32: 1>} : vector<16x16xi32>
    %62 = arith.cmpi sge, %60, %61 : vector<16x16xi32>
    %63 = vector.shape_cast %62 : vector<16x16xi1> to vector<1x16x16xi1>
    %cst_31 = arith.constant 0xFF800000 : f32
    %64 = vector.shape_cast %63 : vector<1x16x16xi1> to vector<1x16x16xi1>
    %65 = vector.broadcast %64 : vector<1x16x16xi1> to vector<4x16x16xi1>
    %66 = vector.broadcast %cst_31 : f32 to vector<4x16x16xf32>
    %67 = arith.select %65, %59, %66 : vector<4x16x16xi1>, vector<4x16x16xf32>
    %cst_32 = arith.constant dense<0xFF800000> : vector<4x16xf32>
    %68 = vector.multi_reduction <maximumf>, %67, %cst_32 [2] : vector<4x16x16xf32> to vector<4x16xf32>
    %69 = vector.shape_cast %68 : vector<4x16xf32> to vector<4x16x1xf32>
    %70 = vector.broadcast %69 : vector<4x16x1xf32> to vector<4x16x16xf32>
    %71 = arith.subf %67, %70 : vector<4x16x16xf32>
    %72 = math.exp %71 : vector<4x16x16xf32>
    %cst_33 = arith.constant dense<0.000000e+00> : vector<4x16xf32>
    %73 = vector.multi_reduction <add>, %72, %cst_33 [2] : vector<4x16x16xf32> to vector<4x16xf32>
    %74 = vector.shape_cast %73 : vector<4x16xf32> to vector<4x16x1xf32>
    %75 = tpu.reciprocal %74 {approx = true} : vector<4x16x1xf32> -> vector<4x16x1xf32>
    %76 = vector.broadcast %75 : vector<4x16x1xf32> to vector<4x16x16xf32>
    %77 = arith.mulf %72, %76 : vector<4x16x16xf32>
    %78 = arith.truncf %77 : vector<4x16x16xf32> to vector<4x16x16xbf16>
    %79 = arith.truncf %54 : vector<4x16x32xf32> to vector<4x16x32xbf16>
    "tpu.trace_start"() <{level = 10 : i32, message = "hqk,hkd->hqd"}> : () -> ()
    %cst_34 = arith.constant dense<0.000000e+00> : vector<4x16x32xf32>
    %80 = tpu.matmul %78, %79, %cst_34 {dimension_numbers = #tpu.dot_dimension_numbers<[2], [1], [1], [2], [0, 0, 0, 1, 1, 2], [0], [0]>} : vector<4x16x16xbf16>, vector<4x16x32xbf16>, vector<4x16x32xf32> -> vector<4x16x32xf32>
    "tpu.trace_stop"() : () -> ()
    %81 = vector.extract_strided_slice %80 {offsets = [0, 0, 0], sizes = [1, 16, 32], strides = [1, 1, 1]} : vector<4x16x32xf32> to vector<1x16x32xf32>
    %82 = vector.shape_cast %81 : vector<1x16x32xf32> to vector<16x32xf32>
    %83 = vector.extract_strided_slice %80 {offsets = [1, 0, 0], sizes = [1, 16, 32], strides = [1, 1, 1]} : vector<4x16x32xf32> to vector<1x16x32xf32>
    %84 = vector.shape_cast %83 : vector<1x16x32xf32> to vector<16x32xf32>
    %85 = vector.extract_strided_slice %80 {offsets = [2, 0, 0], sizes = [1, 16, 32], strides = [1, 1, 1]} : vector<4x16x32xf32> to vector<1x16x32xf32>
    %86 = vector.shape_cast %85 : vector<1x16x32xf32> to vector<16x32xf32>
    %87 = vector.extract_strided_slice %80 {offsets = [3, 0, 0], sizes = [1, 16, 32], strides = [1, 1, 1]} : vector<4x16x32xf32> to vector<1x16x32xf32>
    %88 = vector.shape_cast %87 : vector<1x16x32xf32> to vector<16x32xf32>
    %89 = tpu.concatenate %82, %84, %86, %88 in 1 : vector<16x32xf32>, vector<16x32xf32>, vector<16x32xf32>, vector<16x32xf32> -> vector<16x128xf32>
    %90 = arith.truncf %89 : vector<16x128xf32> to vector<16x128xbf16>
    %cst_35 = arith.constant dense<0.000000e+00> : vector<16x128xf32>
    %91 = tpu.matmul %90, %5, %cst_35 {dimension_numbers = #tpu.dot_dimension_numbers<[1], [0], [0], [1], [0, 0, 1, 1], [], []>} : vector<16x128xbf16>, vector<128x128xbf16>, vector<16x128xf32> -> vector<16x128xf32>
    %92 = vector.broadcast %11 : vector<1x128xf32> to vector<16x128xf32>
    %93 = arith.addf %91, %92 : vector<16x128xf32>
    %94 = arith.addf %1, %93 : vector<16x128xf32>
    %cst_36 = arith.constant dense<0.000000e+00> : vector<16xf32>
    %95 = vector.multi_reduction <add>, %94, %cst_36 [1] : vector<16x128xf32> to vector<16xf32>
    %96 = vector.shape_cast %95 : vector<16xf32> to vector<16x1xf32>
    %cst_37 = arith.constant 1.280000e+02 : f32
    %97 = vector.broadcast %cst_37 : f32 to vector<16x1xf32>
    %98 = arith.divf %96, %97 : vector<16x1xf32>
    %99 = vector.broadcast %98 : vector<16x1xf32> to vector<16x128xf32>
    %100 = arith.subf %94, %99 : vector<16x128xf32>
    %101 = arith.mulf %100, %100 : vector<16x128xf32>
    %cst_38 = arith.constant dense<0.000000e+00> : vector<16xf32>
    %102 = vector.multi_reduction <add>, %101, %cst_38 [1] : vector<16x128xf32> to vector<16xf32>
    %103 = vector.shape_cast %102 : vector<16xf32> to vector<16x1xf32>
    %cst_39 = arith.constant 1.280000e+02 : f32
    %104 = vector.broadcast %cst_39 : f32 to vector<16x1xf32>
    %105 = arith.divf %103, %104 : vector<16x1xf32>
    %106 = vector.broadcast %98 : vector<16x1xf32> to vector<16x128xf32>
    %107 = arith.subf %94, %106 : vector<16x128xf32>
    %cst_40 = arith.constant 9.99999974E-6 : f32
    %108 = vector.broadcast %cst_40 : f32 to vector<16x1xf32>
    %109 = arith.addf %105, %108 : vector<16x1xf32>
    %110 = math.rsqrt %109 : vector<16x1xf32>
    %111 = vector.broadcast %110 : vector<16x1xf32> to vector<16x128xf32>
    %112 = arith.mulf %107, %111 : vector<16x128xf32>
    %113 = vector.broadcast %17 : vector<1x128xf32> to vector<16x128xf32>
    %114 = arith.mulf %112, %113 : vector<16x128xf32>
    %115 = vector.broadcast %18 : vector<1x128xf32> to vector<16x128xf32>
    %116 = arith.addf %114, %115 : vector<16x128xf32>
    %117 = arith.truncf %116 : vector<16x128xf32> to vector<16x128xbf16>
    %cst_41 = arith.constant dense<0.000000e+00> : vector<16x128xf32>
    %118 = tpu.matmul %117, %6, %cst_41 {dimension_numbers = #tpu.dot_dimension_numbers<[1], [0], [0], [1], [0, 0, 1, 1], [], []>} : vector<16x128xbf16>, vector<128x128xbf16>, vector<16x128xf32> -> vector<16x128xf32>
    %119 = vector.broadcast %12 : vector<1x128xf32> to vector<16x128xf32>
    %120 = arith.addf %118, %119 : vector<16x128xf32>
    %121 = arith.truncf %3 : vector<16x128xf32> to vector<16x128xbf16>
    %cst_42 = arith.constant dense<0.000000e+00> : vector<16x256xf32>
    %122 = tpu.matmul %121, %7, %cst_42 {dimension_numbers = #tpu.dot_dimension_numbers<[1], [0], [0], [1], [0, 0, 1, 1], [], []>} : vector<16x128xbf16>, vector<128x256xbf16>, vector<16x256xf32> -> vector<16x256xf32>
    %123 = vector.broadcast %13 : vector<1x256xf32> to vector<16x256xf32>
    %124 = arith.addf %122, %123 : vector<16x256xf32>
    %125 = vector.extract_strided_slice %124 {offsets = [0, 0], sizes = [16, 128], strides = [1, 1]} : vector<16x256xf32> to vector<16x128xf32>
    %126 = vector.extract_strided_slice %124 {offsets = [0, 128], sizes = [16, 128], strides = [1, 1]} : vector<16x256xf32> to vector<16x128xf32>
    %127 = vector.extract_strided_slice %120 {offsets = [0, 0], sizes = [16, 32], strides = [1, 1]} : vector<16x128xf32> to vector<16x32xf32>
    %128 = vector.extract_strided_slice %120 {offsets = [0, 32], sizes = [16, 32], strides = [1, 1]} : vector<16x128xf32> to vector<16x32xf32>
    %129 = vector.extract_strided_slice %120 {offsets = [0, 64], sizes = [16, 32], strides = [1, 1]} : vector<16x128xf32> to vector<16x32xf32>
    %130 = vector.extract_strided_slice %120 {offsets = [0, 96], sizes = [16, 32], strides = [1, 1]} : vector<16x128xf32> to vector<16x32xf32>
    %131 = vector.shape_cast %127 : vector<16x32xf32> to vector<1x16x32xf32>
    %132 = vector.shape_cast %128 : vector<16x32xf32> to vector<1x16x32xf32>
    %133 = vector.shape_cast %129 : vector<16x32xf32> to vector<1x16x32xf32>
    %134 = vector.shape_cast %130 : vector<16x32xf32> to vector<1x16x32xf32>
    %135 = tpu.concatenate %131, %132, %133, %134 in 0 : vector<1x16x32xf32>, vector<1x16x32xf32>, vector<1x16x32xf32>, vector<1x16x32xf32> -> vector<4x16x32xf32>
    %136 = vector.extract_strided_slice %125 {offsets = [0, 0], sizes = [16, 32], strides = [1, 1]} : vector<16x128xf32> to vector<16x32xf32>
    %137 = vector.extract_strided_slice %125 {offsets = [0, 32], sizes = [16, 32], strides = [1, 1]} : vector<16x128xf32> to vector<16x32xf32>
    %138 = vector.extract_strided_slice %125 {offsets = [0, 64], sizes = [16, 32], strides = [1, 1]} : vector<16x128xf32> to vector<16x32xf32>
    %139 = vector.extract_strided_slice %125 {offsets = [0, 96], sizes = [16, 32], strides = [1, 1]} : vector<16x128xf32> to vector<16x32xf32>
    %140 = vector.shape_cast %136 : vector<16x32xf32> to vector<1x16x32xf32>
    %141 = vector.shape_cast %137 : vector<16x32xf32> to vector<1x16x32xf32>
    %142 = vector.shape_cast %138 : vector<16x32xf32> to vector<1x16x32xf32>
    %143 = vector.shape_cast %139 : vector<16x32xf32> to vector<1x16x32xf32>
    %144 = tpu.concatenate %140, %141, %142, %143 in 0 : vector<1x16x32xf32>, vector<1x16x32xf32>, vector<1x16x32xf32>, vector<1x16x32xf32> -> vector<4x16x32xf32>
    %145 = vector.extract_strided_slice %126 {offsets = [0, 0], sizes = [16, 32], strides = [1, 1]} : vector<16x128xf32> to vector<16x32xf32>
    %146 = vector.extract_strided_slice %126 {offsets = [0, 32], sizes = [16, 32], strides = [1, 1]} : vector<16x128xf32> to vector<16x32xf32>
    %147 = vector.extract_strided_slice %126 {offsets = [0, 64], sizes = [16, 32], strides = [1, 1]} : vector<16x128xf32> to vector<16x32xf32>
    %148 = vector.extract_strided_slice %126 {offsets = [0, 96], sizes = [16, 32], strides = [1, 1]} : vector<16x128xf32> to vector<16x32xf32>
    %149 = vector.shape_cast %145 : vector<16x32xf32> to vector<1x16x32xf32>
    %150 = vector.shape_cast %146 : vector<16x32xf32> to vector<1x16x32xf32>
    %151 = vector.shape_cast %147 : vector<16x32xf32> to vector<1x16x32xf32>
    %152 = vector.shape_cast %148 : vector<16x32xf32> to vector<1x16x32xf32>
    %153 = tpu.concatenate %149, %150, %151, %152 in 0 : vector<1x16x32xf32>, vector<1x16x32xf32>, vector<1x16x32xf32>, vector<1x16x32xf32> -> vector<4x16x32xf32>
    %154 = arith.truncf %135 : vector<4x16x32xf32> to vector<4x16x32xbf16>
    %155 = arith.truncf %144 : vector<4x16x32xf32> to vector<4x16x32xbf16>
    "tpu.trace_start"() <{level = 10 : i32, message = "hqd,hkd->hqk"}> : () -> ()
    %cst_43 = arith.constant dense<0.000000e+00> : vector<4x16x16xf32>
    %156 = tpu.matmul %154, %155, %cst_43 {dimension_numbers = #tpu.dot_dimension_numbers<[2], [2], [1], [1], [0, 0, 0, 1, 1, 1], [0], [0]>} : vector<4x16x32xbf16>, vector<4x16x32xbf16>, vector<4x16x16xf32> -> vector<4x16x16xf32>
    "tpu.trace_stop"() : () -> ()
    %cst_44 = arith.constant 0.176776692 : f32
    %157 = vector.broadcast %cst_44 : f32 to vector<4x16x16xf32>
    %158 = arith.mulf %156, %157 : vector<4x16x16xf32>
    %cst_45 = arith.constant dense<0xFF800000> : vector<4x16xf32>
    %159 = vector.multi_reduction <maximumf>, %158, %cst_45 [2] : vector<4x16x16xf32> to vector<4x16xf32>
    %160 = vector.shape_cast %159 : vector<4x16xf32> to vector<4x16x1xf32>
    %161 = vector.broadcast %160 : vector<4x16x1xf32> to vector<4x16x16xf32>
    %162 = arith.subf %158, %161 : vector<4x16x16xf32>
    %163 = math.exp %162 : vector<4x16x16xf32>
    %cst_46 = arith.constant dense<0.000000e+00> : vector<4x16xf32>
    %164 = vector.multi_reduction <add>, %163, %cst_46 [2] : vector<4x16x16xf32> to vector<4x16xf32>
    %165 = vector.shape_cast %164 : vector<4x16xf32> to vector<4x16x1xf32>
    %166 = tpu.reciprocal %165 {approx = true} : vector<4x16x1xf32> -> vector<4x16x1xf32>
    %167 = vector.broadcast %166 : vector<4x16x1xf32> to vector<4x16x16xf32>
    %168 = arith.mulf %163, %167 : vector<4x16x16xf32>
    %169 = arith.truncf %168 : vector<4x16x16xf32> to vector<4x16x16xbf16>
    %170 = arith.truncf %153 : vector<4x16x32xf32> to vector<4x16x32xbf16>
    "tpu.trace_start"() <{level = 10 : i32, message = "hqk,hkd->hqd"}> : () -> ()
    %cst_47 = arith.constant dense<0.000000e+00> : vector<4x16x32xf32>
    %171 = tpu.matmul %169, %170, %cst_47 {dimension_numbers = #tpu.dot_dimension_numbers<[2], [1], [1], [2], [0, 0, 0, 1, 1, 2], [0], [0]>} : vector<4x16x16xbf16>, vector<4x16x32xbf16>, vector<4x16x32xf32> -> vector<4x16x32xf32>
    "tpu.trace_stop"() : () -> ()
    %172 = vector.extract_strided_slice %171 {offsets = [0, 0, 0], sizes = [1, 16, 32], strides = [1, 1, 1]} : vector<4x16x32xf32> to vector<1x16x32xf32>
    %173 = vector.shape_cast %172 : vector<1x16x32xf32> to vector<16x32xf32>
    %174 = vector.extract_strided_slice %171 {offsets = [1, 0, 0], sizes = [1, 16, 32], strides = [1, 1, 1]} : vector<4x16x32xf32> to vector<1x16x32xf32>
    %175 = vector.shape_cast %174 : vector<1x16x32xf32> to vector<16x32xf32>
    %176 = vector.extract_strided_slice %171 {offsets = [2, 0, 0], sizes = [1, 16, 32], strides = [1, 1, 1]} : vector<4x16x32xf32> to vector<1x16x32xf32>
    %177 = vector.shape_cast %176 : vector<1x16x32xf32> to vector<16x32xf32>
    %178 = vector.extract_strided_slice %171 {offsets = [3, 0, 0], sizes = [1, 16, 32], strides = [1, 1, 1]} : vector<4x16x32xf32> to vector<1x16x32xf32>
    %179 = vector.shape_cast %178 : vector<1x16x32xf32> to vector<16x32xf32>
    %180 = tpu.concatenate %173, %175, %177, %179 in 1 : vector<16x32xf32>, vector<16x32xf32>, vector<16x32xf32>, vector<16x32xf32> -> vector<16x128xf32>
    %181 = arith.truncf %180 : vector<16x128xf32> to vector<16x128xbf16>
    %cst_48 = arith.constant dense<0.000000e+00> : vector<16x128xf32>
    %182 = tpu.matmul %181, %8, %cst_48 {dimension_numbers = #tpu.dot_dimension_numbers<[1], [0], [0], [1], [0, 0, 1, 1], [], []>} : vector<16x128xbf16>, vector<128x128xbf16>, vector<16x128xf32> -> vector<16x128xf32>
    %183 = vector.broadcast %14 : vector<1x128xf32> to vector<16x128xf32>
    %184 = arith.addf %182, %183 : vector<16x128xf32>
    %185 = arith.addf %116, %184 : vector<16x128xf32>
    %cst_49 = arith.constant dense<0.000000e+00> : vector<16xf32>
    %186 = vector.multi_reduction <add>, %185, %cst_49 [1] : vector<16x128xf32> to vector<16xf32>
    %187 = vector.shape_cast %186 : vector<16xf32> to vector<16x1xf32>
    %cst_50 = arith.constant 1.280000e+02 : f32
    %188 = vector.broadcast %cst_50 : f32 to vector<16x1xf32>
    %189 = arith.divf %187, %188 : vector<16x1xf32>
    %190 = vector.broadcast %189 : vector<16x1xf32> to vector<16x128xf32>
    %191 = arith.subf %185, %190 : vector<16x128xf32>
    %192 = arith.mulf %191, %191 : vector<16x128xf32>
    %cst_51 = arith.constant dense<0.000000e+00> : vector<16xf32>
    %193 = vector.multi_reduction <add>, %192, %cst_51 [1] : vector<16x128xf32> to vector<16xf32>
    %194 = vector.shape_cast %193 : vector<16xf32> to vector<16x1xf32>
    %cst_52 = arith.constant 1.280000e+02 : f32
    %195 = vector.broadcast %cst_52 : f32 to vector<16x1xf32>
    %196 = arith.divf %194, %195 : vector<16x1xf32>
    %197 = vector.broadcast %189 : vector<16x1xf32> to vector<16x128xf32>
    %198 = arith.subf %185, %197 : vector<16x128xf32>
    %cst_53 = arith.constant 9.99999974E-6 : f32
    %199 = vector.broadcast %cst_53 : f32 to vector<16x1xf32>
    %200 = arith.addf %196, %199 : vector<16x1xf32>
    %201 = math.rsqrt %200 : vector<16x1xf32>
    %202 = vector.broadcast %201 : vector<16x1xf32> to vector<16x128xf32>
    %203 = arith.mulf %198, %202 : vector<16x128xf32>
    %204 = vector.broadcast %19 : vector<1x128xf32> to vector<16x128xf32>
    %205 = arith.mulf %203, %204 : vector<16x128xf32>
    %206 = vector.broadcast %20 : vector<1x128xf32> to vector<16x128xf32>
    %207 = arith.addf %205, %206 : vector<16x128xf32>
    %208 = arith.truncf %207 : vector<16x128xf32> to vector<16x128xbf16>
    %cst_54 = arith.constant dense<0.000000e+00> : vector<16x512xf32>
    %209 = tpu.matmul %208, %9, %cst_54 {dimension_numbers = #tpu.dot_dimension_numbers<[1], [0], [0], [1], [0, 0, 1, 1], [], []>} : vector<16x128xbf16>, vector<128x512xbf16>, vector<16x512xf32> -> vector<16x512xf32>
    %210 = vector.broadcast %15 : vector<1x512xf32> to vector<16x512xf32>
    %211 = arith.addf %209, %210 : vector<16x512xf32>
    %cst_55 = arith.constant 0.000000e+00 : f32
    %212 = vector.broadcast %cst_55 : f32 to vector<16x512xf32>
    %213 = arith.maximumf %211, %212 : vector<16x512xf32>
    %214 = arith.truncf %213 : vector<16x512xf32> to vector<16x512xbf16>
    %cst_56 = arith.constant dense<0.000000e+00> : vector<16x128xf32>
    %215 = tpu.matmul %214, %10, %cst_56 {dimension_numbers = #tpu.dot_dimension_numbers<[1], [0], [0], [1], [0, 0, 1, 1], [], []>} : vector<16x512xbf16>, vector<512x128xbf16>, vector<16x128xf32> -> vector<16x128xf32>
    %216 = vector.broadcast %16 : vector<1x128xf32> to vector<16x128xf32>
    %217 = arith.addf %215, %216 : vector<16x128xf32>
    %218 = arith.addf %207, %217 : vector<16x128xf32>
    %cst_57 = arith.constant dense<0.000000e+00> : vector<16xf32>
    %219 = vector.multi_reduction <add>, %218, %cst_57 [1] : vector<16x128xf32> to vector<16xf32>
    %220 = vector.shape_cast %219 : vector<16xf32> to vector<16x1xf32>
    %cst_58 = arith.constant 1.280000e+02 : f32
    %221 = vector.broadcast %cst_58 : f32 to vector<16x1xf32>
    %222 = arith.divf %220, %221 : vector<16x1xf32>
    %223 = vector.broadcast %222 : vector<16x1xf32> to vector<16x128xf32>
    %224 = arith.subf %218, %223 : vector<16x128xf32>
    %225 = arith.mulf %224, %224 : vector<16x128xf32>
    %cst_59 = arith.constant dense<0.000000e+00> : vector<16xf32>
    %226 = vector.multi_reduction <add>, %225, %cst_59 [1] : vector<16x128xf32> to vector<16xf32>
    %227 = vector.shape_cast %226 : vector<16xf32> to vector<16x1xf32>
    %cst_60 = arith.constant 1.280000e+02 : f32
    %228 = vector.broadcast %cst_60 : f32 to vector<16x1xf32>
    %229 = arith.divf %227, %228 : vector<16x1xf32>
    %230 = vector.broadcast %222 : vector<16x1xf32> to vector<16x128xf32>
    %231 = arith.subf %218, %230 : vector<16x128xf32>
    %cst_61 = arith.constant 9.99999974E-6 : f32
    %232 = vector.broadcast %cst_61 : f32 to vector<16x1xf32>
    %233 = arith.addf %229, %232 : vector<16x1xf32>
    %234 = math.rsqrt %233 : vector<16x1xf32>
    %235 = vector.broadcast %234 : vector<16x1xf32> to vector<16x128xf32>
    %236 = arith.mulf %231, %235 : vector<16x128xf32>
    %237 = vector.broadcast %21 : vector<1x128xf32> to vector<16x128xf32>
    %238 = arith.mulf %236, %237 : vector<16x128xf32>
    %239 = vector.broadcast %22 : vector<1x128xf32> to vector<16x128xf32>
    %240 = arith.addf %238, %239 : vector<16x128xf32>
    %c0_62 = arith.constant 0 : index
    %c0_63 = arith.constant 0 : index
    %c0_64 = arith.constant 0 : index
    %241 = vector.load %arg6[%c0_62, %c0_63, %c0_64] : memref<1x16x128xf32, #tpu.memory_space<vmem>>, vector<1x16x128xf32>
    %242 = vector.shape_cast %241 : vector<1x16x128xf32> to vector<16x128xf32>
    %243 = vector.shape_cast %240 : vector<16x128xf32> to vector<1x16x128xf32>
    tpu.vector_store %arg6[%c0_62, %c0_63, %c0_64], %243 {strides = array<i32>} : memref<1x16x128xf32, #tpu.memory_space<vmem>>, vector<1x16x128xf32>,
    return
  }
  func.func @transform_0(%arg0: i32) -> (i32, i32, i32) {
    %c0_i32 = arith.constant 0 : i32
    %c0_i32_0 = arith.constant 0 : i32
    %c0_i32_1 = arith.constant 0 : i32
    return %arg0, %c0_i32, %c0_i32_0 : i32, i32, i32
  }
  func.func @transform_1(%arg0: i32) -> (i32, i32, i32) {
    %c0_i32 = arith.constant 0 : i32
    %c0_i32_0 = arith.constant 0 : i32
    %c0_i32_1 = arith.constant 0 : i32
    return %arg0, %c0_i32, %c0_i32_0 : i32, i32, i32
  }
  func.func @transform_2(%arg0: i32) -> (i32, i32) {
    %c0_i32 = arith.constant 0 : i32
    %c0_i32_0 = arith.constant 0 : i32
    %c0_i32_1 = arith.constant 0 : i32
    return %c0_i32, %c0_i32_0 : i32, i32
  }
  func.func @transform_3(%arg0: i32) -> (i32, i32) {
    %c0_i32 = arith.constant 0 : i32
    %c0_i32_0 = arith.constant 0 : i32
    %c0_i32_1 = arith.constant 0 : i32
    return %c0_i32, %c0_i32_0 : i32, i32
  }
  func.func @transform_4(%arg0: i32) -> (i32, i32) {
    %c0_i32 = arith.constant 0 : i32
    %c0_i32_0 = arith.constant 0 : i32
    %c0_i32_1 = arith.constant 0 : i32
    return %c0_i32, %c0_i32_0 : i32, i32
  }
  func.func @transform_5(%arg0: i32) -> (i32, i32, i32) {
    %c0_i32 = arith.constant 0 : i32
    %c0_i32_0 = arith.constant 0 : i32
    %c0_i32_1 = arith.constant 0 : i32
    return %arg0, %c0_i32, %c0_i32_0 : i32, i32, i32
  }
}

</mosaic_0001>

<llo_original>
// kernel: tpu_custom_call.1
$region0: #{tpu_custom_call.1}
  #allocation0 [shape = 'u32[]', space=smem, size = 0x4, offset = 0x4, fixed_abs, tag = 'smem constant byte address 0x4 - core index']
  #allocation1 [shape = 'u32[144,128]{1,0:T(1,128)}', space=vmem, size = 0x12000, scoped, tag = 'internal scratch']
  %s0 = inlined_call_operand.hbm [shape: f32[2,16,128], index: 0, kind: input, shape index: {}]
  %s1 = inlined_call_operand.hbm [shape: f32[2,16,128], index: 1, kind: input, shape index: {}]
  %s2 = inlined_call_operand.hbm [shape: bf16[128,1536], index: 2, kind: input, shape index: {}]
  %s3 = inlined_call_operand.hbm [shape: bf16[512,128], index: 3, kind: input, shape index: {}]
  %s4 = inlined_call_operand.hbm [shape: f32[1,2048], index: 4, kind: input, shape index: {}]
  %s5 = inlined_call_operand.hbm [shape: f32[2,16,128], index: 5, kind: output, shape index: {}]
  %s6 = sld [smem:[#allocation0]]
  $region73: #{tpu_custom_call.1} parent=0
    _
  %s8 = ssub.s32 1, %s6
  %s9 = scalar_select 0, %s8, %s6
  $region1: #{tpu_custom_call.1} parent=0
    #allocation2 [shape = 'u8[16384]{0}', space=vmem, size = 0x4000, scoped, tag = 'input window, operand 0']
    #allocation3 [shape = 's32[2]{0}', space=sflag, size = 0x8, scoped, tag = 'scoped memory for tpu_custom_call.1']
    #allocation4 [shape = 's32[2]{0}', space=sflag, size = 0x8, scoped, tag = 'scoped memory for tpu_custom_call.1']
    #allocation5 [shape = 'u8[16384]{0}', space=vmem, size = 0x4000, scoped, tag = 'input window, operand 1']
    #allocation6 [shape = 's32[2]{0}', space=sflag, size = 0x8, scoped, tag = 'scoped memory for tpu_custom_call.1']
    #allocation7 [shape = 'u8[393216]{0}', space=vmem, size = 0x60000, scoped, tag = 'input window, operand 2, single buffered']
    #allocation8 [shape = 'u8[131072]{0}', space=vmem, size = 0x20000, scoped, tag = 'input window, operand 3, single buffered']
    #allocation9 [shape = 's32[1]{0}', space=sflag, size = 0x4, scoped, tag = 'scoped memory for tpu_custom_call.1']
    #allocation10 [shape = 'u8[8192]{0}', space=vmem, size = 0x2000, scoped, tag = 'input window, operand 4, single buffered']
    #allocation11 [shape = 'u8[16384]{0}', space=vmem, size = 0x4000, scoped, tag = 'output window, operand 0']
    %10 = vsyncpa [#allocation3], 0
    %s11 = scalar_lea.sflag [#allocation3], 1
    %12 = vsyncpa %s11, 0
    %13 = vsyncpa [#allocation6], 0
    %s14 = scalar_lea.sflag [#allocation6], 1
    %15 = vsyncpa %s14, 0
    %16 = vsyncpa [#allocation9], 0
    %17 = vsyncpa [#allocation4], 0
    %s18 = scalar_lea.sflag [#allocation4], 1
    %19 = vsyncpa %s18, 0
    loop: start=0, step=1, limit=4
    $region2: #{tpu_custom_call.1} parent=1 // loop_pre_header
      _
    $region3: #{tpu_custom_call.1} parent=1 // loop_header
      %s21 = sphi 0, %s25
      %p22 = scmp.ge.s32.totalorder %s21, 4
      %s31 = sphi 0, %s33
      %s34 = sphi 0, %s31
      %s35 = sphi 0, %s34
      %s51 = sphi 0, %s35
      %s57 = sphi 0, %s59
      %s60 = sphi 0, %s57
      %s61 = sphi 0, %s60
      %s77 = sphi 0, %s61
      %s81 = sphi 0, %s81
      %s83 = sphi 0, %s81
      %s84 = sphi 0, %s83
      %s98 = sphi 0, %s84
      %s102 = sphi 0, %s102
      %s104 = sphi 0, %s102
      %s105 = sphi 0, %s104
      %s119 = sphi 0, %s105
      %s123 = sphi 0, %s123
      %s125 = sphi 0, %s123
      %s126 = sphi 0, %s125
      %s140 = sphi 0, %s126
      %s146 = sphi 0, %s148
      %s149 = sphi 0, %s146
      %s150 = sphi 0, %s149
      %s166 = sphi 0, %s150
    $region4: #{tpu_custom_call.1} parent=1 // loop_header_branch
      %24 = sbr.rel (%p22) target = $region8
    $region5: #{tpu_custom_call.1} parent=1 // loop_body
      %s26 = ssub.s32 %s21, 1
      %s27 = ssub.s32 %s21, 2
      %s28 = sadd.s32 %s21, 1
      %s29 = ssub.s32 %s21, %s28
      %p30 = scmp.eq.s32.totalorder %s29, 0
      %s32 = sadd.s32 %s31, 1
      %s33 = scalar_select %p30, %s31, %s32
      %p36 = pneg %p30
      %p37 = scmp.eq.s32.totalorder %s21, 1
      %p38 = por %p36, %p37
      %p39 = scmp.ne.s32.totalorder %s31, %s34
      %p40 = scmp.eq.s32.totalorder %s21, 0
      %p41 = por %p39, %p40
      %p42 = scmp.ne.s32.totalorder %s31, %s34
      %p43 = scmp.eq.s32.totalorder %s26, 1
      %p44 = por %p42, %p43
      %p45 = scmp.ne.s32.totalorder %s34, %s35
      %p46 = scmp.eq.s32.totalorder %s26, 0
      %p47 = por %p45, %p46
      %p48 = scmp.ne.s32.totalorder %s34, %s35
      %p49 = scmp.eq.s32.totalorder %s27, 1
      %p50 = por %p48, %p49
      %p52 = scmp.ne.s32.totalorder %s35, %s51
      %p53 = scmp.eq.s32.totalorder %s27, 0
      %p54 = por %p52, %p53
      %s55 = ssub.s32 %s21, %s28
      %p56 = scmp.eq.s32.totalorder %s55, 0
      %s58 = sadd.s32 %s57, 1
      %s59 = scalar_select %p56, %s57, %s58
      %p62 = pneg %p56
      %p63 = scmp.eq.s32.totalorder %s21, 1
      %p64 = por %p62, %p63
      %p65 = scmp.ne.s32.totalorder %s57, %s60
      %p66 = scmp.eq.s32.totalorder %s21, 0
      %p67 = por %p65, %p66
      %p68 = scmp.ne.s32.totalorder %s57, %s60
      %p69 = scmp.eq.s32.totalorder %s26, 1
      %p70 = por %p68, %p69
      %p71 = scmp.ne.s32.totalorder %s60, %s61
      %p72 = scmp.eq.s32.totalorder %s26, 0
      %p73 = por %p71, %p72
      %p74 = scmp.ne.s32.totalorder %s60, %s61
      %p75 = scmp.eq.s32.totalorder %s27, 1
      %p76 = por %p74, %p75
      %p78 = scmp.ne.s32.totalorder %s61, %s77
      %p79 = scmp.eq.s32.totalorder %s27, 0
      %p80 = por %p78, %p79
      %s82 = sadd.s32 %s81, 1
      %p85 = scmp.eq.s32.totalorder %s21, 1
      %p86 = scmp.ne.s32.totalorder %s81, %s83
      %p87 = scmp.eq.s32.totalorder %s21, 0
      %p88 = por %p86, %p87
      %p89 = scmp.ne.s32.totalorder %s81, %s83
      %p90 = scmp.eq.s32.totalorder %s26, 1
      %p91 = por %p89, %p90
      %p92 = scmp.ne.s32.totalorder %s83, %s84
      %p93 = scmp.eq.s32.totalorder %s26, 0
      %p94 = por %p92, %p93
      %p95 = scmp.ne.s32.totalorder %s83, %s84
      %p96 = scmp.eq.s32.totalorder %s27, 1
      %p97 = por %p95, %p96
      %p99 = scmp.ne.s32.totalorder %s84, %s98
      %p100 = scmp.eq.s32.totalorder %s27, 0
      %p101 = por %p99, %p100
      %s103 = sadd.s32 %s102, 1
      %p106 = scmp.eq.s32.totalorder %s21, 1
      %p107 = scmp.ne.s32.totalorder %s102, %s104
      %p108 = scmp.eq.s32.totalorder %s21, 0
      %p109 = por %p107, %p108
      %p110 = scmp.ne.s32.totalorder %s102, %s104
      %p111 = scmp.eq.s32.totalorder %s26, 1
      %p112 = por %p110, %p111
      %p113 = scmp.ne.s32.totalorder %s104, %s105
      %p114 = scmp.eq.s32.totalorder %s26, 0
      %p115 = por %p113, %p114
      %p116 = scmp.ne.s32.totalorder %s104, %s105
      %p117 = scmp.eq.s32.totalorder %s27, 1
      %p118 = por %p116, %p117
      %p120 = scmp.ne.s32.totalorder %s105, %s119
      %p121 = scmp.eq.s32.totalorder %s27, 0
      %p122 = por %p120, %p121
      %s124 = sadd.s32 %s123, 1
      %p127 = scmp.eq.s32.totalorder %s21, 1
      %p128 = scmp.ne.s32.totalorder %s123, %s125
      %p129 = scmp.eq.s32.totalorder %s21, 0
      %p130 = por %p128, %p129
      %p131 = scmp.ne.s32.totalorder %s123, %s125
      %p132 = scmp.eq.s32.totalorder %s26, 1
      %p133 = por %p131, %p132
      %p134 = scmp.ne.s32.totalorder %s125, %s126
      %p135 = scmp.eq.s32.totalorder %s26, 0
      %p136 = por %p134, %p135
      %p137 = scmp.ne.s32.totalorder %s125, %s126
      %p138 = scmp.eq.s32.totalorder %s27, 1
      %p139 = por %p137, %p138
      %p141 = scmp.ne.s32.totalorder %s126, %s140
      %p142 = scmp.eq.s32.totalorder %s27, 0
      %p143 = por %p141, %p142
      %s144 = ssub.s32 %s21, %s28
      %p145 = scmp.eq.s32.totalorder %s144, 0
      %s147 = sadd.s32 %s146, 1
      %s148 = scalar_select %p145, %s146, %s147
      %p151 = pneg %p145
      %p152 = scmp.eq.s32.totalorder %s21, 1
      %p153 = por %p151, %p152
      %p154 = scmp.ne.s32.totalorder %s146, %s149
      %p155 = scmp.eq.s32.totalorder %s21, 0
      %p156 = por %p154, %p155
      %p157 = scmp.ne.s32.totalorder %s146, %s149
      %p158 = scmp.eq.s32.totalorder %s26, 1
      %p159 = por %p157, %p158
      %p160 = scmp.ne.s32.totalorder %s149, %s150
      %p161 = scmp.eq.s32.totalorder %s26, 0
      %p162 = por %p160, %p161
      %p163 = scmp.ne.s32.totalorder %s149, %s150
      %p164 = scmp.eq.s32.totalorder %s27, 1
      %p165 = por %p163, %p164
      %p167 = scmp.ne.s32.totalorder %s150, %s166
      %p168 = scmp.eq.s32.totalorder %s27, 0
      %p169 = por %p167, %p168
      %p170 = scmp.le.s32.totalorder 1, %s21
      %p171 = scmp.lt.s32.totalorder %s21, 3
      %p172 = pnand %p170, %p171
      %p173 = pneg %p172
      // Predicated region
      $region9: #{tpu_custom_call.1} parent=5 // pred_check
        _
      $region10: #{tpu_custom_call.1} parent=5 // pred_check_branch
        %175 = sbr.rel (%p172) target = $region12
      $region11: #{tpu_custom_call.1} parent=5 // pred_region
        %s176 = ssub.s32 %s21, 1
        // Predicated region
        $region13: #{tpu_custom_call.1} parent=11 // pred_check
          %p177 = pneg %p94
        $region14: #{tpu_custom_call.1} parent=11 // pred_check_branch
          %179 = sbr.rel (%p177) target = $region16
        $region15: #{tpu_custom_call.1} parent=11 // pred_region
          %s181 = ssub.s32 12288, 12288
          %182 = vsyncadd [#allocation6], %s181
          %s183 = sshll.u32 [#allocation7], 4
          %s184 = int_to_ptr.vmem [resolvable:$true] %s183
          %189 = dma.hbm_to_vmem [thread:$0]  %s2, 12288, %s184, [#allocation6], 768, 768, 48
        $region16: #{tpu_custom_call.1} parent=11 // pred_fallthru
          _
        // Predicated region
        $region17: #{tpu_custom_call.1} parent=11 // pred_check
          %p190 = pneg %p115
        $region18: #{tpu_custom_call.1} parent=11 // pred_check_branch
          %192 = sbr.rel (%p190) target = $region20
        $region19: #{tpu_custom_call.1} parent=11 // pred_region
          %s194 = ssub.s32 4096, 4096
          %195 = vsyncadd [#allocation9], %s194
          %s196 = sshll.u32 [#allocation8], 4
          %s197 = int_to_ptr.vmem [resolvable:$true] %s196
          %202 = dma.hbm_to_vmem [thread:$0]  %s3, 4096, %s197, [#allocation9], 64, 64, 4
        $region20: #{tpu_custom_call.1} parent=11 // pred_fallthru
          _
        // Predicated region
        $region21: #{tpu_custom_call.1} parent=11 // pred_check
          %p203 = pneg %p136
        $region22: #{tpu_custom_call.1} parent=11 // pred_check_branch
          %205 = sbr.rel (%p203) target = $region24
        $region23: #{tpu_custom_call.1} parent=11 // pred_region
          %s207 = ssub.s32 256, 256
          %208 = vsyncadd [#allocation9], %s207
          %s210 = sshll.u32 [#allocation10], 4
          %s211 = int_to_ptr.vmem [resolvable:$true] %s210
          %213 = dma.hbm_to_vmem [thread:$0]  %s4, 256, %s211, [#allocation9]
        $region24: #{tpu_custom_call.1} parent=11 // pred_fallthru
          _
      $region12: #{tpu_custom_call.1} parent=5 // pred_fallthru
        _
      %p214 = scmp.lt.s32.totalorder %s21, 2
      // Predicated region
      $region25: #{tpu_custom_call.1} parent=5 // pred_check
        %p215 = pneg %p214
      $region26: #{tpu_custom_call.1} parent=5 // pred_check_branch
        %217 = sbr.rel (%p215) target = $region28
      $region27: #{tpu_custom_call.1} parent=5 // pred_region
        // Predicated region
        $region29: #{tpu_custom_call.1} parent=27 // pred_check
          %p218 = pneg %p41
        $region30: #{tpu_custom_call.1} parent=27 // pred_check_branch
          %220 = sbr.rel (%p218) target = $region32
        $region31: #{tpu_custom_call.1} parent=27 // pred_region
          %s221 = sand.u32 %s31, 1
          %s222 = scalar_lea.sflag [#allocation3], %s221
          %s223 = sand.u32 %s31, 1
          %s224 = smul.addr %s223, 16
          %s225 = scalar_lea.vmem [#allocation2], %s224
          %s227 = ssub.s32 256, 256
          %228 = vsyncadd %s222, %s227
          %s229 = smul.addr %s21, 2
          %s230 = smul.addr %s229, 128
          %s231 = scalar_lea.hbm %s0, %s230
          %s232 = sshll.u32 %s225, 4
          %s233 = int_to_ptr.vmem [resolvable:$true] %s232
          %238 = dma.hbm_to_vmem [thread:$0]  %s231, 256, %s233, %s222, 128, 128, 8
        $region32: #{tpu_custom_call.1} parent=27 // pred_fallthru
          _
        // Predicated region
        $region33: #{tpu_custom_call.1} parent=27 // pred_check
          %p239 = pneg %p67
        $region34: #{tpu_custom_call.1} parent=27 // pred_check_branch
          %241 = sbr.rel (%p239) target = $region36
        $region35: #{tpu_custom_call.1} parent=27 // pred_region
          %s242 = sand.u32 %s21, 1
          %s243 = scalar_lea.sflag [#allocation6], %s242
          %s244 = sand.u32 %s57, 1
          %s245 = smul.addr %s244, 16
          %s246 = scalar_lea.vmem [#allocation5], %s245
          %s248 = ssub.s32 256, 256
          %249 = vsyncadd %s243, %s248
          %s250 = smul.addr %s21, 2
          %s251 = smul.addr %s250, 128
          %s252 = scalar_lea.hbm %s1, %s251
          %s253 = sshll.u32 %s246, 4
          %s254 = int_to_ptr.vmem [resolvable:$true] %s253
          %259 = dma.hbm_to_vmem [thread:$0]  %s252, 256, %s254, %s243, 128, 128, 8
        $region36: #{tpu_custom_call.1} parent=27 // pred_fallthru
          _
      $region28: #{tpu_custom_call.1} parent=5 // pred_fallthru
        _
      %p260 = scmp.le.s32.totalorder 1, %s21
      %p261 = scmp.lt.s32.totalorder %s21, 3
      %p262 = pnand %p260, %p261
      %p263 = pneg %p262
      // Predicated region
      $region37: #{tpu_custom_call.1} parent=5 // pred_check
        _
      $region38: #{tpu_custom_call.1} parent=5 // pred_check_branch
        %265 = sbr.rel (%p262) target = $region40
      $region39: #{tpu_custom_call.1} parent=5 // pred_region
        %s266 = ssub.s32 %s21, 1
        %s267 = sand.u32 %s34, 1
        %s268 = scalar_lea.sflag [#allocation3], %s267
        %s269 = sand.u32 %s34, 1
        %s270 = smul.addr %s269, 16
        %s271 = scalar_lea.vmem [#allocation2], %s270
        // Predicated region
        $region41: #{tpu_custom_call.1} parent=39 // pred_check
          %p272 = pneg %p47
        $region42: #{tpu_custom_call.1} parent=39 // pred_check_branch
          %274 = sbr.rel (%p272) target = $region44
        $region43: #{tpu_custom_call.1} parent=39 // pred_region
          %275 = dma.done %s268, 256
        $region44: #{tpu_custom_call.1} parent=39 // pred_fallthru
          _
        %s276 = sand.u32 %s26, 1
        %s277 = scalar_lea.sflag [#allocation6], %s276
        %s278 = sand.u32 %s60, 1
        %s279 = smul.addr %s278, 16
        %s280 = scalar_lea.vmem [#allocation5], %s279
        // Predicated region
        $region45: #{tpu_custom_call.1} parent=39 // pred_check
          %p281 = pneg %p73
        $region46: #{tpu_custom_call.1} parent=39 // pred_check_branch
          %283 = sbr.rel (%p281) target = $region48
        $region47: #{tpu_custom_call.1} parent=39 // pred_region
          %284 = dma.done %s277, 256
        $region48: #{tpu_custom_call.1} parent=39 // pred_fallthru
          _
        // Predicated region
        $region49: #{tpu_custom_call.1} parent=39 // pred_check
          %p285 = pneg %p94
        $region50: #{tpu_custom_call.1} parent=39 // pred_check_branch
          %287 = sbr.rel (%p285) target = $region52
        $region51: #{tpu_custom_call.1} parent=39 // pred_region
          %288 = dma.done [#allocation6], 12288
        $region52: #{tpu_custom_call.1} parent=39 // pred_fallthru
          _
        // Predicated region
        $region53: #{tpu_custom_call.1} parent=39 // pred_check
          %p289 = pneg %p115
        $region54: #{tpu_custom_call.1} parent=39 // pred_check_branch
          %291 = sbr.rel (%p289) target = $region56
        $region55: #{tpu_custom_call.1} parent=39 // pred_region
          %292 = dma.done [#allocation9], 4096
        $region56: #{tpu_custom_call.1} parent=39 // pred_fallthru
          _
        // Predicated region
        $region57: #{tpu_custom_call.1} parent=39 // pred_check
          %p293 = pneg %p136
        $region58: #{tpu_custom_call.1} parent=39 // pred_check_branch
          %295 = sbr.rel (%p293) target = $region60
        $region59: #{tpu_custom_call.1} parent=39 // pred_region
          %296 = dma.done [#allocation9], 256
        $region60: #{tpu_custom_call.1} parent=39 // pred_fallthru
          _
        %s297 = sand.u32 %s34, 1
        %s298 = scalar_lea.sflag [#allocation3], %s297
        %s299 = sand.u32 %s34, 1
        %s300 = smul.addr %s299, 16
        %s301 = scalar_lea.vmem [#allocation2], %s300
        %p302 = pneg %p47
        %p303 = pneg %p44
        %s304 = sand.u32 %s26, 1
        %s305 = scalar_lea.sflag [#allocation6], %s304
        %s306 = sand.u32 %s60, 1
        %s307 = smul.addr %s306, 16
        %s308 = scalar_lea.vmem [#allocation5], %s307
        %p309 = pneg %p73
        %p310 = pneg %p70
        %p311 = pneg %p94
        %p312 = pneg %p91
        %p313 = pneg %p115
        %p314 = pneg %p112
        %p315 = pneg %p136
        %p316 = pneg %p133
        %p317 = pneg %p162
        %p318 = pneg %p159
        %s319 = sand.u32 %s149, 1
        %s320 = scalar_lea.sflag [#allocation4], %s319
        %s321 = sand.u32 %s149, 1
        %s322 = smul.addr %s321, 16
        %s323 = scalar_lea.vmem [#allocation11], %s322
        %v325 = vld [vmem:[%s271] sm:$0xff]
        %v326 = vld [vmem:[%s271 + $0x8] sm:$0xff]
        %v327 = vld [vmem:[%s280] sm:$0xff]
        %v328 = vld [vmem:[%s280 + $0x8] sm:$0xff]
        %v329 = vld [vmem:[#allocation7] sm:$0xff]
        %v330 = vld [vmem:[#allocation7 + $0x8] sm:$0xf]
        %v331 = vld [vmem:[#allocation7 + $0x30] sm:$0xff]
        %v332 = vld [vmem:[#allocation7 + $0x38] sm:$0xf]
        %v333 = vld [vmem:[#allocation7 + $0x60] sm:$0xff]
        %v334 = vld [vmem:[#allocation7 + $0x68] sm:$0xf]
        %v335 = vld [vmem:[#allocation7 + $0x90] sm:$0xff]
        %v336 = vld [vmem:[#allocation7 + $0x98] sm:$0xf]
        %v337 = vld [vmem:[#allocation7 + $0xc0] sm:$0xff]
        %v338 = vld [vmem:[#allocation7 + $0xc8] sm:$0xf]
        %v339 = vld [vmem:[#allocation7 + $0xf0] sm:$0xff]
        %v340 = vld [vmem:[#allocation7 + $0xf8] sm:$0xf]
        %v341 = vld [vmem:[#allocation7 + $0x120] sm:$0xff]
        %v342 = vld [vmem:[#allocation7 + $0x128] sm:$0xf]
        %v343 = vld [vmem:[#allocation7 + $0x150] sm:$0xff]
        %v344 = vld [vmem:[#allocation7 + $0x158] sm:$0xf]
        %v345 = vld [vmem:[#allocation7 + $0x180] sm:$0xff]
        %v346 = vld [vmem:[#allocation7 + $0x188] sm:$0xf]
        %v347 = vld [vmem:[#allocation7 + $0x1b0] sm:$0xff]
        %v348 = vld [vmem:[#allocation7 + $0x1b8] sm:$0xf]
        %v349 = vld [vmem:[#allocation7 + $0x1e0] sm:$0xff]
        %v350 = vld [vmem:[#allocation7 + $0x1e8] sm:$0xf]
        %v351 = vld [vmem:[#allocation7 + $0x210] sm:$0xff]
        %v352 = vld [vmem:[#allocation7 + $0x218] sm:$0xf]
        %v353 = vld [vmem:[#allocation7 + $0x240] sm:$0xff]
        %v354 = vld [vmem:[#allocation7 + $0x248] sm:$0xf]
        %v355 = vld [vmem:[#allocation7 + $0x270] sm:$0xff]
        %v356 = vld [vmem:[#allocation7 + $0x278] sm:$0xf]
        %v357 = vld [vmem:[#allocation7 + $0x2a0] sm:$0xff]
        %v358 = vld [vmem:[#allocation7 + $0x2a8] sm:$0xf]
        %v359 = vld [vmem:[#allocation7 + $0x2d0] sm:$0xff]
        %v360 = vld [vmem:[#allocation7 + $0x2d8] sm:$0xf]
        %v361 = vld [vmem:[#allocation7 + $0xc] sm:$0xf]
        %v362 = vld [vmem:[#allocation7 + $0x3c] sm:$0xf]
        %v363 = vld [vmem:[#allocation7 + $0x6c] sm:$0xf]
        %v364 = vld [vmem:[#allocation7 + $0x9c] sm:$0xf]
        %v365 = vld [vmem:[#allocation7 + $0xcc] sm:$0xf]
        %v366 = vld [vmem:[#allocation7 + $0xfc] sm:$0xf]
        %v367 = vld [vmem:[#allocation7 + $0x12c] sm:$0xf]
        %v368 = vld [vmem:[#allocation7 + $0x15c] sm:$0xf]
        %v369 = vld [vmem:[#allocation7 + $0x18c] sm:$0xf]
        %v370 = vld [vmem:[#allocation7 + $0x1bc] sm:$0xf]
        %v371 = vld [vmem:[#allocation7 + $0x1ec] sm:$0xf]
        %v372 = vld [vmem:[#allocation7 + $0x21c] sm:$0xf]
        %v373 = vld [vmem:[#allocation7 + $0x24c] sm:$0xf]
        %v374 = vld [vmem:[#allocation7 + $0x27c] sm:$0xf]
        %v375 = vld [vmem:[#allocation7 + $0x2ac] sm:$0xf]
        %v376 = vld [vmem:[#allocation7 + $0x2dc] sm:$0xf]
        %v377 = vld [vmem:[#allocation7 + $0x10] sm:$0xf]
        %v378 = vld [vmem:[#allocation7 + $0x40] sm:$0xf]
        %v379 = vld [vmem:[#allocation7 + $0x70] sm:$0xf]
        %v380 = vld [vmem:[#allocation7 + $0xa0] sm:$0xf]
        %v381 = vld [vmem:[#allocation7 + $0xd0] sm:$0xf]
        %v382 = vld [vmem:[#allocation7 + $0x100] sm:$0xf]
        %v383 = vld [vmem:[#allocation7 + $0x130] sm:$0xf]
        %v384 = vld [vmem:[#allocation7 + $0x160] sm:$0xf]
        %v385 = vld [vmem:[#allocation7 + $0x190] sm:$0xf]
        %v386 = vld [vmem:[#allocation7 + $0x1c0] sm:$0xf]
        %v387 = vld [vmem:[#allocation7 + $0x1f0] sm:$0xf]
        %v388 = vld [vmem:[#allocation7 + $0x220] sm:$0xf]
        %v389 = vld [vmem:[#allocation7 + $0x250] sm:$0xf]
        %v390 = vld [vmem:[#allocation7 + $0x280] sm:$0xf]
        %v391 = vld [vmem:[#allocation7 + $0x2b0] sm:$0xf]
        %v392 = vld [vmem:[#allocation7 + $0x2e0] sm:$0xf]
        %v393 = vld [vmem:[#allocation7 + $0x14] sm:$0xff]
        %v394 = vld [vmem:[#allocation7 + $0x44] sm:$0xff]
        %v395 = vld [vmem:[#allocation7 + $0x74] sm:$0xff]
        %v396 = vld [vmem:[#allocation7 + $0xa4] sm:$0xff]
        %v397 = vld [vmem:[#allocation7 + $0xd4] sm:$0xff]
        %v398 = vld [vmem:[#allocation7 + $0x104] sm:$0xff]
        %v399 = vld [vmem:[#allocation7 + $0x134] sm:$0xff]
        %v400 = vld [vmem:[#allocation7 + $0x164] sm:$0xff]
        %v401 = vld [vmem:[#allocation7 + $0x194] sm:$0xff]
        %v402 = vld [vmem:[#allocation7 + $0x1c4] sm:$0xff]
        %v403 = vld [vmem:[#allocation7 + $0x1f4] sm:$0xff]
        %v404 = vld [vmem:[#allocation7 + $0x224] sm:$0xff]
        %v405 = vld [vmem:[#allocation7 + $0x254] sm:$0xff]
        %v406 = vld [vmem:[#allocation7 + $0x284] sm:$0xff]
        %v407 = vld [vmem:[#allocation7 + $0x2b4] sm:$0xff]
        %v408 = vld [vmem:[#allocation7 + $0x2e4] sm:$0xff]
        %v409 = vld [vmem:[#allocation7 + $0x1c] sm:$0xf]
        %v410 = vld [vmem:[#allocation7 + $0x4c] sm:$0xf]
        %v411 = vld [vmem:[#allocation7 + $0x7c] sm:$0xf]
        %v412 = vld [vmem:[#allocation7 + $0xac] sm:$0xf]
        %v413 = vld [vmem:[#allocation7 + $0xdc] sm:$0xf]
        %v414 = vld [vmem:[#allocation7 + $0x10c] sm:$0xf]
        %v415 = vld [vmem:[#allocation7 + $0x13c] sm:$0xf]
        %v416 = vld [vmem:[#allocation7 + $0x16c] sm:$0xf]
        %v417 = vld [vmem:[#allocation7 + $0x19c] sm:$0xf]
        %v418 = vld [vmem:[#allocation7 + $0x1cc] sm:$0xf]
        %v419 = vld [vmem:[#allocation7 + $0x1fc] sm:$0xf]
        %v420 = vld [vmem:[#allocation7 + $0x22c] sm:$0xf]
        %v421 = vld [vmem:[#allocation7 + $0x25c] sm:$0xf]
        %v422 = vld [vmem:[#allocation7 + $0x28c] sm:$0xf]
        %v423 = vld [vmem:[#allocation7 + $0x2bc] sm:$0xf]
        %v424 = vld [vmem:[#allocation7 + $0x2ec] sm:$0xf]
        %v425 = vld [vmem:[#allocation7 + $0x20] sm:$0xff]
        %v426 = vld [vmem:[#allocation7 + $0x28] sm:$0xff]
        %v427 = vld [vmem:[#allocation7 + $0x50] sm:$0xff]
        %v428 = vld [vmem:[#allocation7 + $0x58] sm:$0xff]
        %v429 = vld [vmem:[#allocation7 + $0x80] sm:$0xff]
        %v430 = vld [vmem:[#allocation7 + $0x88] sm:$0xff]
        %v431 = vld [vmem:[#allocation7 + $0xb0] sm:$0xff]
        %v432 = vld [vmem:[#allocation7 + $0xb8] sm:$0xff]
        %v433 = vld [vmem:[#allocation7 + $0xe0] sm:$0xff]
        %v434 = vld [vmem:[#allocation7 + $0xe8] sm:$0xff]
        %v435 = vld [vmem:[#allocation7 + $0x110] sm:$0xff]
        %v436 = vld [vmem:[#allocation7 + $0x118] sm:$0xff]
        %v437 = vld [vmem:[#allocation7 + $0x140] sm:$0xff]
        %v438 = vld [vmem:[#allocation7 + $0x148] sm:$0xff]
        %v439 = vld [vmem:[#allocation7 + $0x170] sm:$0xff]
        %v440 = vld [vmem:[#allocation7 + $0x178] sm:$0xff]
        %v441 = vld [vmem:[#allocation7 + $0x1a0] sm:$0xff]
        %v442 = vld [vmem:[#allocation7 + $0x1a8] sm:$0xff]
        %v443 = vld [vmem:[#allocation7 + $0x1d0] sm:$0xff]
        %v444 = vld [vmem:[#allocation7 + $0x1d8] sm:$0xff]
        %v445 = vld [vmem:[#allocation7 + $0x200] sm:$0xff]
        %v446 = vld [vmem:[#allocation7 + $0x208] sm:$0xff]
        %v447 = vld [vmem:[#allocation7 + $0x230] sm:$0xff]
        %v448 = vld [vmem:[#allocation7 + $0x238] sm:$0xff]
        %v449 = vld [vmem:[#allocation7 + $0x260] sm:$0xff]
        %v450 = vld [vmem:[#allocation7 + $0x268] sm:$0xff]
        %v451 = vld [vmem:[#allocation7 + $0x290] sm:$0xff]
        %v452 = vld [vmem:[#allocation7 + $0x298] sm:$0xff]
        %v453 = vld [vmem:[#allocation7 + $0x2c0] sm:$0xff]
        %v454 = vld [vmem:[#allocation7 + $0x2c8] sm:$0xff]
        %v455 = vld [vmem:[#allocation7 + $0x2f0] sm:$0xff]
        %v456 = vld [vmem:[#allocation7 + $0x2f8] sm:$0xff]
        %v457 = vld [vmem:[#allocation8] sm:$0xf]
        %v458 = vld [vmem:[#allocation8 + $0x4] sm:$0xf]
        %v459 = vld [vmem:[#allocation8 + $0x8] sm:$0xf]
        %v460 = vld [vmem:[#allocation8 + $0xc] sm:$0xf]
        %v461 = vld [vmem:[#allocation8 + $0x10] sm:$0xf]
        %v462 = vld [vmem:[#allocation8 + $0x14] sm:$0xf]
        %v463 = vld [vmem:[#allocation8 + $0x18] sm:$0xf]
        %v464 = vld [vmem:[#allocation8 + $0x1c] sm:$0xf]
        %v465 = vld [vmem:[#allocation8 + $0x20] sm:$0xf]
        %v466 = vld [vmem:[#allocation8 + $0x24] sm:$0xf]
        %v467 = vld [vmem:[#allocation8 + $0x28] sm:$0xf]
        %v468 = vld [vmem:[#allocation8 + $0x2c] sm:$0xf]
        %v469 = vld [vmem:[#allocation8 + $0x30] sm:$0xf]
        %v470 = vld [vmem:[#allocation8 + $0x34] sm:$0xf]
        %v471 = vld [vmem:[#allocation8 + $0x38] sm:$0xf]
        %v472 = vld [vmem:[#allocation8 + $0x3c] sm:$0xf]
        %v473 = vld [vmem:[#allocation8 + $0x40] sm:$0xf]
        %v474 = vld [vmem:[#allocation8 + $0x44] sm:$0xf]
        %v475 = vld [vmem:[#allocation8 + $0x48] sm:$0xf]
        %v476 = vld [vmem:[#allocation8 + $0x4c] sm:$0xf]
        %v477 = vld [vmem:[#allocation8 + $0x50] sm:$0xf]
        %v478 = vld [vmem:[#allocation8 + $0x54] sm:$0xf]
        %v479 = vld [vmem:[#allocation8 + $0x58] sm:$0xf]
        %v480 = vld [vmem:[#allocation8 + $0x5c] sm:$0xf]
        %v481 = vld [vmem:[#allocation8 + $0x60] sm:$0xf]
        %v482 = vld [vmem:[#allocation8 + $0x64] sm:$0xf]
        %v483 = vld [vmem:[#allocation8 + $0x68] sm:$0xf]
        %v484 = vld [vmem:[#allocation8 + $0x6c] sm:$0xf]
        %v485 = vld [vmem:[#allocation8 + $0x70] sm:$0xf]
        %v486 = vld [vmem:[#allocation8 + $0x74] sm:$0xf]
        %v487 = vld [vmem:[#allocation8 + $0x78] sm:$0xf]
        %v488 = vld [vmem:[#allocation8 + $0x7c] sm:$0xf]
        %v489 = vld [vmem:[#allocation8 + $0x80] sm:$0xf]
        %v490 = vld [vmem:[#allocation8 + $0x84] sm:$0xf]
        %v491 = vld [vmem:[#allocation8 + $0x88] sm:$0xf]
        %v492 = vld [vmem:[#allocation8 + $0x8c] sm:$0xf]
        %v493 = vld [vmem:[#allocation8 + $0x90] sm:$0xf]
        %v494 = vld [vmem:[#allocation8 + $0x94] sm:$0xf]
        %v495 = vld [vmem:[#allocation8 + $0x98] sm:$0xf]
        %v496 = vld [vmem:[#allocation8 + $0x9c] sm:$0xf]
        %v497 = vld [vmem:[#allocation8 + $0xa0] sm:$0xf]
        %v498 = vld [vmem:[#allocation8 + $0xa4] sm:$0xf]
        %v499 = vld [vmem:[#allocation8 + $0xa8] sm:$0xf]
        %v500 = vld [vmem:[#allocation8 + $0xac] sm:$0xf]
        %v501 = vld [vmem:[#allocation8 + $0xb0] sm:$0xf]
        %v502 = vld [vmem:[#allocation8 + $0xb4] sm:$0xf]
        %v503 = vld [vmem:[#allocation8 + $0xb8] sm:$0xf]
        %v504 = vld [vmem:[#allocation8 + $0xbc] sm:$0xf]
        %v505 = vld [vmem:[#allocation8 + $0xc0] sm:$0xf]
        %v506 = vld [vmem:[#allocation8 + $0xc4] sm:$0xf]
        %v507 = vld [vmem:[#allocation8 + $0xc8] sm:$0xf]
        %v508 = vld [vmem:[#allocation8 + $0xcc] sm:$0xf]
        %v509 = vld [vmem:[#allocation8 + $0xd0] sm:$0xf]
        %v510 = vld [vmem:[#allocation8 + $0xd4] sm:$0xf]
        %v511 = vld [vmem:[#allocation8 + $0xd8] sm:$0xf]
        %v512 = vld [vmem:[#allocation8 + $0xdc] sm:$0xf]
        %v513 = vld [vmem:[#allocation8 + $0xe0] sm:$0xf]
        %v514 = vld [vmem:[#allocation8 + $0xe4] sm:$0xf]
        %v515 = vld [vmem:[#allocation8 + $0xe8] sm:$0xf]
        %v516 = vld [vmem:[#allocation8 + $0xec] sm:$0xf]
        %v517 = vld [vmem:[#allocation8 + $0xf0] sm:$0xf]
        %v518 = vld [vmem:[#allocation8 + $0xf4] sm:$0xf]
        %v519 = vld [vmem:[#allocation8 + $0xf8] sm:$0xf]
        %v520 = vld [vmem:[#allocation8 + $0xfc] sm:$0xf]
        %v521 = vld [vmem:[#allocation10] sm:$0x1]
        %v522 = vld [vmem:[#allocation10 + $0x1] sm:$0x1]
        %v523 = vld [vmem:[#allocation10 + $0x2] sm:$0x3]
        %v524 = vld [vmem:[#allocation10 + $0x4] sm:$0x1]
        %v525 = vld [vmem:[#allocation10 + $0x5] sm:$0xf]
        %v526 = vld [vmem:[#allocation10 + $0x9] sm:$0x1]
        %v527 = vld [vmem:[#allocation10 + $0xa] sm:$0x1]
        %v528 = vld [vmem:[#allocation10 + $0xb] sm:$0x1]
        %v529 = vld [vmem:[#allocation10 + $0xc] sm:$0x1]
        %v530 = vld [vmem:[#allocation10 + $0xd] sm:$0x1]
        %v531 = vld [vmem:[#allocation10 + $0xe] sm:$0x1]
        %v532 = vld [vmem:[#allocation10 + $0xf] sm:$0x1]
        %v533 = vpack.c.bf16 %v326, %v325
        %v566 = vunpack.c.l.b16 %v329
        %v567 = vunpack.c.h.b16 %v329
        %v568 = vunpack.c.l.b16 %v330
        %v569 = vunpack.c.l.b16 %v331
        %v570 = vunpack.c.h.b16 %v331
        %v571 = vunpack.c.l.b16 %v332
        %v572 = vunpack.c.l.b16 %v333
        %v573 = vunpack.c.h.b16 %v333
        %v574 = vunpack.c.l.b16 %v334
        %v575 = vunpack.c.l.b16 %v335
        %v576 = vunpack.c.h.b16 %v335
        %v577 = vunpack.c.l.b16 %v336
        %v578 = vunpack.c.l.b16 %v337
        %v579 = vunpack.c.h.b16 %v337
        %v580 = vunpack.c.l.b16 %v338
        %v581 = vunpack.c.l.b16 %v339
        %v582 = vunpack.c.h.b16 %v339
        %v583 = vunpack.c.l.b16 %v340
        %v584 = vunpack.c.l.b16 %v341
        %v585 = vunpack.c.h.b16 %v341
        %v586 = vunpack.c.l.b16 %v342
        %v587 = vunpack.c.l.b16 %v343
        %v588 = vunpack.c.h.b16 %v343
        %v589 = vunpack.c.l.b16 %v344
        %v590 = vunpack.c.l.b16 %v345
        %v591 = vunpack.c.h.b16 %v345
        %v592 = vunpack.c.l.b16 %v346
        %v593 = vunpack.c.l.b16 %v347
        %v594 = vunpack.c.h.b16 %v347
        %v595 = vunpack.c.l.b16 %v348
        %v596 = vunpack.c.l.b16 %v349
        %v597 = vunpack.c.h.b16 %v349
        %v598 = vunpack.c.l.b16 %v350
        %v599 = vunpack.c.l.b16 %v351
        %v600 = vunpack.c.h.b16 %v351
        %v601 = vunpack.c.l.b16 %v352
        %v602 = vunpack.c.l.b16 %v353
        %v603 = vunpack.c.h.b16 %v353
        %v604 = vunpack.c.l.b16 %v354
        %v605 = vunpack.c.l.b16 %v355
        %v606 = vunpack.c.h.b16 %v355
        %v607 = vunpack.c.l.b16 %v356
        %v608 = vunpack.c.l.b16 %v357
        %v609 = vunpack.c.h.b16 %v357
        %v610 = vunpack.c.l.b16 %v358
        %v611 = vunpack.c.l.b16 %v359
        %v612 = vunpack.c.h.b16 %v359
        %v613 = vunpack.c.l.b16 %v360
        %v614 = vpack.c.b16 %v569, %v566
        %v615 = vpack.c.b16 %v570, %v567
        %v616 = vpack.c.b16 %v571, %v568
        %v617 = vpack.c.b16 %v575, %v572
        %v618 = vpack.c.b16 %v576, %v573
        %v619 = vpack.c.b16 %v577, %v574
        %v620 = vpack.c.b16 %v581, %v578
        %v621 = vpack.c.b16 %v582, %v579
        %v622 = vpack.c.b16 %v583, %v580
        %v623 = vpack.c.b16 %v587, %v584
        %v624 = vpack.c.b16 %v588, %v585
        %v625 = vpack.c.b16 %v589, %v586
        %v626 = vpack.c.b16 %v593, %v590
        %v627 = vpack.c.b16 %v594, %v591
        %v628 = vpack.c.b16 %v595, %v592
        %v629 = vpack.c.b16 %v599, %v596
        %v630 = vpack.c.b16 %v600, %v597
        %v631 = vpack.c.b16 %v601, %v598
        %v632 = vpack.c.b16 %v605, %v602
        %v633 = vpack.c.b16 %v606, %v603
        %v634 = vpack.c.b16 %v607, %v604
        %v635 = vpack.c.b16 %v611, %v608
        %v636 = vpack.c.b16 %v612, %v609
        %v637 = vpack.c.b16 %v613, %v610
        %662 = vmatprep.subr.bf16.mxu0 %v636
        %663 = vmatpush1.bf16.msra.mxu0 %v635
        %664 = vmatprep.subr.bf16.mxu0 %v633
        %665 = vmatpush1.bf16.msra.mxu0 %v632
        %666 = vmatprep.subr.bf16.mxu0 %v630
        %667 = vmatpush1.bf16.msra.mxu0 %v629
        %668 = vmatprep.subr.bf16.mxu0 %v627
        %669 = vmatpush1.bf16.msra.mxu0 %v626
        %670 = vmatprep.subr.bf16.mxu0 %v624
        %671 = vmatpush1.bf16.msra.mxu0 %v623
        %672 = vmatprep.subr.bf16.mxu0 %v621
        %673 = vmatpush1.bf16.msra.mxu0 %v620
        %674 = vmatprep.subr.bf16.mxu0 %v618
        %675 = vmatpush1.bf16.msra.mxu0 %v617
        %676 = vmatprep.subr.bf16.mxu0 %v615
        %677 = vmatpush1.bf16.msra.mxu0 %v614
        %678 = vmatprep.subr.bf16.mxu0 0
        %679 = vmatpush2.bf16.msra.mxu0 0
        %680 = vmatprep.subr.bf16.mxu0 0
        %681 = vmatpush2.bf16.msra.mxu0 0
        %682 = vmatprep.subr.bf16.mxu0 0
        %683 = vmatpush2.bf16.msra.mxu0 0
        %684 = vmatprep.subr.bf16.mxu0 0
        %685 = vmatpush2.bf16.msra.mxu0 0
        %686 = vmatprep.subr.bf16.mxu0 0
        %687 = vmatpush2.bf16.msra.mxu0 0
        %688 = vmatprep.subr.bf16.mxu0 0
        %689 = vmatpush2.bf16.msra.mxu0 0
        %690 = vmatprep.subr.bf16.mxu0 0
        %691 = vmatpush2.bf16.msra.mxu0 0
        %692 = vmatprep.subr.bf16.mxu0 0
        %693 = vmatpush2.bf16.msra.mxu0 0
        %694 = vmatprep.mubr.bf16.mxu0 0
        %695 = vmatmul.mubr.bf16.gmra.mxu0 %v533
        %v696 = vpop.f32.mrf.mxu0
        %v697 = vadd.f32 0.0, %v696
        %v698 = vpop.f32.mrf.mxu0
        %v699 = vadd.f32 0.0, %v698
        %v700 = vpop.f32.mrf.mxu0
        %v701 = vadd.f32 0.0, %v700
        %v702 = vpop.f32.mrf.mxu0
        %v703 = vadd.f32 0.0, %v702
        %704 = vdwg.mxu0
        %705 = vmatprep.subr.bf16.mxu0 0
        %706 = vmatpush1.bf16.msra.mxu0 %v637
        %707 = vmatprep.subr.bf16.mxu0 0
        %708 = vmatpush1.bf16.msra.mxu0 %v634
        %709 = vmatprep.subr.bf16.mxu0 0
        %710 = vmatpush1.bf16.msra.mxu0 %v631
        %711 = vmatprep.subr.bf16.mxu0 0
        %712 = vmatpush1.bf16.msra.mxu0 %v628
        %713 = vmatprep.subr.bf16.mxu0 0
        %714 = vmatpush1.bf16.msra.mxu0 %v625
        %715 = vmatprep.subr.bf16.mxu0 0
        %716 = vmatpush1.bf16.msra.mxu0 %v622
        %717 = vmatprep.subr.bf16.mxu0 0
        %718 = vmatpush1.bf16.msra.mxu0 %v619
        %719 = vmatprep.subr.bf16.mxu0 0
        %720 = vmatpush1.bf16.msra.mxu0 %v616
        %721 = vmatprep.subr.bf16.mxu0 0
        %722 = vmatpush2.bf16.msra.mxu0 0
        %723 = vmatprep.subr.bf16.mxu0 0
        %724 = vmatpush2.bf16.msra.mxu0 0
        %725 = vmatprep.subr.bf16.mxu0 0
        %726 = vmatpush2.bf16.msra.mxu0 0
        %727 = vmatprep.subr.bf16.mxu0 0
        %728 = vmatpush2.bf16.msra.mxu0 0
        %729 = vmatprep.subr.bf16.mxu0 0
        %730 = vmatpush2.bf16.msra.mxu0 0
        %731 = vmatprep.subr.bf16.mxu0 0
        %732 = vmatpush2.bf16.msra.mxu0 0
        %733 = vmatprep.subr.bf16.mxu0 0
        %734 = vmatpush2.bf16.msra.mxu0 0
        %735 = vmatprep.subr.bf16.mxu0 0
        %736 = vmatpush2.bf16.msra.mxu0 0
        %737 = vmatprep.mubr.bf16.mxu0 0
        %738 = vmatmul.mubr.bf16.gmra.mxu0 %v533
        %v739 = vpop.f32.mrf.mxu0
        %v740 = vadd.f32 0.0, %v739
        %v741 = vpop.f32.mrf.mxu0
        %v742 = vpop.f32.mrf.mxu0
        %v743 = vadd.f32 0.0, %v742
        %v744 = vpop.f32.mrf.mxu0
        %745 = vdwg.mxu0
        %748 = vrot.lane.b32.xlu0 %v697, 96
        %v749 = vpop.permute.xlu0 %748
        %750 = vrot.lane.b32.xlu0 %v701, 96
        %v751 = vpop.permute.xlu0 %750
        %754 = vrot.lane.b32.xlu0 %v697, 64
        %v755 = vpop.permute.xlu0 %754
        %756 = vrot.lane.b32.xlu0 %v701, 64
        %v757 = vpop.permute.xlu0 %756
        %760 = vrot.lane.b32.xlu0 %v697, 32
        %v761 = vpop.permute.xlu0 %760
        %762 = vrot.lane.b32.xlu0 %v701, 32
        %v763 = vpop.permute.xlu0 %762
        %768 = vrot.lane.b32.xlu0 %v699, 96
        %v769 = vpop.permute.xlu0 %768
        %770 = vrot.lane.b32.xlu0 %v703, 96
        %v771 = vpop.permute.xlu0 %770
        %774 = vrot.lane.b32.xlu0 %v699, 64
        %v775 = vpop.permute.xlu0 %774
        %776 = vrot.lane.b32.xlu0 %v703, 64
        %v777 = vpop.permute.xlu0 %776
        %780 = vrot.lane.b32.xlu0 %v699, 32
        %v781 = vpop.permute.xlu0 %780
        %782 = vrot.lane.b32.xlu0 %v703, 32
        %v783 = vpop.permute.xlu0 %782
        %788 = vrot.lane.b32.xlu0 %v740, 96
        %v789 = vpop.permute.xlu0 %788
        %790 = vrot.lane.b32.xlu0 %v743, 96
        %v791 = vpop.permute.xlu0 %790
        %794 = vrot.lane.b32.xlu0 %v740, 64
        %v795 = vpop.permute.xlu0 %794
        %796 = vrot.lane.b32.xlu0 %v743, 64
        %v797 = vpop.permute.xlu0 %796
        %800 = vrot.lane.b32.xlu0 %v740, 32
        %v801 = vpop.permute.xlu0 %800
        %802 = vrot.lane.b32.xlu0 %v743, 32
        %v803 = vpop.permute.xlu0 %802
        %v806 = vpack.c.bf16 %v701, %v697
        %v807 = vpack.c.bf16 %v751, %v749
        %v808 = vpack.c.bf16 %v757, %v755
        %v809 = vpack.c.bf16 %v763, %v761
        %v810 = vpack.c.bf16 %v703, %v699
        %v811 = vpack.c.bf16 %v771, %v769
        %v812 = vpack.c.bf16 %v777, %v775
        %v813 = vpack.c.bf16 %v783, %v781
        %vm814 = vcmask 261120
        %v816 = vsel %vm814, %v806, 0
        %v819 = vsel %vm814, %v810, 0
        %821 = vmatprep.subr.bf16.mxu0 0
        %822 = vmatpush1.bf16.xpose.msra.mxu0 0
        %823 = vmatprep.subr.bf16.mxu0 0
        %824 = vmatpush1.bf16.xpose.msra.mxu0 0
        %825 = vmatprep.subr.bf16.mxu0 0
        %826 = vmatpush1.bf16.xpose.msra.mxu0 0
        %827 = vmatprep.subr.bf16.mxu0 0
        %828 = vmatpush1.bf16.xpose.msra.mxu0 0
        %829 = vmatprep.subr.bf16.mxu0 0
        %830 = vmatpush1.bf16.xpose.msra.mxu0 0
        %831 = vmatprep.subr.bf16.mxu0 0
        %832 = vmatpush1.bf16.xpose.msra.mxu0 0
        %833 = vmatprep.subr.bf16.mxu0 0
        %834 = vmatpush1.bf16.xpose.msra.mxu0 0
        %835 = vmatprep.subr.bf16.mxu0 0
        %836 = vmatpush1.bf16.xpose.msra.mxu0 %v819
        %837 = vmatprep.subr.bf16.mxu0 0
        %838 = vmatpush2.bf16.xpose.msra.mxu0 0
        %839 = vmatprep.subr.bf16.mxu0 0
        %840 = vmatpush2.bf16.xpose.msra.mxu0 0
        %841 = vmatprep.subr.bf16.mxu0 0
        %842 = vmatpush2.bf16.xpose.msra.mxu0 0
        %843 = vmatprep.subr.bf16.mxu0 0
        %844 = vmatpush2.bf16.xpose.msra.mxu0 0
        %845 = vmatprep.subr.bf16.mxu0 0
        %846 = vmatpush2.bf16.xpose.msra.mxu0 0
        %847 = vmatprep.subr.bf16.mxu0 0
        %848 = vmatpush2.bf16.xpose.msra.mxu0 0
        %849 = vmatprep.subr.bf16.mxu0 0
        %850 = vmatpush2.bf16.xpose.msra.mxu0 0
        %851 = vmatprep.subr.bf16.mxu0 0
        %852 = vmatpush2.bf16.xpose.msra.mxu0 0
        %853 = vmatprep.mubr.bf16.mxu0 0
        %854 = vmatmul.mubr.bf16.gmra.mxu0 %v816
        %v855 = vpop.f32.mrf.mxu0
        %v856 = vadd.f32 0.0, %v855
        %v857 = vpop.f32.mrf.mxu0
        %v858 = vpop.f32.mrf.mxu0
        %v859 = vadd.f32 0.0, %v858
        %v860 = vpop.f32.mrf.mxu0
        %861 = vdwg.mxu0
        %v863 = vsel %vm814, %v807, 0
        %v866 = vsel %vm814, %v811, 0
        %868 = vmatprep.subr.bf16.mxu0 0
        %869 = vmatpush1.bf16.xpose.msra.mxu0 0
        %870 = vmatprep.subr.bf16.mxu0 0
        %871 = vmatpush1.bf16.xpose.msra.mxu0 0
        %872 = vmatprep.subr.bf16.mxu0 0
        %873 = vmatpush1.bf16.xpose.msra.mxu0 0
        %874 = vmatprep.subr.bf16.mxu0 0
        %875 = vmatpush1.bf16.xpose.msra.mxu0 0
        %876 = vmatprep.subr.bf16.mxu0 0
        %877 = vmatpush1.bf16.xpose.msra.mxu0 0
        %878 = vmatprep.subr.bf16.mxu0 0
        %879 = vmatpush1.bf16.xpose.msra.mxu0 0
        %880 = vmatprep.subr.bf16.mxu0 0
        %881 = vmatpush1.bf16.xpose.msra.mxu0 0
        %882 = vmatprep.subr.bf16.mxu0 0
        %883 = vmatpush1.bf16.xpose.msra.mxu0 %v866
        %884 = vmatprep.subr.bf16.mxu0 0
        %885 = vmatpush2.bf16.xpose.msra.mxu0 0
        %886 = vmatprep.subr.bf16.mxu0 0
        %887 = vmatpush2.bf16.xpose.msra.mxu0 0
        %888 = vmatprep.subr.bf16.mxu0 0
        %889 = vmatpush2.bf16.xpose.msra.mxu0 0
        %890 = vmatprep.subr.bf16.mxu0 0
        %891 = vmatpush2.bf16.xpose.msra.mxu0 0
        %892 = vmatprep.subr.bf16.mxu0 0
        %893 = vmatpush2.bf16.xpose.msra.mxu0 0
        %894 = vmatprep.subr.bf16.mxu0 0
        %895 = vmatpush2.bf16.xpose.msra.mxu0 0
        %896 = vmatprep.subr.bf16.mxu0 0
        %897 = vmatpush2.bf16.xpose.msra.mxu0 0
        %898 = vmatprep.subr.bf16.mxu0 0
        %899 = vmatpush2.bf16.xpose.msra.mxu0 0
        %900 = vmatprep.mubr.bf16.mxu0 0
        %901 = vmatmul.mubr.bf16.gmra.mxu0 %v863
        %v902 = vpop.f32.mrf.mxu0
        %v903 = vadd.f32 0.0, %v902
        %v904 = vpop.f32.mrf.mxu0
        %v905 = vpop.f32.mrf.mxu0
        %v906 = vadd.f32 0.0, %v905
        %v907 = vpop.f32.mrf.mxu0
        %908 = vdwg.mxu0
        %v910 = vsel %vm814, %v808, 0
        %v913 = vsel %vm814, %v812, 0
        %915 = vmatprep.subr.bf16.mxu0 0
        %916 = vmatpush1.bf16.xpose.msra.mxu0 0
        %917 = vmatprep.subr.bf16.mxu0 0
        %918 = vmatpush1.bf16.xpose.msra.mxu0 0
        %919 = vmatprep.subr.bf16.mxu0 0
        %920 = vmatpush1.bf16.xpose.msra.mxu0 0
        %921 = vmatprep.subr.bf16.mxu0 0
        %922 = vmatpush1.bf16.xpose.msra.mxu0 0
        %923 = vmatprep.subr.bf16.mxu0 0
        %924 = vmatpush1.bf16.xpose.msra.mxu0 0
        %925 = vmatprep.subr.bf16.mxu0 0
        %926 = vmatpush1.bf16.xpose.msra.mxu0 0
        %927 = vmatprep.subr.bf16.mxu0 0
        %928 = vmatpush1.bf16.xpose.msra.mxu0 0
        %929 = vmatprep.subr.bf16.mxu0 0
        %930 = vmatpush1.bf16.xpose.msra.mxu0 %v913
        %931 = vmatprep.subr.bf16.mxu0 0
        %932 = vmatpush2.bf16.xpose.msra.mxu0 0
        %933 = vmatprep.subr.bf16.mxu0 0
        %934 = vmatpush2.bf16.xpose.msra.mxu0 0
        %935 = vmatprep.subr.bf16.mxu0 0
        %936 = vmatpush2.bf16.xpose.msra.mxu0 0
        %937 = vmatprep.subr.bf16.mxu0 0
        %938 = vmatpush2.bf16.xpose.msra.mxu0 0
        %939 = vmatprep.subr.bf16.mxu0 0
        %940 = vmatpush2.bf16.xpose.msra.mxu0 0
        %941 = vmatprep.subr.bf16.mxu0 0
        %942 = vmatpush2.bf16.xpose.msra.mxu0 0
        %943 = vmatprep.subr.bf16.mxu0 0
        %944 = vmatpush2.bf16.xpose.msra.mxu0 0
        %945 = vmatprep.subr.bf16.mxu0 0
        %946 = vmatpush2.bf16.xpose.msra.mxu0 0
        %947 = vmatprep.mubr.bf16.mxu0 0
        %948 = vmatmul.mubr.bf16.gmra.mxu0 %v910
        %v949 = vpop.f32.mrf.mxu0
        %v950 = vadd.f32 0.0, %v949
        %v951 = vpop.f32.mrf.mxu0
        %v952 = vpop.f32.mrf.mxu0
        %v953 = vadd.f32 0.0, %v952
        %v954 = vpop.f32.mrf.mxu0
        %955 = vdwg.mxu0
        %v957 = vsel %vm814, %v809, 0
        %v960 = vsel %vm814, %v813, 0
        %962 = vmatprep.subr.bf16.mxu0 0
        %963 = vmatpush1.bf16.xpose.msra.mxu0 0
        %964 = vmatprep.subr.bf16.mxu0 0
        %965 = vmatpush1.bf16.xpose.msra.mxu0 0
        %966 = vmatprep.subr.bf16.mxu0 0
        %967 = vmatpush1.bf16.xpose.msra.mxu0 0
        %968 = vmatprep.subr.bf16.mxu0 0
        %969 = vmatpush1.bf16.xpose.msra.mxu0 0
        %970 = vmatprep.subr.bf16.mxu0 0
        %971 = vmatpush1.bf16.xpose.msra.mxu0 0
        %972 = vmatprep.subr.bf16.mxu0 0
        %973 = vmatpush1.bf16.xpose.msra.mxu0 0
        %974 = vmatprep.subr.bf16.mxu0 0
        %975 = vmatpush1.bf16.xpose.msra.mxu0 0
        %976 = vmatprep.subr.bf16.mxu0 0
        %977 = vmatpush1.bf16.xpose.msra.mxu0 %v960
        %978 = vmatprep.subr.bf16.mxu0 0
        %979 = vmatpush2.bf16.xpose.msra.mxu0 0
        %980 = vmatprep.subr.bf16.mxu0 0
        %981 = vmatpush2.bf16.xpose.msra.mxu0 0
        %982 = vmatprep.subr.bf16.mxu0 0
        %983 = vmatpush2.bf16.xpose.msra.mxu0 0
        %984 = vmatprep.subr.bf16.mxu0 0
        %985 = vmatpush2.bf16.xpose.msra.mxu0 0
        %986 = vmatprep.subr.bf16.mxu0 0
        %987 = vmatpush2.bf16.xpose.msra.mxu0 0
        %988 = vmatprep.subr.bf16.mxu0 0
        %989 = vmatpush2.bf16.xpose.msra.mxu0 0
        %990 = vmatprep.subr.bf16.mxu0 0
        %991 = vmatpush2.bf16.xpose.msra.mxu0 0
        %992 = vmatprep.subr.bf16.mxu0 0
        %993 = vmatpush2.bf16.xpose.msra.mxu0 0
        %994 = vmatprep.mubr.bf16.mxu0 0
        %995 = vmatmul.mubr.bf16.gmra.mxu0 %v957
        %v996 = vpop.f32.mrf.mxu0
        %v997 = vadd.f32 0.0, %v996
        %v998 = vpop.f32.mrf.mxu0
        %v999 = vpop.f32.mrf.mxu0
        %v1000 = vadd.f32 0.0, %v999
        %v1001 = vpop.f32.mrf.mxu0
        %1002 = vdwg.mxu0
        %v1003 = vmul.f32 %v856, 0.17677669
        %v1004 = vmul.f32 %v859, 0.17677669
        %v1005 = vmul.f32 %v903, 0.17677669
        %v1006 = vmul.f32 %v906, 0.17677669
        %v1007 = vmul.f32 %v950, 0.17677669
        %v1008 = vmul.f32 %v953, 0.17677669
        %v1009 = vmul.f32 %v997, 0.17677669
        %v1010 = vmul.f32 %v1000, 0.17677669
        %v1011 = vlaneseq
        %v1012 = vshrl.u32 %v1011, 7
        %v1013 = vadd.s32 %v1012, 8
        %v1014 = vlaneseq
        %v1015 = vand.u32 %v1014, 127
        %vm1016 = vcmp.ge.s32.totalorder %v1012, %v1015
        %vm1017 = vcmp.ge.s32.totalorder %v1013, %v1015
        %v1018 = vsel %vm1016, 1, 0
        %v1019 = vsel %vm1017, 1, 0
        %vm1020 = vcmp.eq.s32.totalorder %v1018, 1
        %vm1021 = vcmp.eq.s32.totalorder %v1019, 1
        %v1022 = vsel %vm1020, %v1003, -inf
        %v1023 = vsel %vm1021, %v1004, -inf
        %v1024 = vsel %vm1020, %v1005, -inf
        %v1025 = vsel %vm1021, %v1006, -inf
        %v1026 = vsel %vm1020, %v1007, -inf
        %v1027 = vsel %vm1021, %v1008, -inf
        %v1028 = vsel %vm1020, %v1009, -inf
        %v1029 = vsel %vm1021, %v1010, -inf
        %vm1030 = vcmask 130048
        %v1031 = vsel %vm1030, %v1022, -inf
        %1032 = vmax.xlane.f32.xlu0 %v1031
        %v1033 = vpop.xlane.xlu0 %1032
        %v1034 = vsel %vm1030, %v1023, -inf
        %1035 = vmax.xlane.f32.xlu0 %v1034
        %v1036 = vpop.xlane.xlu0 %1035
        %v1037 = vsel %vm1030, %v1024, -inf
        %1038 = vmax.xlane.f32.xlu0 %v1037
        %v1039 = vpop.xlane.xlu0 %1038
        %v1040 = vsel %vm1030, %v1025, -inf
        %1041 = vmax.xlane.f32.xlu0 %v1040
        %v1042 = vpop.xlane.xlu0 %1041
        %v1043 = vsel %vm1030, %v1026, -inf
        %1044 = vmax.xlane.f32.xlu0 %v1043
        %v1045 = vpop.xlane.xlu0 %1044
        %v1046 = vsel %vm1030, %v1027, -inf
        %1047 = vmax.xlane.f32.xlu0 %v1046
        %v1048 = vpop.xlane.xlu0 %1047
        %v1049 = vsel %vm1030, %v1028, -inf
        %1050 = vmax.xlane.f32.xlu0 %v1049
        %v1051 = vpop.xlane.xlu0 %1050
        %v1052 = vsel %vm1030, %v1029, -inf
        %1053 = vmax.xlane.f32.xlu0 %v1052
        %v1054 = vpop.xlane.xlu0 %1053
        %v1055 = vsub.f32 %v1022, %v1033
        %v1056 = vsub.f32 %v1023, %v1036
        %v1057 = vsub.f32 %v1024, %v1039
        %v1058 = vsub.f32 %v1025, %v1042
        %v1059 = vsub.f32 %v1026, %v1045
        %v1060 = vsub.f32 %v1027, %v1048
        %v1061 = vsub.f32 %v1028, %v1051
        %v1062 = vsub.f32 %v1029, %v1054
        %v1063 = vmul.f32 %v1055, 1.442695
        %v1064 = vpow.pop %v1063
        %v1065 = vmul.f32 %v1056, 1.442695
        %v1066 = vpow.pop %v1065
        %v1067 = vmul.f32 %v1057, 1.442695
        %v1068 = vpow.pop %v1067
        %v1069 = vmul.f32 %v1058, 1.442695
        %v1070 = vpow.pop %v1069
        %v1071 = vmul.f32 %v1059, 1.442695
        %v1072 = vpow.pop %v1071
        %v1073 = vmul.f32 %v1060, 1.442695
        %v1074 = vpow.pop %v1073
        %v1075 = vmul.f32 %v1061, 1.442695
        %v1076 = vpow.pop %v1075
        %v1077 = vmul.f32 %v1062, 1.442695
        %v1078 = vpow.pop %v1077
        %v1079 = vsel %vm1030, %v1064, 0.0
        %1080 = vadd.xlane.f32.xlu0 %v1079
        %v1081 = vpop.xlane.xlu0 %1080
        %v1082 = vsel %vm1030, %v1066, 0.0
        %1083 = vadd.xlane.f32.xlu0 %v1082
        %v1084 = vpop.xlane.xlu0 %1083
        %v1085 = vsel %vm1030, %v1068, 0.0
        %1086 = vadd.xlane.f32.xlu0 %v1085
        %v1087 = vpop.xlane.xlu0 %1086
        %v1088 = vsel %vm1030, %v1070, 0.0
        %1089 = vadd.xlane.f32.xlu0 %v1088
        %v1090 = vpop.xlane.xlu0 %1089
        %v1091 = vsel %vm1030, %v1072, 0.0
        %1092 = vadd.xlane.f32.xlu0 %v1091
        %v1093 = vpop.xlane.xlu0 %1092
        %v1094 = vsel %vm1030, %v1074, 0.0
        %1095 = vadd.xlane.f32.xlu0 %v1094
        %v1096 = vpop.xlane.xlu0 %1095
        %v1097 = vsel %vm1030, %v1076, 0.0
        %1098 = vadd.xlane.f32.xlu0 %v1097
        %v1099 = vpop.xlane.xlu0 %1098
        %v1100 = vsel %vm1030, %v1078, 0.0
        %1101 = vadd.xlane.f32.xlu0 %v1100
        %v1102 = vpop.xlane.xlu0 %1101
        %v1103 = vrcp.pop %v1081
        %v1104 = vrcp.pop %v1084
        %v1105 = vrcp.pop %v1087
        %v1106 = vrcp.pop %v1090
        %v1107 = vrcp.pop %v1093
        %v1108 = vrcp.pop %v1096
        %v1109 = vrcp.pop %v1099
        %v1110 = vrcp.pop %v1102
        %v1111 = vmul.f32 %v1064, %v1103
        %v1112 = vmul.f32 %v1066, %v1104
        %v1113 = vmul.f32 %v1068, %v1105
        %v1114 = vmul.f32 %v1070, %v1106
        %v1115 = vmul.f32 %v1072, %v1107
        %v1116 = vmul.f32 %v1074, %v1108
        %v1117 = vmul.f32 %v1076, %v1109
        %v1118 = vmul.f32 %v1078, %v1110
        %v1119 = vpack.c.bf16 %v1112, %v1111
        %v1120 = vpack.c.bf16 %v1114, %v1113
        %v1121 = vpack.c.bf16 %v1116, %v1115
        %v1122 = vpack.c.bf16 %v1118, %v1117
        %v1123 = vpack.c.bf16 %v743, %v740
        %v1124 = vpack.c.bf16 %v791, %v789
        %v1125 = vpack.c.bf16 %v797, %v795
        %v1126 = vpack.c.bf16 %v803, %v801
        %v1128 = vsel %vm1030, %v1119, 0
        %1130 = vmatprep.subr.bf16.mxu0 0
        %1131 = vmatpush1.bf16.msra.mxu0 0
        %1132 = vmatprep.subr.bf16.mxu0 0
        %1133 = vmatpush1.bf16.msra.mxu0 0
        %1134 = vmatprep.subr.bf16.mxu0 0
        %1135 = vmatpush1.bf16.msra.mxu0 0
        %1136 = vmatprep.subr.bf16.mxu0 0
        %1137 = vmatpush1.bf16.msra.mxu0 0
        %1138 = vmatprep.subr.bf16.mxu0 0
        %1139 = vmatpush1.bf16.msra.mxu0 0
        %1140 = vmatprep.subr.bf16.mxu0 0
        %1141 = vmatpush1.bf16.msra.mxu0 0
        %1142 = vmatprep.subr.bf16.mxu0 0
        %1143 = vmatpush1.bf16.msra.mxu0 0
        %1144 = vmatprep.subr.bf16.mxu0 0
        %1145 = vmatpush1.bf16.msra.mxu0 %v1123
        %1146 = vmatprep.subr.bf16.mxu0 0
        %1147 = vmatpush2.bf16.msra.mxu0 0
        %1148 = vmatprep.subr.bf16.mxu0 0
        %1149 = vmatpush2.bf16.msra.mxu0 0
        %1150 = vmatprep.subr.bf16.mxu0 0
        %1151 = vmatpush2.bf16.msra.mxu0 0
        %1152 = vmatprep.subr.bf16.mxu0 0
        %1153 = vmatpush2.bf16.msra.mxu0 0
        %1154 = vmatprep.subr.bf16.mxu0 0
        %1155 = vmatpush2.bf16.msra.mxu0 0
        %1156 = vmatprep.subr.bf16.mxu0 0
        %1157 = vmatpush2.bf16.msra.mxu0 0
        %1158 = vmatprep.subr.bf16.mxu0 0
        %1159 = vmatpush2.bf16.msra.mxu0 0
        %1160 = vmatprep.subr.bf16.mxu0 0
        %1161 = vmatpush2.bf16.msra.mxu0 0
        %1162 = vmatprep.mubr.bf16.mxu0 0
        %1163 = vmatmul.mubr.bf16.gmra.mxu0 %v1128
        %v1164 = vpop.f32.mrf.mxu0
        %v1165 = vadd.f32 0.0, %v1164
        %v1166 = vpop.f32.mrf.mxu0
        %v1167 = vpop.f32.mrf.mxu0
        %v1168 = vadd.f32 0.0, %v1167
        %v1169 = vpop.f32.mrf.mxu0
        %1170 = vdwg.mxu0
        %v1172 = vsel %vm1030, %v1120, 0
        %1174 = vmatprep.subr.bf16.mxu0 0
        %1175 = vmatpush1.bf16.msra.mxu0 0
        %1176 = vmatprep.subr.bf16.mxu0 0
        %1177 = vmatpush1.bf16.msra.mxu0 0
        %1178 = vmatprep.subr.bf16.mxu0 0
        %1179 = vmatpush1.bf16.msra.mxu0 0
        %1180 = vmatprep.subr.bf16.mxu0 0
        %1181 = vmatpush1.bf16.msra.mxu0 0
        %1182 = vmatprep.subr.bf16.mxu0 0
        %1183 = vmatpush1.bf16.msra.mxu0 0
        %1184 = vmatprep.subr.bf16.mxu0 0
        %1185 = vmatpush1.bf16.msra.mxu0 0
        %1186 = vmatprep.subr.bf16.mxu0 0
        %1187 = vmatpush1.bf16.msra.mxu0 0
        %1188 = vmatprep.subr.bf16.mxu0 0
        %1189 = vmatpush1.bf16.msra.mxu0 %v1124
        %1190 = vmatprep.subr.bf16.mxu0 0
        %1191 = vmatpush2.bf16.msra.mxu0 0
        %1192 = vmatprep.subr.bf16.mxu0 0
        %1193 = vmatpush2.bf16.msra.mxu0 0
        %1194 = vmatprep.subr.bf16.mxu0 0
        %1195 = vmatpush2.bf16.msra.mxu0 0
        %1196 = vmatprep.subr.bf16.mxu0 0
        %1197 = vmatpush2.bf16.msra.mxu0 0
        %1198 = vmatprep.subr.bf16.mxu0 0
        %1199 = vmatpush2.bf16.msra.mxu0 0
        %1200 = vmatprep.subr.bf16.mxu0 0
        %1201 = vmatpush2.bf16.msra.mxu0 0
        %1202 = vmatprep.subr.bf16.mxu0 0
        %1203 = vmatpush2.bf16.msra.mxu0 0
        %1204 = vmatprep.subr.bf16.mxu0 0
        %1205 = vmatpush2.bf16.msra.mxu0 0
        %1206 = vmatprep.mubr.bf16.mxu0 0
        %1207 = vmatmul.mubr.bf16.gmra.mxu0 %v1172
        %v1208 = vpop.f32.mrf.mxu0
        %v1209 = vadd.f32 0.0, %v1208
        %v1210 = vpop.f32.mrf.mxu0
        %v1211 = vpop.f32.mrf.mxu0
        %v1212 = vadd.f32 0.0, %v1211
        %v1213 = vpop.f32.mrf.mxu0
        %1214 = vdwg.mxu0
        %v1216 = vsel %vm1030, %v1121, 0
        %1218 = vmatprep.subr.bf16.mxu0 0
        %1219 = vmatpush1.bf16.msra.mxu0 0
        %1220 = vmatprep.subr.bf16.mxu0 0
        %1221 = vmatpush1.bf16.msra.mxu0 0
        %1222 = vmatprep.subr.bf16.mxu0 0
        %1223 = vmatpush1.bf16.msra.mxu0 0
        %1224 = vmatprep.subr.bf16.mxu0 0
        %1225 = vmatpush1.bf16.msra.mxu0 0
        %1226 = vmatprep.subr.bf16.mxu0 0
        %1227 = vmatpush1.bf16.msra.mxu0 0
        %1228 = vmatprep.subr.bf16.mxu0 0
        %1229 = vmatpush1.bf16.msra.mxu0 0
        %1230 = vmatprep.subr.bf16.mxu0 0
        %1231 = vmatpush1.bf16.msra.mxu0 0
        %1232 = vmatprep.subr.bf16.mxu0 0
        %1233 = vmatpush1.bf16.msra.mxu0 %v1125
        %1234 = vmatprep.subr.bf16.mxu0 0
        %1235 = vmatpush2.bf16.msra.mxu0 0
        %1236 = vmatprep.subr.bf16.mxu0 0
        %1237 = vmatpush2.bf16.msra.mxu0 0
        %1238 = vmatprep.subr.bf16.mxu0 0
        %1239 = vmatpush2.bf16.msra.mxu0 0
        %1240 = vmatprep.subr.bf16.mxu0 0
        %1241 = vmatpush2.bf16.msra.mxu0 0
        %1242 = vmatprep.subr.bf16.mxu0 0
        %1243 = vmatpush2.bf16.msra.mxu0 0
        %1244 = vmatprep.subr.bf16.mxu0 0
        %1245 = vmatpush2.bf16.msra.mxu0 0
        %1246 = vmatprep.subr.bf16.mxu0 0
        %1247 = vmatpush2.bf16.msra.mxu0 0
        %1248 = vmatprep.subr.bf16.mxu0 0
        %1249 = vmatpush2.bf16.msra.mxu0 0
        %1250 = vmatprep.mubr.bf16.mxu0 0
        %1251 = vmatmul.mubr.bf16.gmra.mxu0 %v1216
        %v1252 = vpop.f32.mrf.mxu0
        %v1253 = vadd.f32 0.0, %v1252
        %v1254 = vpop.f32.mrf.mxu0
        %v1255 = vpop.f32.mrf.mxu0
        %v1256 = vadd.f32 0.0, %v1255
        %v1257 = vpop.f32.mrf.mxu0
        %1258 = vdwg.mxu0
        %v1260 = vsel %vm1030, %v1122, 0
        %1262 = vmatprep.subr.bf16.mxu0 0
        %1263 = vmatpush1.bf16.msra.mxu0 0
        %1264 = vmatprep.subr.bf16.mxu0 0
        %1265 = vmatpush1.bf16.msra.mxu0 0
        %1266 = vmatprep.subr.bf16.mxu0 0
        %1267 = vmatpush1.bf16.msra.mxu0 0
        %1268 = vmatprep.subr.bf16.mxu0 0
        %1269 = vmatpush1.bf16.msra.mxu0 0
        %1270 = vmatprep.subr.bf16.mxu0 0
        %1271 = vmatpush1.bf16.msra.mxu0 0
        %1272 = vmatprep.subr.bf16.mxu0 0
        %1273 = vmatpush1.bf16.msra.mxu0 0
        %1274 = vmatprep.subr.bf16.mxu0 0
        %1275 = vmatpush1.bf16.msra.mxu0 0
        %1276 = vmatprep.subr.bf16.mxu0 0
        %1277 = vmatpush1.bf16.msra.mxu0 %v1126
        %1278 = vmatprep.subr.bf16.mxu0 0
        %1279 = vmatpush2.bf16.msra.mxu0 0
        %1280 = vmatprep.subr.bf16.mxu0 0
        %1281 = vmatpush2.bf16.msra.mxu0 0
        %1282 = vmatprep.subr.bf16.mxu0 0
        %1283 = vmatpush2.bf16.msra.mxu0 0
        %1284 = vmatprep.subr.bf16.mxu0 0
        %1285 = vmatpush2.bf16.msra.mxu0 0
        %1286 = vmatprep.subr.bf16.mxu0 0
        %1287 = vmatpush2.bf16.msra.mxu0 0
        %1288 = vmatprep.subr.bf16.mxu0 0
        %1289 = vmatpush2.bf16.msra.mxu0 0
        %1290 = vmatprep.subr.bf16.mxu0 0
        %1291 = vmatpush2.bf16.msra.mxu0 0
        %1292 = vmatprep.subr.bf16.mxu0 0
        %1293 = vmatpush2.bf16.msra.mxu0 0
        %1294 = vmatprep.mubr.bf16.mxu0 0
        %1295 = vmatmul.mubr.bf16.gmra.mxu0 %v1260
        %v1296 = vpop.f32.mrf.mxu0
        %v1297 = vadd.f32 0.0, %v1296
        %v1298 = vpop.f32.mrf.mxu0
        %v1299 = vpop.f32.mrf.mxu0
        %v1300 = vadd.f32 0.0, %v1299
        %v1301 = vpop.f32.mrf.mxu0
        %1302 = vdwg.mxu0
        %1305 = vrot.lane.b32.xlu0 %v1209, 32
        %v1306 = vpop.permute.xlu0 %1305
        %1307 = vrot.lane.b32.xlu0 %v1212, 32
        %v1308 = vpop.permute.xlu0 %1307
        %1313 = vrot.lane.b32.xlu0 %v1253, 64
        %v1314 = vpop.permute.xlu0 %1313
        %1315 = vrot.lane.b32.xlu0 %v1256, 64
        %v1316 = vpop.permute.xlu0 %1315
        %1321 = vrot.lane.b32.xlu0 %v1297, 96
        %v1322 = vpop.permute.xlu0 %1321
        %1323 = vrot.lane.b32.xlu0 %v1300, 96
        %v1324 = vpop.permute.xlu0 %1323
        %v1327 = vsel %vm814, %v1165, %v1306
        %v1328 = vsel %vm814, %v1168, %v1308
        %vm1329 = vcmask 523264
        %v1330 = vsel %vm1329, %v1327, %v1314
        %v1331 = vsel %vm1329, %v1328, %v1316
        %vm1332 = vcmask 785408
        %v1333 = vsel %vm1332, %v1330, %v1322
        %v1334 = vsel %vm1332, %v1331, %v1324
        %v1335 = vpack.c.bf16 %v1334, %v1333
        %v1337 = vlaneseq
        %v1338 = vshrl.u32 %v1337, 7
        %v1339 = vsub.s32 0, %v1338
        %v1340 = vrot.slane %v521, %v1339
        %v1358 = vunpack.c.l.b16 %v361
        %v1359 = vunpack.c.l.b16 %v362
        %v1360 = vunpack.c.l.b16 %v363
        %v1361 = vunpack.c.l.b16 %v364
        %v1362 = vunpack.c.l.b16 %v365
        %v1363 = vunpack.c.l.b16 %v366
        %v1364 = vunpack.c.l.b16 %v367
        %v1365 = vunpack.c.l.b16 %v368
        %v1366 = vunpack.c.l.b16 %v369
        %v1367 = vunpack.c.l.b16 %v370
        %v1368 = vunpack.c.l.b16 %v371
        %v1369 = vunpack.c.l.b16 %v372
        %v1370 = vunpack.c.l.b16 %v373
        %v1371 = vunpack.c.l.b16 %v374
        %v1372 = vunpack.c.l.b16 %v375
        %v1373 = vunpack.c.l.b16 %v376
        %v1374 = vpack.c.b16 %v1359, %v1358
        %v1375 = vpack.c.b16 %v1361, %v1360
        %v1376 = vpack.c.b16 %v1363, %v1362
        %v1377 = vpack.c.b16 %v1365, %v1364
        %v1378 = vpack.c.b16 %v1367, %v1366
        %v1379 = vpack.c.b16 %v1369, %v1368
        %v1380 = vpack.c.b16 %v1371, %v1370
        %v1381 = vpack.c.b16 %v1373, %v1372
        %1390 = vmatprep.subr.bf16.mxu0 0
        %1391 = vmatpush1.bf16.msra.mxu0 %v1381
        %1392 = vmatprep.subr.bf16.mxu0 0
        %1393 = vmatpush1.bf16.msra.mxu0 %v1380
        %1394 = vmatprep.subr.bf16.mxu0 0
        %1395 = vmatpush1.bf16.msra.mxu0 %v1379
        %1396 = vmatprep.subr.bf16.mxu0 0
        %1397 = vmatpush1.bf16.msra.mxu0 %v1378
        %1398 = vmatprep.subr.bf16.mxu0 0
        %1399 = vmatpush1.bf16.msra.mxu0 %v1377
        %1400 = vmatprep.subr.bf16.mxu0 0
        %1401 = vmatpush1.bf16.msra.mxu0 %v1376
        %1402 = vmatprep.subr.bf16.mxu0 0
        %1403 = vmatpush1.bf16.msra.mxu0 %v1375
        %1404 = vmatprep.subr.bf16.mxu0 0
        %1405 = vmatpush1.bf16.msra.mxu0 %v1374
        %1406 = vmatprep.subr.bf16.mxu0 0
        %1407 = vmatpush2.bf16.msra.mxu0 0
        %1408 = vmatprep.subr.bf16.mxu0 0
        %1409 = vmatpush2.bf16.msra.mxu0 0
        %1410 = vmatprep.subr.bf16.mxu0 0
        %1411 = vmatpush2.bf16.msra.mxu0 0
        %1412 = vmatprep.subr.bf16.mxu0 0
        %1413 = vmatpush2.bf16.msra.mxu0 0
        %1414 = vmatprep.subr.bf16.mxu0 0
        %1415 = vmatpush2.bf16.msra.mxu0 0
        %1416 = vmatprep.subr.bf16.mxu0 0
        %1417 = vmatpush2.bf16.msra.mxu0 0
        %1418 = vmatprep.subr.bf16.mxu0 0
        %1419 = vmatpush2.bf16.msra.mxu0 0
        %1420 = vmatprep.subr.bf16.mxu0 0
        %1421 = vmatpush2.bf16.msra.mxu0 0
        %1422 = vmatprep.mubr.bf16.mxu0 0
        %1423 = vmatmul.mubr.bf16.gmra.mxu0 %v1335
        %v1424 = vpop.f32.mrf.mxu0
        %v1425 = vadd.f32 %v1340, %v1424
        %v1426 = vpop.f32.mrf.mxu0
        %v1427 = vpop.f32.mrf.mxu0
        %v1428 = vadd.f32 %v1340, %v1427
        %v1429 = vpop.f32.mrf.mxu0
        %1430 = vdwg.mxu0
        %v1431 = vadd.f32 %v325, %v1425
        %v1432 = vadd.f32 %v326, %v1428
        %1433 = vadd.xlane.f32.xlu0 %v1431
        %v1434 = vpop.xlane.xlu0 %1433
        %1435 = vadd.xlane.f32.xlu0 %v1432
        %v1436 = vpop.xlane.xlu0 %1435
        %v1437 = vrcp.pop 128.0
        %v1438 = vmul.f32 %v1434, %v1437
        %v1439 = vmul.f32 %v1436, %v1437
        %v1440 = vsub.f32 %v1431, %v1438
        %v1441 = vsub.f32 %v1432, %v1439
        %v1442 = vmul.f32 %v1440, %v1440
        %v1443 = vmul.f32 %v1441, %v1441
        %1444 = vadd.xlane.f32.xlu0 %v1442
        %v1445 = vpop.xlane.xlu0 %1444
        %1446 = vadd.xlane.f32.xlu0 %v1443
        %v1447 = vpop.xlane.xlu0 %1446
        %v1448 = vmul.f32 %v1445, %v1437
        %v1449 = vmul.f32 %v1447, %v1437
        %v1450 = vadd.f32 %v1448, 1e-05
        %v1451 = vadd.f32 %v1449, 1e-05
        %v1452 = vrsqrt.pop %v1450
        %v1453 = vrsqrt.pop %v1451
        %v1454 = vmul.f32 %v1440, %v1452
        %v1455 = vmul.f32 %v1441, %v1453
        %v1457 = vlaneseq
        %v1458 = vshrl.u32 %v1457, 7
        %v1459 = vsub.s32 0, %v1458
        %v1460 = vrot.slane %v527, %v1459
        %v1462 = vmul.f32 %v1454, %v1460
        %v1463 = vmul.f32 %v1455, %v1460
        %v1465 = vlaneseq
        %v1466 = vshrl.u32 %v1465, 7
        %v1467 = vsub.s32 0, %v1466
        %v1468 = vrot.slane %v528, %v1467
        %v1470 = vadd.f32 %v1462, %v1468
        %v1471 = vadd.f32 %v1463, %v1468
        %v1472 = vpack.c.bf16 %v1471, %v1470
        %v1474 = vlaneseq
        %v1475 = vshrl.u32 %v1474, 7
        %v1476 = vsub.s32 0, %v1475
        %v1477 = vrot.slane %v522, %v1476
        %v1495 = vunpack.c.l.b16 %v377
        %v1496 = vunpack.c.l.b16 %v378
        %v1497 = vunpack.c.l.b16 %v379
        %v1498 = vunpack.c.l.b16 %v380
        %v1499 = vunpack.c.l.b16 %v381
        %v1500 = vunpack.c.l.b16 %v382
        %v1501 = vunpack.c.l.b16 %v383
        %v1502 = vunpack.c.l.b16 %v384
        %v1503 = vunpack.c.l.b16 %v385
        %v1504 = vunpack.c.l.b16 %v386
        %v1505 = vunpack.c.l.b16 %v387
        %v1506 = vunpack.c.l.b16 %v388
        %v1507 = vunpack.c.l.b16 %v389
        %v1508 = vunpack.c.l.b16 %v390
        %v1509 = vunpack.c.l.b16 %v391
        %v1510 = vunpack.c.l.b16 %v392
        %v1511 = vpack.c.b16 %v1496, %v1495
        %v1512 = vpack.c.b16 %v1498, %v1497
        %v1513 = vpack.c.b16 %v1500, %v1499
        %v1514 = vpack.c.b16 %v1502, %v1501
        %v1515 = vpack.c.b16 %v1504, %v1503
        %v1516 = vpack.c.b16 %v1506, %v1505
        %v1517 = vpack.c.b16 %v1508, %v1507
        %v1518 = vpack.c.b16 %v1510, %v1509
        %1527 = vmatprep.subr.bf16.mxu0 0
        %1528 = vmatpush1.bf16.msra.mxu0 %v1518
        %1529 = vmatprep.subr.bf16.mxu0 0
        %1530 = vmatpush1.bf16.msra.mxu0 %v1517
        %1531 = vmatprep.subr.bf16.mxu0 0
        %1532 = vmatpush1.bf16.msra.mxu0 %v1516
        %1533 = vmatprep.subr.bf16.mxu0 0
        %1534 = vmatpush1.bf16.msra.mxu0 %v1515
        %1535 = vmatprep.subr.bf16.mxu0 0
        %1536 = vmatpush1.bf16.msra.mxu0 %v1514
        %1537 = vmatprep.subr.bf16.mxu0 0
        %1538 = vmatpush1.bf16.msra.mxu0 %v1513
        %1539 = vmatprep.subr.bf16.mxu0 0
        %1540 = vmatpush1.bf16.msra.mxu0 %v1512
        %1541 = vmatprep.subr.bf16.mxu0 0
        %1542 = vmatpush1.bf16.msra.mxu0 %v1511
        %1543 = vmatprep.subr.bf16.mxu0 0
        %1544 = vmatpush2.bf16.msra.mxu0 0
        %1545 = vmatprep.subr.bf16.mxu0 0
        %1546 = vmatpush2.bf16.msra.mxu0 0
        %1547 = vmatprep.subr.bf16.mxu0 0
        %1548 = vmatpush2.bf16.msra.mxu0 0
        %1549 = vmatprep.subr.bf16.mxu0 0
        %1550 = vmatpush2.bf16.msra.mxu0 0
        %1551 = vmatprep.subr.bf16.mxu0 0
        %1552 = vmatpush2.bf16.msra.mxu0 0
        %1553 = vmatprep.subr.bf16.mxu0 0
        %1554 = vmatpush2.bf16.msra.mxu0 0
        %1555 = vmatprep.subr.bf16.mxu0 0
        %1556 = vmatpush2.bf16.msra.mxu0 0
        %1557 = vmatprep.subr.bf16.mxu0 0
        %1558 = vmatpush2.bf16.msra.mxu0 0
        %1559 = vmatprep.mubr.bf16.mxu0 0
        %1560 = vmatmul.mubr.bf16.gmra.mxu0 %v1472
        %v1561 = vpop.f32.mrf.mxu0
        %v1562 = vadd.f32 %v1477, %v1561
        %v1563 = vpop.f32.mrf.mxu0
        %v1564 = vpop.f32.mrf.mxu0
        %v1565 = vadd.f32 %v1477, %v1564
        %v1566 = vpop.f32.mrf.mxu0
        %1567 = vdwg.mxu0
        %v1568 = vpack.c.bf16 %v328, %v327
        %v1570 = vlaneseq
        %v1571 = vshrl.u32 %v1570, 7
        %v1572 = vsub.s32 0, %v1571
        %v1573 = vrot.slane %v523, %v1572
        %v1574 = vlaneseq
        %v1575 = vshrl.u32 %v1574, 7
        %v1576 = vsub.s32 1, %v1575
        %v1577 = vrot.slane %v523, %v1576
        %v1596 = vunpack.c.l.b16 %v393
        %v1597 = vunpack.c.h.b16 %v393
        %v1598 = vunpack.c.l.b16 %v394
        %v1599 = vunpack.c.h.b16 %v394
        %v1600 = vunpack.c.l.b16 %v395
        %v1601 = vunpack.c.h.b16 %v395
        %v1602 = vunpack.c.l.b16 %v396
        %v1603 = vunpack.c.h.b16 %v396
        %v1604 = vunpack.c.l.b16 %v397
        %v1605 = vunpack.c.h.b16 %v397
        %v1606 = vunpack.c.l.b16 %v398
        %v1607 = vunpack.c.h.b16 %v398
        %v1608 = vunpack.c.l.b16 %v399
        %v1609 = vunpack.c.h.b16 %v399
        %v1610 = vunpack.c.l.b16 %v400
        %v1611 = vunpack.c.h.b16 %v400
        %v1612 = vunpack.c.l.b16 %v401
        %v1613 = vunpack.c.h.b16 %v401
        %v1614 = vunpack.c.l.b16 %v402
        %v1615 = vunpack.c.h.b16 %v402
        %v1616 = vunpack.c.l.b16 %v403
        %v1617 = vunpack.c.h.b16 %v403
        %v1618 = vunpack.c.l.b16 %v404
        %v1619 = vunpack.c.h.b16 %v404
        %v1620 = vunpack.c.l.b16 %v405
        %v1621 = vunpack.c.h.b16 %v405
        %v1622 = vunpack.c.l.b16 %v406
        %v1623 = vunpack.c.h.b16 %v406
        %v1624 = vunpack.c.l.b16 %v407
        %v1625 = vunpack.c.h.b16 %v407
        %v1626 = vunpack.c.l.b16 %v408
        %v1627 = vunpack.c.h.b16 %v408
        %v1628 = vpack.c.b16 %v1598, %v1596
        %v1629 = vpack.c.b16 %v1599, %v1597
        %v1630 = vpack.c.b16 %v1602, %v1600
        %v1631 = vpack.c.b16 %v1603, %v1601
        %v1632 = vpack.c.b16 %v1606, %v1604
        %v1633 = vpack.c.b16 %v1607, %v1605
        %v1634 = vpack.c.b16 %v1610, %v1608
        %v1635 = vpack.c.b16 %v1611, %v1609
        %v1636 = vpack.c.b16 %v1614, %v1612
        %v1637 = vpack.c.b16 %v1615, %v1613
        %v1638 = vpack.c.b16 %v1618, %v1616
        %v1639 = vpack.c.b16 %v1619, %v1617
        %v1640 = vpack.c.b16 %v1622, %v1620
        %v1641 = vpack.c.b16 %v1623, %v1621
        %v1642 = vpack.c.b16 %v1626, %v1624
        %v1643 = vpack.c.b16 %v1627, %v1625
        %1660 = vmatprep.subr.bf16.mxu0 %v1643
        %1661 = vmatpush1.bf16.msra.mxu0 %v1642
        %1662 = vmatprep.subr.bf16.mxu0 %v1641
        %1663 = vmatpush1.bf16.msra.mxu0 %v1640
        %1664 = vmatprep.subr.bf16.mxu0 %v1639
        %1665 = vmatpush1.bf16.msra.mxu0 %v1638
        %1666 = vmatprep.subr.bf16.mxu0 %v1637
        %1667 = vmatpush1.bf16.msra.mxu0 %v1636
        %1668 = vmatprep.subr.bf16.mxu0 %v1635
        %1669 = vmatpush1.bf16.msra.mxu0 %v1634
        %1670 = vmatprep.subr.bf16.mxu0 %v1633
        %1671 = vmatpush1.bf16.msra.mxu0 %v1632
        %1672 = vmatprep.subr.bf16.mxu0 %v1631
        %1673 = vmatpush1.bf16.msra.mxu0 %v1630
        %1674 = vmatprep.subr.bf16.mxu0 %v1629
        %1675 = vmatpush1.bf16.msra.mxu0 %v1628
        %1676 = vmatprep.subr.bf16.mxu0 0
        %1677 = vmatpush2.bf16.msra.mxu0 0
        %1678 = vmatprep.subr.bf16.mxu0 0
        %1679 = vmatpush2.bf16.msra.mxu0 0
        %1680 = vmatprep.subr.bf16.mxu0 0
        %1681 = vmatpush2.bf16.msra.mxu0 0
        %1682 = vmatprep.subr.bf16.mxu0 0
        %1683 = vmatpush2.bf16.msra.mxu0 0
        %1684 = vmatprep.subr.bf16.mxu0 0
        %1685 = vmatpush2.bf16.msra.mxu0 0
        %1686 = vmatprep.subr.bf16.mxu0 0
        %1687 = vmatpush2.bf16.msra.mxu0 0
        %1688 = vmatprep.subr.bf16.mxu0 0
        %1689 = vmatpush2.bf16.msra.mxu0 0
        %1690 = vmatprep.subr.bf16.mxu0 0
        %1691 = vmatpush2.bf16.msra.mxu0 0
        %1692 = vmatprep.mubr.bf16.mxu0 0
        %1693 = vmatmul.mubr.bf16.gmra.mxu0 %v1568
        %v1694 = vpop.f32.mrf.mxu0
        %v1695 = vadd.f32 %v1573, %v1694
        %v1696 = vpop.f32.mrf.mxu0
        %v1697 = vadd.f32 %v1577, %v1696
        %v1698 = vpop.f32.mrf.mxu0
        %v1699 = vadd.f32 %v1573, %v1698
        %v1700 = vpop.f32.mrf.mxu0
        %v1701 = vadd.f32 %v1577, %v1700
        %1702 = vdwg.mxu0
        %1705 = vrot.lane.b32.xlu0 %v1562, 96
        %v1706 = vpop.permute.xlu0 %1705
        %1707 = vrot.lane.b32.xlu0 %v1565, 96
        %v1708 = vpop.permute.xlu0 %1707
        %1711 = vrot.lane.b32.xlu0 %v1562, 64
        %v1712 = vpop.permute.xlu0 %1711
        %1713 = vrot.lane.b32.xlu0 %v1565, 64
        %v1714 = vpop.permute.xlu0 %1713
        %1717 = vrot.lane.b32.xlu0 %v1562, 32
        %v1718 = vpop.permute.xlu0 %1717
        %1719 = vrot.lane.b32.xlu0 %v1565, 32
        %v1720 = vpop.permute.xlu0 %1719
        %1725 = vrot.lane.b32.xlu0 %v1695, 96
        %v1726 = vpop.permute.xlu0 %1725
        %1727 = vrot.lane.b32.xlu0 %v1699, 96
        %v1728 = vpop.permute.xlu0 %1727
        %1731 = vrot.lane.b32.xlu0 %v1695, 64
        %v1732 = vpop.permute.xlu0 %1731
        %1733 = vrot.lane.b32.xlu0 %v1699, 64
        %v1734 = vpop.permute.xlu0 %1733
        %1737 = vrot.lane.b32.xlu0 %v1695, 32
        %v1738 = vpop.permute.xlu0 %1737
        %1739 = vrot.lane.b32.xlu0 %v1699, 32
        %v1740 = vpop.permute.xlu0 %1739
        %1745 = vrot.lane.b32.xlu0 %v1697, 96
        %v1746 = vpop.permute.xlu0 %1745
        %1747 = vrot.lane.b32.xlu0 %v1701, 96
        %v1748 = vpop.permute.xlu0 %1747
        %1751 = vrot.lane.b32.xlu0 %v1697, 64
        %v1752 = vpop.permute.xlu0 %1751
        %1753 = vrot.lane.b32.xlu0 %v1701, 64
        %v1754 = vpop.permute.xlu0 %1753
        %1757 = vrot.lane.b32.xlu0 %v1697, 32
        %v1758 = vpop.permute.xlu0 %1757
        %1759 = vrot.lane.b32.xlu0 %v1701, 32
        %v1760 = vpop.permute.xlu0 %1759
        %v1763 = vpack.c.bf16 %v1565, %v1562
        %v1764 = vpack.c.bf16 %v1708, %v1706
        %v1765 = vpack.c.bf16 %v1714, %v1712
        %v1766 = vpack.c.bf16 %v1720, %v1718
        %v1767 = vpack.c.bf16 %v1699, %v1695
        %v1768 = vpack.c.bf16 %v1728, %v1726
        %v1769 = vpack.c.bf16 %v1734, %v1732
        %v1770 = vpack.c.bf16 %v1740, %v1738
        %v1772 = vsel %vm814, %v1763, 0
        %v1775 = vsel %vm814, %v1767, 0
        %1777 = vmatprep.subr.bf16.mxu0 0
        %1778 = vmatpush1.bf16.xpose.msra.mxu0 0
        %1779 = vmatprep.subr.bf16.mxu0 0
        %1780 = vmatpush1.bf16.xpose.msra.mxu0 0
        %1781 = vmatprep.subr.bf16.mxu0 0
        %1782 = vmatpush1.bf16.xpose.msra.mxu0 0
        %1783 = vmatprep.subr.bf16.mxu0 0
        %1784 = vmatpush1.bf16.xpose.msra.mxu0 0
        %1785 = vmatprep.subr.bf16.mxu0 0
        %1786 = vmatpush1.bf16.xpose.msra.mxu0 0
        %1787 = vmatprep.subr.bf16.mxu0 0
        %1788 = vmatpush1.bf16.xpose.msra.mxu0 0
        %1789 = vmatprep.subr.bf16.mxu0 0
        %1790 = vmatpush1.bf16.xpose.msra.mxu0 0
        %1791 = vmatprep.subr.bf16.mxu0 0
        %1792 = vmatpush1.bf16.xpose.msra.mxu0 %v1775
        %1793 = vmatprep.subr.bf16.mxu0 0
        %1794 = vmatpush2.bf16.xpose.msra.mxu0 0
        %1795 = vmatprep.subr.bf16.mxu0 0
        %1796 = vmatpush2.bf16.xpose.msra.mxu0 0
        %1797 = vmatprep.subr.bf16.mxu0 0
        %1798 = vmatpush2.bf16.xpose.msra.mxu0 0
        %1799 = vmatprep.subr.bf16.mxu0 0
        %1800 = vmatpush2.bf16.xpose.msra.mxu0 0
        %1801 = vmatprep.subr.bf16.mxu0 0
        %1802 = vmatpush2.bf16.xpose.msra.mxu0 0
        %1803 = vmatprep.subr.bf16.mxu0 0
        %1804 = vmatpush2.bf16.xpose.msra.mxu0 0
        %1805 = vmatprep.subr.bf16.mxu0 0
        %1806 = vmatpush2.bf16.xpose.msra.mxu0 0
        %1807 = vmatprep.subr.bf16.mxu0 0
        %1808 = vmatpush2.bf16.xpose.msra.mxu0 0
        %1809 = vmatprep.mubr.bf16.mxu0 0
        %1810 = vmatmul.mubr.bf16.gmra.mxu0 %v1772
        %v1811 = vpop.f32.mrf.mxu0
        %v1812 = vadd.f32 0.0, %v1811
        %v1813 = vpop.f32.mrf.mxu0
        %v1814 = vpop.f32.mrf.mxu0
        %v1815 = vadd.f32 0.0, %v1814
        %v1816 = vpop.f32.mrf.mxu0
        %1817 = vdwg.mxu0
        %v1819 = vsel %vm814, %v1764, 0
        %v1822 = vsel %vm814, %v1768, 0
        %1824 = vmatprep.subr.bf16.mxu0 0
        %1825 = vmatpush1.bf16.xpose.msra.mxu0 0
        %1826 = vmatprep.subr.bf16.mxu0 0
        %1827 = vmatpush1.bf16.xpose.msra.mxu0 0
        %1828 = vmatprep.subr.bf16.mxu0 0
        %1829 = vmatpush1.bf16.xpose.msra.mxu0 0
        %1830 = vmatprep.subr.bf16.mxu0 0
        %1831 = vmatpush1.bf16.xpose.msra.mxu0 0
        %1832 = vmatprep.subr.bf16.mxu0 0
        %1833 = vmatpush1.bf16.xpose.msra.mxu0 0
        %1834 = vmatprep.subr.bf16.mxu0 0
        %1835 = vmatpush1.bf16.xpose.msra.mxu0 0
        %1836 = vmatprep.subr.bf16.mxu0 0
        %1837 = vmatpush1.bf16.xpose.msra.mxu0 0
        %1838 = vmatprep.subr.bf16.mxu0 0
        %1839 = vmatpush1.bf16.xpose.msra.mxu0 %v1822
        %1840 = vmatprep.subr.bf16.mxu0 0
        %1841 = vmatpush2.bf16.xpose.msra.mxu0 0
        %1842 = vmatprep.subr.bf16.mxu0 0
        %1843 = vmatpush2.bf16.xpose.msra.mxu0 0
        %1844 = vmatprep.subr.bf16.mxu0 0
        %1845 = vmatpush2.bf16.xpose.msra.mxu0 0
        %1846 = vmatprep.subr.bf16.mxu0 0
        %1847 = vmatpush2.bf16.xpose.msra.mxu0 0
        %1848 = vmatprep.subr.bf16.mxu0 0
        %1849 = vmatpush2.bf16.xpose.msra.mxu0 0
        %1850 = vmatprep.subr.bf16.mxu0 0
        %1851 = vmatpush2.bf16.xpose.msra.mxu0 0
        %1852 = vmatprep.subr.bf16.mxu0 0
        %1853 = vmatpush2.bf16.xpose.msra.mxu0 0
        %1854 = vmatprep.subr.bf16.mxu0 0
        %1855 = vmatpush2.bf16.xpose.msra.mxu0 0
        %1856 = vmatprep.mubr.bf16.mxu0 0
        %1857 = vmatmul.mubr.bf16.gmra.mxu0 %v1819
        %v1858 = vpop.f32.mrf.mxu0
        %v1859 = vadd.f32 0.0, %v1858
        %v1860 = vpop.f32.mrf.mxu0
        %v1861 = vpop.f32.mrf.mxu0
        %v1862 = vadd.f32 0.0, %v1861
        %v1863 = vpop.f32.mrf.mxu0
        %1864 = vdwg.mxu0
        %v1866 = vsel %vm814, %v1765, 0
        %v1869 = vsel %vm814, %v1769, 0
        %1871 = vmatprep.subr.bf16.mxu0 0
        %1872 = vmatpush1.bf16.xpose.msra.mxu0 0
        %1873 = vmatprep.subr.bf16.mxu0 0
        %1874 = vmatpush1.bf16.xpose.msra.mxu0 0
        %1875 = vmatprep.subr.bf16.mxu0 0
        %1876 = vmatpush1.bf16.xpose.msra.mxu0 0
        %1877 = vmatprep.subr.bf16.mxu0 0
        %1878 = vmatpush1.bf16.xpose.msra.mxu0 0
        %1879 = vmatprep.subr.bf16.mxu0 0
        %1880 = vmatpush1.bf16.xpose.msra.mxu0 0
        %1881 = vmatprep.subr.bf16.mxu0 0
        %1882 = vmatpush1.bf16.xpose.msra.mxu0 0
        %1883 = vmatprep.subr.bf16.mxu0 0
        %1884 = vmatpush1.bf16.xpose.msra.mxu0 0
        %1885 = vmatprep.subr.bf16.mxu0 0
        %1886 = vmatpush1.bf16.xpose.msra.mxu0 %v1869
        %1887 = vmatprep.subr.bf16.mxu0 0
        %1888 = vmatpush2.bf16.xpose.msra.mxu0 0
        %1889 = vmatprep.subr.bf16.mxu0 0
        %1890 = vmatpush2.bf16.xpose.msra.mxu0 0
        %1891 = vmatprep.subr.bf16.mxu0 0
        %1892 = vmatpush2.bf16.xpose.msra.mxu0 0
        %1893 = vmatprep.subr.bf16.mxu0 0
        %1894 = vmatpush2.bf16.xpose.msra.mxu0 0
        %1895 = vmatprep.subr.bf16.mxu0 0
        %1896 = vmatpush2.bf16.xpose.msra.mxu0 0
        %1897 = vmatprep.subr.bf16.mxu0 0
        %1898 = vmatpush2.bf16.xpose.msra.mxu0 0
        %1899 = vmatprep.subr.bf16.mxu0 0
        %1900 = vmatpush2.bf16.xpose.msra.mxu0 0
        %1901 = vmatprep.subr.bf16.mxu0 0
        %1902 = vmatpush2.bf16.xpose.msra.mxu0 0
        %1903 = vmatprep.mubr.bf16.mxu0 0
        %1904 = vmatmul.mubr.bf16.gmra.mxu0 %v1866
        %v1905 = vpop.f32.mrf.mxu0
        %v1906 = vadd.f32 0.0, %v1905
        %v1907 = vpop.f32.mrf.mxu0
        %v1908 = vpop.f32.mrf.mxu0
        %v1909 = vadd.f32 0.0, %v1908
        %v1910 = vpop.f32.mrf.mxu0
        %1911 = vdwg.mxu0
        %v1913 = vsel %vm814, %v1766, 0
        %v1916 = vsel %vm814, %v1770, 0
        %1918 = vmatprep.subr.bf16.mxu0 0
        %1919 = vmatpush1.bf16.xpose.msra.mxu0 0
        %1920 = vmatprep.subr.bf16.mxu0 0
        %1921 = vmatpush1.bf16.xpose.msra.mxu0 0
        %1922 = vmatprep.subr.bf16.mxu0 0
        %1923 = vmatpush1.bf16.xpose.msra.mxu0 0
        %1924 = vmatprep.subr.bf16.mxu0 0
        %1925 = vmatpush1.bf16.xpose.msra.mxu0 0
        %1926 = vmatprep.subr.bf16.mxu0 0
        %1927 = vmatpush1.bf16.xpose.msra.mxu0 0
        %1928 = vmatprep.subr.bf16.mxu0 0
        %1929 = vmatpush1.bf16.xpose.msra.mxu0 0
        %1930 = vmatprep.subr.bf16.mxu0 0
        %1931 = vmatpush1.bf16.xpose.msra.mxu0 0
        %1932 = vmatprep.subr.bf16.mxu0 0
        %1933 = vmatpush1.bf16.xpose.msra.mxu0 %v1916
        %1934 = vmatprep.subr.bf16.mxu0 0
        %1935 = vmatpush2.bf16.xpose.msra.mxu0 0
        %1936 = vmatprep.subr.bf16.mxu0 0
        %1937 = vmatpush2.bf16.xpose.msra.mxu0 0
        %1938 = vmatprep.subr.bf16.mxu0 0
        %1939 = vmatpush2.bf16.xpose.msra.mxu0 0
        %1940 = vmatprep.subr.bf16.mxu0 0
        %1941 = vmatpush2.bf16.xpose.msra.mxu0 0
        %1942 = vmatprep.subr.bf16.mxu0 0
        %1943 = vmatpush2.bf16.xpose.msra.mxu0 0
        %1944 = vmatprep.subr.bf16.mxu0 0
        %1945 = vmatpush2.bf16.xpose.msra.mxu0 0
        %1946 = vmatprep.subr.bf16.mxu0 0
        %1947 = vmatpush2.bf16.xpose.msra.mxu0 0
        %1948 = vmatprep.subr.bf16.mxu0 0
        %1949 = vmatpush2.bf16.xpose.msra.mxu0 0
        %1950 = vmatprep.mubr.bf16.mxu0 0
        %1951 = vmatmul.mubr.bf16.gmra.mxu0 %v1913
        %v1952 = vpop.f32.mrf.mxu0
        %v1953 = vadd.f32 0.0, %v1952
        %v1954 = vpop.f32.mrf.mxu0
        %v1955 = vpop.f32.mrf.mxu0
        %v1956 = vadd.f32 0.0, %v1955
        %v1957 = vpop.f32.mrf.mxu0
        %1958 = vdwg.mxu0
        %v1959 = vmul.f32 %v1812, 0.17677669
        %v1960 = vmul.f32 %v1815, 0.17677669
        %v1961 = vmul.f32 %v1859, 0.17677669
        %v1962 = vmul.f32 %v1862, 0.17677669
        %v1963 = vmul.f32 %v1906, 0.17677669
        %v1964 = vmul.f32 %v1909, 0.17677669
        %v1965 = vmul.f32 %v1953, 0.17677669
        %v1966 = vmul.f32 %v1956, 0.17677669
        %v1967 = vsel %vm1030, %v1959, -inf
        %1968 = vmax.xlane.f32.xlu0 %v1967
        %v1969 = vpop.xlane.xlu0 %1968
        %v1970 = vsel %vm1030, %v1960, -inf
        %1971 = vmax.xlane.f32.xlu0 %v1970
        %v1972 = vpop.xlane.xlu0 %1971
        %v1973 = vsel %vm1030, %v1961, -inf
        %1974 = vmax.xlane.f32.xlu0 %v1973
        %v1975 = vpop.xlane.xlu0 %1974
        %v1976 = vsel %vm1030, %v1962, -inf
        %1977 = vmax.xlane.f32.xlu0 %v1976
        %v1978 = vpop.xlane.xlu0 %1977
        %v1979 = vsel %vm1030, %v1963, -inf
        %1980 = vmax.xlane.f32.xlu0 %v1979
        %v1981 = vpop.xlane.xlu0 %1980
        %v1982 = vsel %vm1030, %v1964, -inf
        %1983 = vmax.xlane.f32.xlu0 %v1982
        %v1984 = vpop.xlane.xlu0 %1983
        %v1985 = vsel %vm1030, %v1965, -inf
        %1986 = vmax.xlane.f32.xlu0 %v1985
        %v1987 = vpop.xlane.xlu0 %1986
        %v1988 = vsel %vm1030, %v1966, -inf
        %1989 = vmax.xlane.f32.xlu0 %v1988
        %v1990 = vpop.xlane.xlu0 %1989
        %v1991 = vsub.f32 %v1959, %v1969
        %v1992 = vsub.f32 %v1960, %v1972
        %v1993 = vsub.f32 %v1961, %v1975
        %v1994 = vsub.f32 %v1962, %v1978
        %v1995 = vsub.f32 %v1963, %v1981
        %v1996 = vsub.f32 %v1964, %v1984
        %v1997 = vsub.f32 %v1965, %v1987
        %v1998 = vsub.f32 %v1966, %v1990
        %v1999 = vmul.f32 %v1991, 1.442695
        %v2000 = vpow.pop %v1999
        %v2001 = vmul.f32 %v1992, 1.442695
        %v2002 = vpow.pop %v2001
        %v2003 = vmul.f32 %v1993, 1.442695
        %v2004 = vpow.pop %v2003
        %v2005 = vmul.f32 %v1994, 1.442695
        %v2006 = vpow.pop %v2005
        %v2007 = vmul.f32 %v1995, 1.442695
        %v2008 = vpow.pop %v2007
        %v2009 = vmul.f32 %v1996, 1.442695
        %v2010 = vpow.pop %v2009
        %v2011 = vmul.f32 %v1997, 1.442695
        %v2012 = vpow.pop %v2011
        %v2013 = vmul.f32 %v1998, 1.442695
        %v2014 = vpow.pop %v2013
        %v2015 = vsel %vm1030, %v2000, 0.0
        %2016 = vadd.xlane.f32.xlu0 %v2015
        %v2017 = vpop.xlane.xlu0 %2016
        %v2018 = vsel %vm1030, %v2002, 0.0
        %2019 = vadd.xlane.f32.xlu0 %v2018
        %v2020 = vpop.xlane.xlu0 %2019
        %v2021 = vsel %vm1030, %v2004, 0.0
        %2022 = vadd.xlane.f32.xlu0 %v2021
        %v2023 = vpop.xlane.xlu0 %2022
        %v2024 = vsel %vm1030, %v2006, 0.0
        %2025 = vadd.xlane.f32.xlu0 %v2024
        %v2026 = vpop.xlane.xlu0 %2025
        %v2027 = vsel %vm1030, %v2008, 0.0
        %2028 = vadd.xlane.f32.xlu0 %v2027
        %v2029 = vpop.xlane.xlu0 %2028
        %v2030 = vsel %vm1030, %v2010, 0.0
        %2031 = vadd.xlane.f32.xlu0 %v2030
        %v2032 = vpop.xlane.xlu0 %2031
        %v2033 = vsel %vm1030, %v2012, 0.0
        %2034 = vadd.xlane.f32.xlu0 %v2033
        %v2035 = vpop.xlane.xlu0 %2034
        %v2036 = vsel %vm1030, %v2014, 0.0
        %2037 = vadd.xlane.f32.xlu0 %v2036
        %v2038 = vpop.xlane.xlu0 %2037
        %v2039 = vrcp.pop %v2017
        %v2040 = vrcp.pop %v2020
        %v2041 = vrcp.pop %v2023
        %v2042 = vrcp.pop %v2026
        %v2043 = vrcp.pop %v2029
        %v2044 = vrcp.pop %v2032
        %v2045 = vrcp.pop %v2035
        %v2046 = vrcp.pop %v2038
        %v2047 = vmul.f32 %v2000, %v2039
        %v2048 = vmul.f32 %v2002, %v2040
        %v2049 = vmul.f32 %v2004, %v2041
        %v2050 = vmul.f32 %v2006, %v2042
        %v2051 = vmul.f32 %v2008, %v2043
        %v2052 = vmul.f32 %v2010, %v2044
        %v2053 = vmul.f32 %v2012, %v2045
        %v2054 = vmul.f32 %v2014, %v2046
        %v2055 = vpack.c.bf16 %v2048, %v2047
        %v2056 = vpack.c.bf16 %v2050, %v2049
        %v2057 = vpack.c.bf16 %v2052, %v2051
        %v2058 = vpack.c.bf16 %v2054, %v2053
        %v2059 = vpack.c.bf16 %v1701, %v1697
        %v2060 = vpack.c.bf16 %v1748, %v1746
        %v2061 = vpack.c.bf16 %v1754, %v1752
        %v2062 = vpack.c.bf16 %v1760, %v1758
        %v2064 = vsel %vm1030, %v2055, 0
        %2066 = vmatprep.subr.bf16.mxu0 0
        %2067 = vmatpush1.bf16.msra.mxu0 0
        %2068 = vmatprep.subr.bf16.mxu0 0
        %2069 = vmatpush1.bf16.msra.mxu0 0
        %2070 = vmatprep.subr.bf16.mxu0 0
        %2071 = vmatpush1.bf16.msra.mxu0 0
        %2072 = vmatprep.subr.bf16.mxu0 0
        %2073 = vmatpush1.bf16.msra.mxu0 0
        %2074 = vmatprep.subr.bf16.mxu0 0
        %2075 = vmatpush1.bf16.msra.mxu0 0
        %2076 = vmatprep.subr.bf16.mxu0 0
        %2077 = vmatpush1.bf16.msra.mxu0 0
        %2078 = vmatprep.subr.bf16.mxu0 0
        %2079 = vmatpush1.bf16.msra.mxu0 0
        %2080 = vmatprep.subr.bf16.mxu0 0
        %2081 = vmatpush1.bf16.msra.mxu0 %v2059
        %2082 = vmatprep.subr.bf16.mxu0 0
        %2083 = vmatpush2.bf16.msra.mxu0 0
        %2084 = vmatprep.subr.bf16.mxu0 0
        %2085 = vmatpush2.bf16.msra.mxu0 0
        %2086 = vmatprep.subr.bf16.mxu0 0
        %2087 = vmatpush2.bf16.msra.mxu0 0
        %2088 = vmatprep.subr.bf16.mxu0 0
        %2089 = vmatpush2.bf16.msra.mxu0 0
        %2090 = vmatprep.subr.bf16.mxu0 0
        %2091 = vmatpush2.bf16.msra.mxu0 0
        %2092 = vmatprep.subr.bf16.mxu0 0
        %2093 = vmatpush2.bf16.msra.mxu0 0
        %2094 = vmatprep.subr.bf16.mxu0 0
        %2095 = vmatpush2.bf16.msra.mxu0 0
        %2096 = vmatprep.subr.bf16.mxu0 0
        %2097 = vmatpush2.bf16.msra.mxu0 0
        %2098 = vmatprep.mubr.bf16.mxu0 0
        %2099 = vmatmul.mubr.bf16.gmra.mxu0 %v2064
        %v2100 = vpop.f32.mrf.mxu0
        %v2101 = vadd.f32 0.0, %v2100
        %v2102 = vpop.f32.mrf.mxu0
        %v2103 = vpop.f32.mrf.mxu0
        %v2104 = vadd.f32 0.0, %v2103
        %v2105 = vpop.f32.mrf.mxu0
        %2106 = vdwg.mxu0
        %v2108 = vsel %vm1030, %v2056, 0
        %2110 = vmatprep.subr.bf16.mxu0 0
        %2111 = vmatpush1.bf16.msra.mxu0 0
        %2112 = vmatprep.subr.bf16.mxu0 0
        %2113 = vmatpush1.bf16.msra.mxu0 0
        %2114 = vmatprep.subr.bf16.mxu0 0
        %2115 = vmatpush1.bf16.msra.mxu0 0
        %2116 = vmatprep.subr.bf16.mxu0 0
        %2117 = vmatpush1.bf16.msra.mxu0 0
        %2118 = vmatprep.subr.bf16.mxu0 0
        %2119 = vmatpush1.bf16.msra.mxu0 0
        %2120 = vmatprep.subr.bf16.mxu0 0
        %2121 = vmatpush1.bf16.msra.mxu0 0
        %2122 = vmatprep.subr.bf16.mxu0 0
        %2123 = vmatpush1.bf16.msra.mxu0 0
        %2124 = vmatprep.subr.bf16.mxu0 0
        %2125 = vmatpush1.bf16.msra.mxu0 %v2060
        %2126 = vmatprep.subr.bf16.mxu0 0
        %2127 = vmatpush2.bf16.msra.mxu0 0
        %2128 = vmatprep.subr.bf16.mxu0 0
        %2129 = vmatpush2.bf16.msra.mxu0 0
        %2130 = vmatprep.subr.bf16.mxu0 0
        %2131 = vmatpush2.bf16.msra.mxu0 0
        %2132 = vmatprep.subr.bf16.mxu0 0
        %2133 = vmatpush2.bf16.msra.mxu0 0
        %2134 = vmatprep.subr.bf16.mxu0 0
        %2135 = vmatpush2.bf16.msra.mxu0 0
        %2136 = vmatprep.subr.bf16.mxu0 0
        %2137 = vmatpush2.bf16.msra.mxu0 0
        %2138 = vmatprep.subr.bf16.mxu0 0
        %2139 = vmatpush2.bf16.msra.mxu0 0
        %2140 = vmatprep.subr.bf16.mxu0 0
        %2141 = vmatpush2.bf16.msra.mxu0 0
        %2142 = vmatprep.mubr.bf16.mxu0 0
        %2143 = vmatmul.mubr.bf16.gmra.mxu0 %v2108
        %v2144 = vpop.f32.mrf.mxu0
        %v2145 = vadd.f32 0.0, %v2144
        %v2146 = vpop.f32.mrf.mxu0
        %v2147 = vpop.f32.mrf.mxu0
        %v2148 = vadd.f32 0.0, %v2147
        %v2149 = vpop.f32.mrf.mxu0
        %2150 = vdwg.mxu0
        %v2152 = vsel %vm1030, %v2057, 0
        %2154 = vmatprep.subr.bf16.mxu0 0
        %2155 = vmatpush1.bf16.msra.mxu0 0
        %2156 = vmatprep.subr.bf16.mxu0 0
        %2157 = vmatpush1.bf16.msra.mxu0 0
        %2158 = vmatprep.subr.bf16.mxu0 0
        %2159 = vmatpush1.bf16.msra.mxu0 0
        %2160 = vmatprep.subr.bf16.mxu0 0
        %2161 = vmatpush1.bf16.msra.mxu0 0
        %2162 = vmatprep.subr.bf16.mxu0 0
        %2163 = vmatpush1.bf16.msra.mxu0 0
        %2164 = vmatprep.subr.bf16.mxu0 0
        %2165 = vmatpush1.bf16.msra.mxu0 0
        %2166 = vmatprep.subr.bf16.mxu0 0
        %2167 = vmatpush1.bf16.msra.mxu0 0
        %2168 = vmatprep.subr.bf16.mxu0 0
        %2169 = vmatpush1.bf16.msra.mxu0 %v2061
        %2170 = vmatprep.subr.bf16.mxu0 0
        %2171 = vmatpush2.bf16.msra.mxu0 0
        %2172 = vmatprep.subr.bf16.mxu0 0
        %2173 = vmatpush2.bf16.msra.mxu0 0
        %2174 = vmatprep.subr.bf16.mxu0 0
        %2175 = vmatpush2.bf16.msra.mxu0 0
        %2176 = vmatprep.subr.bf16.mxu0 0
        %2177 = vmatpush2.bf16.msra.mxu0 0
        %2178 = vmatprep.subr.bf16.mxu0 0
        %2179 = vmatpush2.bf16.msra.mxu0 0
        %2180 = vmatprep.subr.bf16.mxu0 0
        %2181 = vmatpush2.bf16.msra.mxu0 0
        %2182 = vmatprep.subr.bf16.mxu0 0
        %2183 = vmatpush2.bf16.msra.mxu0 0
        %2184 = vmatprep.subr.bf16.mxu0 0
        %2185 = vmatpush2.bf16.msra.mxu0 0
        %2186 = vmatprep.mubr.bf16.mxu0 0
        %2187 = vmatmul.mubr.bf16.gmra.mxu0 %v2152
        %v2188 = vpop.f32.mrf.mxu0
        %v2189 = vadd.f32 0.0, %v2188
        %v2190 = vpop.f32.mrf.mxu0
        %v2191 = vpop.f32.mrf.mxu0
        %v2192 = vadd.f32 0.0, %v2191
        %v2193 = vpop.f32.mrf.mxu0
        %2194 = vdwg.mxu0
        %v2196 = vsel %vm1030, %v2058, 0
        %2198 = vmatprep.subr.bf16.mxu0 0
        %2199 = vmatpush1.bf16.msra.mxu0 0
        %2200 = vmatprep.subr.bf16.mxu0 0
        %2201 = vmatpush1.bf16.msra.mxu0 0
        %2202 = vmatprep.subr.bf16.mxu0 0
        %2203 = vmatpush1.bf16.msra.mxu0 0
        %2204 = vmatprep.subr.bf16.mxu0 0
        %2205 = vmatpush1.bf16.msra.mxu0 0
        %2206 = vmatprep.subr.bf16.mxu0 0
        %2207 = vmatpush1.bf16.msra.mxu0 0
        %2208 = vmatprep.subr.bf16.mxu0 0
        %2209 = vmatpush1.bf16.msra.mxu0 0
        %2210 = vmatprep.subr.bf16.mxu0 0
        %2211 = vmatpush1.bf16.msra.mxu0 0
        %2212 = vmatprep.subr.bf16.mxu0 0
        %2213 = vmatpush1.bf16.msra.mxu0 %v2062
        %2214 = vmatprep.subr.bf16.mxu0 0
        %2215 = vmatpush2.bf16.msra.mxu0 0
        %2216 = vmatprep.subr.bf16.mxu0 0
        %2217 = vmatpush2.bf16.msra.mxu0 0
        %2218 = vmatprep.subr.bf16.mxu0 0
        %2219 = vmatpush2.bf16.msra.mxu0 0
        %2220 = vmatprep.subr.bf16.mxu0 0
        %2221 = vmatpush2.bf16.msra.mxu0 0
        %2222 = vmatprep.subr.bf16.mxu0 0
        %2223 = vmatpush2.bf16.msra.mxu0 0
        %2224 = vmatprep.subr.bf16.mxu0 0
        %2225 = vmatpush2.bf16.msra.mxu0 0
        %2226 = vmatprep.subr.bf16.mxu0 0
        %2227 = vmatpush2.bf16.msra.mxu0 0
        %2228 = vmatprep.subr.bf16.mxu0 0
        %2229 = vmatpush2.bf16.msra.mxu0 0
        %2230 = vmatprep.mubr.bf16.mxu0 0
        %2231 = vmatmul.mubr.bf16.gmra.mxu0 %v2196
        %v2232 = vpop.f32.mrf.mxu0
        %v2233 = vadd.f32 0.0, %v2232
        %v2234 = vpop.f32.mrf.mxu0
        %v2235 = vpop.f32.mrf.mxu0
        %v2236 = vadd.f32 0.0, %v2235
        %v2237 = vpop.f32.mrf.mxu0
        %2238 = vdwg.mxu0
        %2241 = vrot.lane.b32.xlu0 %v2145, 32
        %v2242 = vpop.permute.xlu0 %2241
        %2243 = vrot.lane.b32.xlu0 %v2148, 32
        %v2244 = vpop.permute.xlu0 %2243
        %2249 = vrot.lane.b32.xlu0 %v2189, 64
        %v2250 = vpop.permute.xlu0 %2249
        %2251 = vrot.lane.b32.xlu0 %v2192, 64
        %v2252 = vpop.permute.xlu0 %2251
        %2257 = vrot.lane.b32.xlu0 %v2233, 96
        %v2258 = vpop.permute.xlu0 %2257
        %2259 = vrot.lane.b32.xlu0 %v2236, 96
        %v2260 = vpop.permute.xlu0 %2259
        %v2263 = vsel %vm814, %v2101, %v2242
        %v2264 = vsel %vm814, %v2104, %v2244
        %v2265 = vsel %vm1329, %v2263, %v2250
        %v2266 = vsel %vm1329, %v2264, %v2252
        %v2267 = vsel %vm1332, %v2265, %v2258
        %v2268 = vsel %vm1332, %v2266, %v2260
        %v2269 = vpack.c.bf16 %v2268, %v2267
        %v2271 = vlaneseq
        %v2272 = vshrl.u32 %v2271, 7
        %v2273 = vsub.s32 0, %v2272
        %v2274 = vrot.slane %v524, %v2273
        %v2292 = vunpack.c.l.b16 %v409
        %v2293 = vunpack.c.l.b16 %v410
        %v2294 = vunpack.c.l.b16 %v411
        %v2295 = vunpack.c.l.b16 %v412
        %v2296 = vunpack.c.l.b16 %v413
        %v2297 = vunpack.c.l.b16 %v414
        %v2298 = vunpack.c.l.b16 %v415
        %v2299 = vunpack.c.l.b16 %v416
        %v2300 = vunpack.c.l.b16 %v417
        %v2301 = vunpack.c.l.b16 %v418
        %v2302 = vunpack.c.l.b16 %v419
        %v2303 = vunpack.c.l.b16 %v420
        %v2304 = vunpack.c.l.b16 %v421
        %v2305 = vunpack.c.l.b16 %v422
        %v2306 = vunpack.c.l.b16 %v423
        %v2307 = vunpack.c.l.b16 %v424
        %v2308 = vpack.c.b16 %v2293, %v2292
        %v2309 = vpack.c.b16 %v2295, %v2294
        %v2310 = vpack.c.b16 %v2297, %v2296
        %v2311 = vpack.c.b16 %v2299, %v2298
        %v2312 = vpack.c.b16 %v2301, %v2300
        %v2313 = vpack.c.b16 %v2303, %v2302
        %v2314 = vpack.c.b16 %v2305, %v2304
        %v2315 = vpack.c.b16 %v2307, %v2306
        %2324 = vmatprep.subr.bf16.mxu0 0
        %2325 = vmatpush1.bf16.msra.mxu0 %v2315
        %2326 = vmatprep.subr.bf16.mxu0 0
        %2327 = vmatpush1.bf16.msra.mxu0 %v2314
        %2328 = vmatprep.subr.bf16.mxu0 0
        %2329 = vmatpush1.bf16.msra.mxu0 %v2313
        %2330 = vmatprep.subr.bf16.mxu0 0
        %2331 = vmatpush1.bf16.msra.mxu0 %v2312
        %2332 = vmatprep.subr.bf16.mxu0 0
        %2333 = vmatpush1.bf16.msra.mxu0 %v2311
        %2334 = vmatprep.subr.bf16.mxu0 0
        %2335 = vmatpush1.bf16.msra.mxu0 %v2310
        %2336 = vmatprep.subr.bf16.mxu0 0
        %2337 = vmatpush1.bf16.msra.mxu0 %v2309
        %2338 = vmatprep.subr.bf16.mxu0 0
        %2339 = vmatpush1.bf16.msra.mxu0 %v2308
        %2340 = vmatprep.subr.bf16.mxu0 0
        %2341 = vmatpush2.bf16.msra.mxu0 0
        %2342 = vmatprep.subr.bf16.mxu0 0
        %2343 = vmatpush2.bf16.msra.mxu0 0
        %2344 = vmatprep.subr.bf16.mxu0 0
        %2345 = vmatpush2.bf16.msra.mxu0 0
        %2346 = vmatprep.subr.bf16.mxu0 0
        %2347 = vmatpush2.bf16.msra.mxu0 0
        %2348 = vmatprep.subr.bf16.mxu0 0
        %2349 = vmatpush2.bf16.msra.mxu0 0
        %2350 = vmatprep.subr.bf16.mxu0 0
        %2351 = vmatpush2.bf16.msra.mxu0 0
        %2352 = vmatprep.subr.bf16.mxu0 0
        %2353 = vmatpush2.bf16.msra.mxu0 0
        %2354 = vmatprep.subr.bf16.mxu0 0
        %2355 = vmatpush2.bf16.msra.mxu0 0
        %2356 = vmatprep.mubr.bf16.mxu0 0
        %2357 = vmatmul.mubr.bf16.gmra.mxu0 %v2269
        %v2358 = vpop.f32.mrf.mxu0
        %v2359 = vadd.f32 %v2274, %v2358
        %v2360 = vpop.f32.mrf.mxu0
        %v2361 = vpop.f32.mrf.mxu0
        %v2362 = vadd.f32 %v2274, %v2361
        %v2363 = vpop.f32.mrf.mxu0
        %2364 = vdwg.mxu0
        %v2365 = vadd.f32 %v1470, %v2359
        %v2366 = vadd.f32 %v1471, %v2362
        %2367 = vadd.xlane.f32.xlu0 %v2365
        %v2368 = vpop.xlane.xlu0 %2367
        %2369 = vadd.xlane.f32.xlu0 %v2366
        %v2370 = vpop.xlane.xlu0 %2369
        %v2371 = vmul.f32 %v2368, %v1437
        %v2372 = vmul.f32 %v2370, %v1437
        %v2373 = vsub.f32 %v2365, %v2371
        %v2374 = vsub.f32 %v2366, %v2372
        %v2375 = vmul.f32 %v2373, %v2373
        %v2376 = vmul.f32 %v2374, %v2374
        %2377 = vadd.xlane.f32.xlu0 %v2375
        %v2378 = vpop.xlane.xlu0 %2377
        %2379 = vadd.xlane.f32.xlu0 %v2376
        %v2380 = vpop.xlane.xlu0 %2379
        %v2381 = vmul.f32 %v2378, %v1437
        %v2382 = vmul.f32 %v2380, %v1437
        %v2383 = vadd.f32 %v2381, 1e-05
        %v2384 = vadd.f32 %v2382, 1e-05
        %v2385 = vrsqrt.pop %v2383
        %v2386 = vrsqrt.pop %v2384
        %v2387 = vmul.f32 %v2373, %v2385
        %v2388 = vmul.f32 %v2374, %v2386
        %v2390 = vlaneseq
        %v2391 = vshrl.u32 %v2390, 7
        %v2392 = vsub.s32 0, %v2391
        %v2393 = vrot.slane %v529, %v2392
        %v2395 = vmul.f32 %v2387, %v2393
        %v2396 = vmul.f32 %v2388, %v2393
        %v2398 = vlaneseq
        %v2399 = vshrl.u32 %v2398, 7
        %v2400 = vsub.s32 0, %v2399
        %v2401 = vrot.slane %v530, %v2400
        %v2403 = vadd.f32 %v2395, %v2401
        %v2404 = vadd.f32 %v2396, %v2401
        %v2405 = vpack.c.bf16 %v2404, %v2403
        %v2407 = vlaneseq
        %v2408 = vshrl.u32 %v2407, 7
        %v2409 = vsub.s32 0, %v2408
        %v2410 = vrot.slane %v525, %v2409
        %v2411 = vlaneseq
        %v2412 = vshrl.u32 %v2411, 7
        %v2413 = vsub.s32 1, %v2412
        %v2414 = vrot.slane %v525, %v2413
        %v2415 = vlaneseq
        %v2416 = vshrl.u32 %v2415, 7
        %v2417 = vsub.s32 2, %v2416
        %v2418 = vrot.slane %v525, %v2417
        %v2419 = vlaneseq
        %v2420 = vshrl.u32 %v2419, 7
        %v2421 = vsub.s32 3, %v2420
        %v2422 = vrot.slane %v525, %v2421
        %v2459 = vunpack.c.l.b16 %v425
        %v2460 = vunpack.c.h.b16 %v425
        %v2461 = vunpack.c.l.b16 %v426
        %v2462 = vunpack.c.h.b16 %v426
        %v2463 = vunpack.c.l.b16 %v427
        %v2464 = vunpack.c.h.b16 %v427
        %v2465 = vunpack.c.l.b16 %v428
        %v2466 = vunpack.c.h.b16 %v428
        %v2467 = vunpack.c.l.b16 %v429
        %v2468 = vunpack.c.h.b16 %v429
        %v2469 = vunpack.c.l.b16 %v430
        %v2470 = vunpack.c.h.b16 %v430
        %v2471 = vunpack.c.l.b16 %v431
        %v2472 = vunpack.c.h.b16 %v431
        %v2473 = vunpack.c.l.b16 %v432
        %v2474 = vunpack.c.h.b16 %v432
        %v2475 = vunpack.c.l.b16 %v433
        %v2476 = vunpack.c.h.b16 %v433
        %v2477 = vunpack.c.l.b16 %v434
        %v2478 = vunpack.c.h.b16 %v434
        %v2479 = vunpack.c.l.b16 %v435
        %v2480 = vunpack.c.h.b16 %v435
        %v2481 = vunpack.c.l.b16 %v436
        %v2482 = vunpack.c.h.b16 %v436
        %v2483 = vunpack.c.l.b16 %v437
        %v2484 = vunpack.c.h.b16 %v437
        %v2485 = vunpack.c.l.b16 %v438
        %v2486 = vunpack.c.h.b16 %v438
        %v2487 = vunpack.c.l.b16 %v439
        %v2488 = vunpack.c.h.b16 %v439
        %v2489 = vunpack.c.l.b16 %v440
        %v2490 = vunpack.c.h.b16 %v440
        %v2491 = vunpack.c.l.b16 %v441
        %v2492 = vunpack.c.h.b16 %v441
        %v2493 = vunpack.c.l.b16 %v442
        %v2494 = vunpack.c.h.b16 %v442
        %v2495 = vunpack.c.l.b16 %v443
        %v2496 = vunpack.c.h.b16 %v443
        %v2497 = vunpack.c.l.b16 %v444
        %v2498 = vunpack.c.h.b16 %v444
        %v2499 = vunpack.c.l.b16 %v445
        %v2500 = vunpack.c.h.b16 %v445
        %v2501 = vunpack.c.l.b16 %v446
        %v2502 = vunpack.c.h.b16 %v446
        %v2503 = vunpack.c.l.b16 %v447
        %v2504 = vunpack.c.h.b16 %v447
        %v2505 = vunpack.c.l.b16 %v448
        %v2506 = vunpack.c.h.b16 %v448
        %v2507 = vunpack.c.l.b16 %v449
        %v2508 = vunpack.c.h.b16 %v449
        %v2509 = vunpack.c.l.b16 %v450
        %v2510 = vunpack.c.h.b16 %v450
        %v2511 = vunpack.c.l.b16 %v451
        %v2512 = vunpack.c.h.b16 %v451
        %v2513 = vunpack.c.l.b16 %v452
        %v2514 = vunpack.c.h.b16 %v452
        %v2515 = vunpack.c.l.b16 %v453
        %v2516 = vunpack.c.h.b16 %v453
        %v2517 = vunpack.c.l.b16 %v454
        %v2518 = vunpack.c.h.b16 %v454
        %v2519 = vunpack.c.l.b16 %v455
        %v2520 = vunpack.c.h.b16 %v455
        %v2521 = vunpack.c.l.b16 %v456
        %v2522 = vunpack.c.h.b16 %v456
        %v2523 = vpack.c.b16 %v2463, %v2459
        %v2524 = vpack.c.b16 %v2464, %v2460
        %v2525 = vpack.c.b16 %v2465, %v2461
        %v2526 = vpack.c.b16 %v2466, %v2462
        %v2527 = vpack.c.b16 %v2471, %v2467
        %v2528 = vpack.c.b16 %v2472, %v2468
        %v2529 = vpack.c.b16 %v2473, %v2469
        %v2530 = vpack.c.b16 %v2474, %v2470
        %v2531 = vpack.c.b16 %v2479, %v2475
        %v2532 = vpack.c.b16 %v2480, %v2476
        %v2533 = vpack.c.b16 %v2481, %v2477
        %v2534 = vpack.c.b16 %v2482, %v2478
        %v2535 = vpack.c.b16 %v2487, %v2483
        %v2536 = vpack.c.b16 %v2488, %v2484
        %v2537 = vpack.c.b16 %v2489, %v2485
        %v2538 = vpack.c.b16 %v2490, %v2486
        %v2539 = vpack.c.b16 %v2495, %v2491
        %v2540 = vpack.c.b16 %v2496, %v2492
        %v2541 = vpack.c.b16 %v2497, %v2493
        %v2542 = vpack.c.b16 %v2498, %v2494
        %v2543 = vpack.c.b16 %v2503, %v2499
        %v2544 = vpack.c.b16 %v2504, %v2500
        %v2545 = vpack.c.b16 %v2505, %v2501
        %v2546 = vpack.c.b16 %v2506, %v2502
        %v2547 = vpack.c.b16 %v2511, %v2507
        %v2548 = vpack.c.b16 %v2512, %v2508
        %v2549 = vpack.c.b16 %v2513, %v2509
        %v2550 = vpack.c.b16 %v2514, %v2510
        %v2551 = vpack.c.b16 %v2519, %v2515
        %v2552 = vpack.c.b16 %v2520, %v2516
        %v2553 = vpack.c.b16 %v2521, %v2517
        %v2554 = vpack.c.b16 %v2522, %v2518
        %2587 = vmatprep.subr.bf16.mxu0 %v2552
        %2588 = vmatpush1.bf16.msra.mxu0 %v2551
        %2589 = vmatprep.subr.bf16.mxu0 %v2548
        %2590 = vmatpush1.bf16.msra.mxu0 %v2547
        %2591 = vmatprep.subr.bf16.mxu0 %v2544
        %2592 = vmatpush1.bf16.msra.mxu0 %v2543
        %2593 = vmatprep.subr.bf16.mxu0 %v2540
        %2594 = vmatpush1.bf16.msra.mxu0 %v2539
        %2595 = vmatprep.subr.bf16.mxu0 %v2536
        %2596 = vmatpush1.bf16.msra.mxu0 %v2535
        %2597 = vmatprep.subr.bf16.mxu0 %v2532
        %2598 = vmatpush1.bf16.msra.mxu0 %v2531
        %2599 = vmatprep.subr.bf16.mxu0 %v2528
        %2600 = vmatpush1.bf16.msra.mxu0 %v2527
        %2601 = vmatprep.subr.bf16.mxu0 %v2524
        %2602 = vmatpush1.bf16.msra.mxu0 %v2523
        %2603 = vmatprep.subr.bf16.mxu0 0
        %2604 = vmatpush2.bf16.msra.mxu0 0
        %2605 = vmatprep.subr.bf16.mxu0 0
        %2606 = vmatpush2.bf16.msra.mxu0 0
        %2607 = vmatprep.subr.bf16.mxu0 0
        %2608 = vmatpush2.bf16.msra.mxu0 0
        %2609 = vmatprep.subr.bf16.mxu0 0
        %2610 = vmatpush2.bf16.msra.mxu0 0
        %2611 = vmatprep.subr.bf16.mxu0 0
        %2612 = vmatpush2.bf16.msra.mxu0 0
        %2613 = vmatprep.subr.bf16.mxu0 0
        %2614 = vmatpush2.bf16.msra.mxu0 0
        %2615 = vmatprep.subr.bf16.mxu0 0
        %2616 = vmatpush2.bf16.msra.mxu0 0
        %2617 = vmatprep.subr.bf16.mxu0 0
        %2618 = vmatpush2.bf16.msra.mxu0 0
        %2619 = vmatprep.mubr.bf16.mxu0 0
        %2620 = vmatmul.mubr.bf16.gmra.mxu0 %v2405
        %v2621 = vpop.f32.mrf.mxu0
        %v2622 = vadd.f32 %v2410, %v2621
        %v2623 = vpop.f32.mrf.mxu0
        %v2624 = vadd.f32 %v2414, %v2623
        %v2625 = vpop.f32.mrf.mxu0
        %v2626 = vadd.f32 %v2410, %v2625
        %v2627 = vpop.f32.mrf.mxu0
        %v2628 = vadd.f32 %v2414, %v2627
        %2629 = vdwg.mxu0
        %2630 = vmatprep.subr.bf16.mxu0 %v2554
        %2631 = vmatpush1.bf16.msra.mxu0 %v2553
        %2632 = vmatprep.subr.bf16.mxu0 %v2550
        %2633 = vmatpush1.bf16.msra.mxu0 %v2549
        %2634 = vmatprep.subr.bf16.mxu0 %v2546
        %2635 = vmatpush1.bf16.msra.mxu0 %v2545
        %2636 = vmatprep.subr.bf16.mxu0 %v2542
        %2637 = vmatpush1.bf16.msra.mxu0 %v2541
        %2638 = vmatprep.subr.bf16.mxu0 %v2538
        %2639 = vmatpush1.bf16.msra.mxu0 %v2537
        %2640 = vmatprep.subr.bf16.mxu0 %v2534
        %2641 = vmatpush1.bf16.msra.mxu0 %v2533
        %2642 = vmatprep.subr.bf16.mxu0 %v2530
        %2643 = vmatpush1.bf16.msra.mxu0 %v2529
        %2644 = vmatprep.subr.bf16.mxu0 %v2526
        %2645 = vmatpush1.bf16.msra.mxu0 %v2525
        %2646 = vmatprep.subr.bf16.mxu0 0
        %2647 = vmatpush2.bf16.msra.mxu0 0
        %2648 = vmatprep.subr.bf16.mxu0 0
        %2649 = vmatpush2.bf16.msra.mxu0 0
        %2650 = vmatprep.subr.bf16.mxu0 0
        %2651 = vmatpush2.bf16.msra.mxu0 0
        %2652 = vmatprep.subr.bf16.mxu0 0
        %2653 = vmatpush2.bf16.msra.mxu0 0
        %2654 = vmatprep.subr.bf16.mxu0 0
        %2655 = vmatpush2.bf16.msra.mxu0 0
        %2656 = vmatprep.subr.bf16.mxu0 0
        %2657 = vmatpush2.bf16.msra.mxu0 0
        %2658 = vmatprep.subr.bf16.mxu0 0
        %2659 = vmatpush2.bf16.msra.mxu0 0
        %2660 = vmatprep.subr.bf16.mxu0 0
        %2661 = vmatpush2.bf16.msra.mxu0 0
        %2662 = vmatprep.mubr.bf16.mxu0 0
        %2663 = vmatmul.mubr.bf16.gmra.mxu0 %v2405
        %v2664 = vpop.f32.mrf.mxu0
        %v2665 = vadd.f32 %v2418, %v2664
        %v2666 = vpop.f32.mrf.mxu0
        %v2667 = vadd.f32 %v2422, %v2666
        %v2668 = vpop.f32.mrf.mxu0
        %v2669 = vadd.f32 %v2418, %v2668
        %v2670 = vpop.f32.mrf.mxu0
        %v2671 = vadd.f32 %v2422, %v2670
        %2672 = vdwg.mxu0
        %v2673 = vmax.f32 %v2622, 0.0
        %v2674 = vmax.f32 %v2624, 0.0
        %v2675 = vmax.f32 %v2665, 0.0
        %v2676 = vmax.f32 %v2667, 0.0
        %v2677 = vmax.f32 %v2626, 0.0
        %v2678 = vmax.f32 %v2628, 0.0
        %v2679 = vmax.f32 %v2669, 0.0
        %v2680 = vmax.f32 %v2671, 0.0
        %v2681 = vpack.c.bf16 %v2677, %v2673
        %v2682 = vpack.c.bf16 %v2678, %v2674
        %v2683 = vpack.c.bf16 %v2679, %v2675
        %v2684 = vpack.c.bf16 %v2680, %v2676
        %v2686 = vlaneseq
        %v2687 = vshrl.u32 %v2686, 7
        %v2688 = vsub.s32 0, %v2687
        %v2689 = vrot.slane %v526, %v2688
        %v2755 = vunpack.c.l.b16 %v457
        %v2756 = vunpack.c.l.b16 %v458
        %v2757 = vunpack.c.l.b16 %v459
        %v2758 = vunpack.c.l.b16 %v460
        %v2759 = vunpack.c.l.b16 %v461
        %v2760 = vunpack.c.l.b16 %v462
        %v2761 = vunpack.c.l.b16 %v463
        %v2762 = vunpack.c.l.b16 %v464
        %v2763 = vunpack.c.l.b16 %v465
        %v2764 = vunpack.c.l.b16 %v466
        %v2765 = vunpack.c.l.b16 %v467
        %v2766 = vunpack.c.l.b16 %v468
        %v2767 = vunpack.c.l.b16 %v469
        %v2768 = vunpack.c.l.b16 %v470
        %v2769 = vunpack.c.l.b16 %v471
        %v2770 = vunpack.c.l.b16 %v472
        %v2771 = vunpack.c.l.b16 %v473
        %v2772 = vunpack.c.l.b16 %v474
        %v2773 = vunpack.c.l.b16 %v475
        %v2774 = vunpack.c.l.b16 %v476
        %v2775 = vunpack.c.l.b16 %v477
        %v2776 = vunpack.c.l.b16 %v478
        %v2777 = vunpack.c.l.b16 %v479
        %v2778 = vunpack.c.l.b16 %v480
        %v2779 = vunpack.c.l.b16 %v481
        %v2780 = vunpack.c.l.b16 %v482
        %v2781 = vunpack.c.l.b16 %v483
        %v2782 = vunpack.c.l.b16 %v484
        %v2783 = vunpack.c.l.b16 %v485
        %v2784 = vunpack.c.l.b16 %v486
        %v2785 = vunpack.c.l.b16 %v487
        %v2786 = vunpack.c.l.b16 %v488
        %v2787 = vunpack.c.l.b16 %v489
        %v2788 = vunpack.c.l.b16 %v490
        %v2789 = vunpack.c.l.b16 %v491
        %v2790 = vunpack.c.l.b16 %v492
        %v2791 = vunpack.c.l.b16 %v493
        %v2792 = vunpack.c.l.b16 %v494
        %v2793 = vunpack.c.l.b16 %v495
        %v2794 = vunpack.c.l.b16 %v496
        %v2795 = vunpack.c.l.b16 %v497
        %v2796 = vunpack.c.l.b16 %v498
        %v2797 = vunpack.c.l.b16 %v499
        %v2798 = vunpack.c.l.b16 %v500
        %v2799 = vunpack.c.l.b16 %v501
        %v2800 = vunpack.c.l.b16 %v502
        %v2801 = vunpack.c.l.b16 %v503
        %v2802 = vunpack.c.l.b16 %v504
        %v2803 = vunpack.c.l.b16 %v505
        %v2804 = vunpack.c.l.b16 %v506
        %v2805 = vunpack.c.l.b16 %v507
        %v2806 = vunpack.c.l.b16 %v508
        %v2807 = vunpack.c.l.b16 %v509
        %v2808 = vunpack.c.l.b16 %v510
        %v2809 = vunpack.c.l.b16 %v511
        %v2810 = vunpack.c.l.b16 %v512
        %v2811 = vunpack.c.l.b16 %v513
        %v2812 = vunpack.c.l.b16 %v514
        %v2813 = vunpack.c.l.b16 %v515
        %v2814 = vunpack.c.l.b16 %v516
        %v2815 = vunpack.c.l.b16 %v517
        %v2816 = vunpack.c.l.b16 %v518
        %v2817 = vunpack.c.l.b16 %v519
        %v2818 = vunpack.c.l.b16 %v520
        %v2819 = vpack.c.b16 %v2756, %v2755
        %v2820 = vpack.c.b16 %v2758, %v2757
        %v2821 = vpack.c.b16 %v2760, %v2759
        %v2822 = vpack.c.b16 %v2762, %v2761
        %v2823 = vpack.c.b16 %v2764, %v2763
        %v2824 = vpack.c.b16 %v2766, %v2765
        %v2825 = vpack.c.b16 %v2768, %v2767
        %v2826 = vpack.c.b16 %v2770, %v2769
        %v2827 = vpack.c.b16 %v2772, %v2771
        %v2828 = vpack.c.b16 %v2774, %v2773
        %v2829 = vpack.c.b16 %v2776, %v2775
        %v2830 = vpack.c.b16 %v2778, %v2777
        %v2831 = vpack.c.b16 %v2780, %v2779
        %v2832 = vpack.c.b16 %v2782, %v2781
        %v2833 = vpack.c.b16 %v2784, %v2783
        %v2834 = vpack.c.b16 %v2786, %v2785
        %v2835 = vpack.c.b16 %v2788, %v2787
        %v2836 = vpack.c.b16 %v2790, %v2789
        %v2837 = vpack.c.b16 %v2792, %v2791
        %v2838 = vpack.c.b16 %v2794, %v2793
        %v2839 = vpack.c.b16 %v2796, %v2795
        %v2840 = vpack.c.b16 %v2798, %v2797
        %v2841 = vpack.c.b16 %v2800, %v2799
        %v2842 = vpack.c.b16 %v2802, %v2801
        %v2843 = vpack.c.b16 %v2804, %v2803
        %v2844 = vpack.c.b16 %v2806, %v2805
        %v2845 = vpack.c.b16 %v2808, %v2807
        %v2846 = vpack.c.b16 %v2810, %v2809
        %v2847 = vpack.c.b16 %v2812, %v2811
        %v2848 = vpack.c.b16 %v2814, %v2813
        %v2849 = vpack.c.b16 %v2816, %v2815
        %v2850 = vpack.c.b16 %v2818, %v2817
        %2883 = vmatprep.subr.bf16.mxu0 0
        %2884 = vmatpush1.bf16.msra.mxu0 %v2826
        %2885 = vmatprep.subr.bf16.mxu0 0
        %2886 = vmatpush1.bf16.msra.mxu0 %v2825
        %2887 = vmatprep.subr.bf16.mxu0 0
        %2888 = vmatpush1.bf16.msra.mxu0 %v2824
        %2889 = vmatprep.subr.bf16.mxu0 0
        %2890 = vmatpush1.bf16.msra.mxu0 %v2823
        %2891 = vmatprep.subr.bf16.mxu0 0
        %2892 = vmatpush1.bf16.msra.mxu0 %v2822
        %2893 = vmatprep.subr.bf16.mxu0 0
        %2894 = vmatpush1.bf16.msra.mxu0 %v2821
        %2895 = vmatprep.subr.bf16.mxu0 0
        %2896 = vmatpush1.bf16.msra.mxu0 %v2820
        %2897 = vmatprep.subr.bf16.mxu0 0
        %2898 = vmatpush1.bf16.msra.mxu0 %v2819
        %2899 = vmatprep.subr.bf16.mxu0 0
        %2900 = vmatpush2.bf16.msra.mxu0 %v2834
        %2901 = vmatprep.subr.bf16.mxu0 0
        %2902 = vmatpush2.bf16.msra.mxu0 %v2833
        %2903 = vmatprep.subr.bf16.mxu0 0
        %2904 = vmatpush2.bf16.msra.mxu0 %v2832
        %2905 = vmatprep.subr.bf16.mxu0 0
        %2906 = vmatpush2.bf16.msra.mxu0 %v2831
        %2907 = vmatprep.subr.bf16.mxu0 0
        %2908 = vmatpush2.bf16.msra.mxu0 %v2830
        %2909 = vmatprep.subr.bf16.mxu0 0
        %2910 = vmatpush2.bf16.msra.mxu0 %v2829
        %2911 = vmatprep.subr.bf16.mxu0 0
        %2912 = vmatpush2.bf16.msra.mxu0 %v2828
        %2913 = vmatprep.subr.bf16.mxu0 0
        %2914 = vmatpush2.bf16.msra.mxu0 %v2827
        %2915 = vmatprep.mubr.bf16.mxu0 %v2682
        %2916 = vmatmul.mubr.bf16.gmra.mxu0 %v2681
        %v2917 = vpop.f32.mrf.mxu0
        %v2918 = vadd.f32 %v2689, %v2917
        %v2919 = vpop.f32.mrf.mxu0
        %v2920 = vpop.f32.mrf.mxu0
        %v2921 = vadd.f32 %v2689, %v2920
        %v2922 = vpop.f32.mrf.mxu0
        %2923 = vdwg.mxu0
        %2924 = vmatprep.subr.bf16.mxu0 0
        %2925 = vmatpush1.bf16.msra.mxu0 %v2842
        %2926 = vmatprep.subr.bf16.mxu0 0
        %2927 = vmatpush1.bf16.msra.mxu0 %v2841
        %2928 = vmatprep.subr.bf16.mxu0 0
        %2929 = vmatpush1.bf16.msra.mxu0 %v2840
        %2930 = vmatprep.subr.bf16.mxu0 0
        %2931 = vmatpush1.bf16.msra.mxu0 %v2839
        %2932 = vmatprep.subr.bf16.mxu0 0
        %2933 = vmatpush1.bf16.msra.mxu0 %v2838
        %2934 = vmatprep.subr.bf16.mxu0 0
        %2935 = vmatpush1.bf16.msra.mxu0 %v2837
        %2936 = vmatprep.subr.bf16.mxu0 0
        %2937 = vmatpush1.bf16.msra.mxu0 %v2836
        %2938 = vmatprep.subr.bf16.mxu0 0
        %2939 = vmatpush1.bf16.msra.mxu0 %v2835
        %2940 = vmatprep.subr.bf16.mxu0 0
        %2941 = vmatpush2.bf16.msra.mxu0 %v2850
        %2942 = vmatprep.subr.bf16.mxu0 0
        %2943 = vmatpush2.bf16.msra.mxu0 %v2849
        %2944 = vmatprep.subr.bf16.mxu0 0
        %2945 = vmatpush2.bf16.msra.mxu0 %v2848
        %2946 = vmatprep.subr.bf16.mxu0 0
        %2947 = vmatpush2.bf16.msra.mxu0 %v2847
        %2948 = vmatprep.subr.bf16.mxu0 0
        %2949 = vmatpush2.bf16.msra.mxu0 %v2846
        %2950 = vmatprep.subr.bf16.mxu0 0
        %2951 = vmatpush2.bf16.msra.mxu0 %v2845
        %2952 = vmatprep.subr.bf16.mxu0 0
        %2953 = vmatpush2.bf16.msra.mxu0 %v2844
        %2954 = vmatprep.subr.bf16.mxu0 0
        %2955 = vmatpush2.bf16.msra.mxu0 %v2843
        %2956 = vmatprep.mubr.bf16.mxu0 %v2684
        %2957 = vmatmul.mubr.bf16.gmra.mxu0 %v2683
        %v2958 = vpop.f32.mrf.mxu0
        %v2959 = vadd.f32 %v2918, %v2958
        %v2960 = vpop.f32.mrf.mxu0
        %v2961 = vpop.f32.mrf.mxu0
        %v2962 = vadd.f32 %v2921, %v2961
        %v2963 = vpop.f32.mrf.mxu0
        %2964 = vdwg.mxu0
        %v2965 = vadd.f32 %v2403, %v2959
        %v2966 = vadd.f32 %v2404, %v2962
        %2967 = vadd.xlane.f32.xlu0 %v2965
        %v2968 = vpop.xlane.xlu0 %2967
        %2969 = vadd.xlane.f32.xlu0 %v2966
        %v2970 = vpop.xlane.xlu0 %2969
        %v2971 = vmul.f32 %v2968, %v1437
        %v2972 = vmul.f32 %v2970, %v1437
        %v2973 = vsub.f32 %v2965, %v2971
        %v2974 = vsub.f32 %v2966, %v2972
        %v2975 = vmul.f32 %v2973, %v2973
        %v2976 = vmul.f32 %v2974, %v2974
        %2977 = vadd.xlane.f32.xlu0 %v2975
        %v2978 = vpop.xlane.xlu0 %2977
        %2979 = vadd.xlane.f32.xlu0 %v2976
        %v2980 = vpop.xlane.xlu0 %2979
        %v2981 = vmul.f32 %v2978, %v1437
        %v2982 = vmul.f32 %v2980, %v1437
        %v2983 = vadd.f32 %v2981, 1e-05
        %v2984 = vadd.f32 %v2982, 1e-05
        %v2985 = vrsqrt.pop %v2983
        %v2986 = vrsqrt.pop %v2984
        %v2987 = vmul.f32 %v2973, %v2985
        %v2988 = vmul.f32 %v2974, %v2986
        %v2990 = vlaneseq
        %v2991 = vshrl.u32 %v2990, 7
        %v2992 = vsub.s32 0, %v2991
        %v2993 = vrot.slane %v531, %v2992
        %v2995 = vmul.f32 %v2987, %v2993
        %v2996 = vmul.f32 %v2988, %v2993
        %v2998 = vlaneseq
        %v2999 = vshrl.u32 %v2998, 7
        %v3000 = vsub.s32 0, %v2999
        %v3001 = vrot.slane %v532, %v3000
        %v3003 = vadd.f32 %v2995, %v3001
        %v3004 = vadd.f32 %v2996, %v3001
        %3005 = vst [vmem:[%s323] sm:$0xff] %v3003
        %3006 = vst [vmem:[%s323 + $0x8] sm:$0xff] %v3004
        %s3007 = sand.u32 %s149, 1
        %s3008 = scalar_lea.sflag [#allocation4], %s3007
        %s3009 = sand.u32 %s149, 1
        %s3010 = smul.addr %s3009, 16
        %s3011 = scalar_lea.vmem [#allocation11], %s3010
        // Predicated region
        $region61: #{tpu_custom_call.1} parent=39 // pred_check
          %p3012 = pneg %p159
        $region62: #{tpu_custom_call.1} parent=39 // pred_check_branch
          %3014 = sbr.rel (%p3012) target = $region64
        $region63: #{tpu_custom_call.1} parent=39 // pred_region
          %s3016 = ssub.s32 256, 256
          %3017 = vsyncadd %s3008, %s3016
          %s3018 = smul.addr %s26, 2
          %s3019 = smul.addr %s3018, 128
          %s3020 = scalar_lea.hbm %s5, %s3019
          %s3021 = sshll.u32 %s3011, 4
          %s3022 = int_to_ptr.vmem [resolvable:$true] %s3021
          %3027 = dma.vmem_to_hbm [thread:$0]  %s3022, 256, %s3020, %s3008, 128, 128, 8
        $region64: #{tpu_custom_call.1} parent=39 // pred_fallthru
          _
      $region40: #{tpu_custom_call.1} parent=5 // pred_fallthru
        _
      %p3028 = scmp.le.s32.totalorder 2, %s21
      // Predicated region
      $region65: #{tpu_custom_call.1} parent=5 // pred_check
        %p3029 = pneg %p3028
      $region66: #{tpu_custom_call.1} parent=5 // pred_check_branch
        %3031 = sbr.rel (%p3029) target = $region68
      $region67: #{tpu_custom_call.1} parent=5 // pred_region
        %s3032 = ssub.s32 %s21, 2
        // Predicated region
        $region69: #{tpu_custom_call.1} parent=67 // pred_check
          %p3033 = pneg %p165
        $region70: #{tpu_custom_call.1} parent=67 // pred_check_branch
          %3035 = sbr.rel (%p3033) target = $region72
        $region71: #{tpu_custom_call.1} parent=67 // pred_region
          %s3036 = sand.u32 %s150, 1
          %s3037 = scalar_lea.sflag [#allocation4], %s3036
          %s3038 = sand.u32 %s150, 1
          %s3039 = smul.addr %s3038, 16
          %s3040 = scalar_lea.vmem [#allocation11], %s3039
          %3041 = dma.done %s3037, 256
        $region72: #{tpu_custom_call.1} parent=67 // pred_fallthru
          _
      $region68: #{tpu_custom_call.1} parent=5 // pred_fallthru
        _
    $region6: #{tpu_custom_call.1} parent=1 // loop_footer
      %s25 = sadd.s32 1, %s21
    $region7: #{tpu_custom_call.1} parent=1 // loop_footer_branch
      %20 = sbr.rel target = $region3
    $region8: #{tpu_custom_call.1} parent=1 // loop_exit
      _
    %3042 = vsyncpa [#allocation3], 1
    %s3043 = scalar_lea.sflag [#allocation3], 1
    %3044 = vsyncpa %s3043, 1
    %3045 = vsyncpa [#allocation6], 1
    %s3046 = scalar_lea.sflag [#allocation6], 1
    %3047 = vsyncpa %s3046, 1
    %3048 = vsyncpa [#allocation9], 1
    %3049 = vsyncpa [#allocation4], 1
    %s3050 = scalar_lea.sflag [#allocation4], 1
    %3051 = vsyncpa %s3050, 1

</llo_original>
